<compile_context>
chip_gen: v6e
topology: v6e:2x2x1
jax: 0.10.0
libtpu: 0.0.40
codegen_flags: <defaults>
</compile_context>

<pallas_src>
import numpy as np
import jax
import jax.numpy as jnp
from jax.experimental import pallas as pl
from jax.experimental.pallas import tpu as pltpu

LN_EPS = 0.1                      # LayerNorm eps used by Encoder(..., eps=0.1)
LOG_2PI = float(np.log(2.0 * np.pi))
UNIF_LOGVAR = 10.0                # logvar_uniform_prior buffer value
INV_EXP_UNIF = float(np.exp(-UNIF_LOGVAR))

_PARAM_ORDER = ("w1", "b1", "g1", "be1",
                "w2", "b2", "g2", "be2",
                "w3", "b3", "g3", "be3")


def _make_composite_prior_kernel(log_mix_weights, latent_dim, matmul_dtype):
    lw0, lw1, lw2 = (float(w) for w in log_mix_weights)

    def kernel(x_ref, z_ref,
               w1_ref, b1_ref, g1_ref, be1_ref,
               w2_ref, b2_ref, g2_ref, be2_ref,
               w3_ref, b3_ref, g3_ref, be3_ref,
               whead_ref, bhead_ref,
               out_ref):
        f32 = jnp.float32
        x = x_ref[...].astype(f32)        # streamed as bf16; elementwise in f32
        z = z_ref[...].astype(f32)

        # ---- Encoder.forward(x, dropout_prob=0) ----
        # F.normalize(x): L2 normalize along the feature dim; rsqrt -> EUP slot.
        sumsq = jnp.sum(x * x, axis=-1, keepdims=True)
        x = x * jax.lax.rsqrt(jnp.maximum(sumsq, 1e-24))
        # dropout(p=0) is a no-op.

        def linear(v, w_ref, b_ref):
            # bf16 x bf16 -> f32 accumulation on the MXU.
            return jnp.dot(v.astype(matmul_dtype), w_ref[...],
                           preferred_element_type=f32) + b_ref[...]

        def swish(v):
            return v * jax.nn.sigmoid(v)              # logistic -> EUP

        def layer_norm(v, gamma_ref, beta_ref):
            # Centered two-pass variance (numerically safer than E[x^2]-E[x]^2).
            h = v.shape[-1]
            mean = jnp.sum(v, axis=-1, keepdims=True) * (1.0 / h)
            c = v - mean
            var = jnp.sum(c * c, axis=-1, keepdims=True) * (1.0 / h)  # biased
            return c * jax.lax.rsqrt(var + LN_EPS) * gamma_ref[...] + beta_ref[...]

        h1 = layer_norm(swish(linear(x, w1_ref, b1_ref)), g1_ref, be1_ref)
        h2 = layer_norm(swish(linear(h1, w2_ref, b2_ref) + h1), g2_ref, be2_ref)
        h3 = layer_norm(swish(linear(h2, w3_ref, b3_ref) + h1 + h2), g3_ref, be3_ref)

        # Fused mu/logvar head: one MXU pass with N = 2*latent, then static
        # lane-aligned slices (latent is a multiple of 128 here).
        head = linear(h3, whead_ref, bhead_ref)
        post_mu = head[:, :latent_dim]
        post_logvar = head[:, latent_dim:]

        # ---- mixture of three log-normal densities + logsumexp ----
        # Standard & uniform priors have constant (mu=0, logvar={0,10}) params:
        # folded into closed forms (no per-element exp()).
        z2 = z * z
        g_stnd = -0.5 * (LOG_2PI + z2) + lw0
        d = z - post_mu
        g_post = -0.5 * (post_logvar + LOG_2PI + d * d * jnp.exp(-post_logvar)) + lw1
        g_unif = -0.5 * (UNIF_LOGVAR + LOG_2PI + z2 * INV_EXP_UNIF) + lw2

        m = jnp.maximum(jnp.maximum(g_stnd, g_post), g_unif)
        out = m + jnp.log(jnp.exp(g_stnd - m) + jnp.exp(g_post - m) + jnp.exp(g_unif - m))
        out_ref[...] = out.astype(out_ref.dtype)

    return kernel


def _vmem_capacity_bytes():
    try:
        return int(pltpu.get_tpu_info().vmem_capacity_bytes)
    except Exception:
        return 64 * 1024 * 1024      # assume the most constrained (v7x per-TC)


def composite_prior_forward(x, z, params, mixture_weights, *,
                            block_m=256, matmul_dtype=jnp.bfloat16,
                            stream_dtype=jnp.bfloat16):
    """CompositePrior.forward(x, z) -> log mixture density, shape [B, latent]."""
    B, input_dim = x.shape
    _, latent_dim = z.shape
    hidden_dim = params["w1"].shape[1]

    # x is the only per-batch HBM stream that scales with input_dim: move it in
    # bf16 (the MXU consumes bf16 anyway); z / output stay f32.
    x_stream = x.astype(stream_dtype)
    z = z.astype(jnp.float32)

    # Fused head weights: pack (hidden, latent)+(hidden, latent) -> (hidden, 2L).
    # (In production, pre-pack once outside the forward; here it is a tiny concat.)
    w_head = jnp.concatenate([params["wmu"], params["wlv"]], axis=1)
    b_head = jnp.concatenate([params["bmu"], params["blv"]], axis=1)
    param_inputs = tuple(params[k] for k in _PARAM_ORDER) + (w_head, b_head)
    param_bytes = sum(int(p.size) * p.dtype.itemsize for p in param_inputs)

    def vmem_estimate(bm, param_buffers):
        x_tile = bm * input_dim * x_stream.dtype.itemsize * 2      # double buffered
        z_tile = bm * latent_dim * 4 * 2
        o_tile = bm * latent_dim * 4 * 2
        live = bm * hidden_dim * 4 * 6 + bm * (2 * latent_dim) * 4 * 2  # h1..h3/head temps
        return x_tile + z_tile + o_tile + param_bytes * param_buffers + live

    vmem_cap = _vmem_capacity_bytes()
    vmem_budget = int(0.85 * vmem_cap)

    # ---- choose the batch tile ----
    bm = max(8, min(block_m, B))
    if bm < B:
        bm = max(8, (bm // 8) * 8)
    # Prefer >= 2 grid steps so v7x's two TensorCores both get work (the cost on
    # single-TC v5e/v6e is one extra ~0.35us grid step).
    if bm == B and B >= 16 and (B // 2) % 8 == 0:
        bm = B // 2
    # Shrink (halving, multiples of 8) until the VMEM estimate fits the budget.
    while bm > 8 and vmem_estimate(bm, 1) > vmem_budget:
        bm = max(8, ((bm // 2) // 8) * 8)
    block_m = bm
    grid = (pl.cdiv(B, block_m),)
    # NOTE: if B % block_m != 0 the padded tail rows may produce NaN/Inf through
    # rsqrt/exp; this is safe because all reductions are per-row and the output
    # writes for padded rows are masked.

    log_w = tuple(float(np.log(w)) for w in mixture_weights)
    kernel = _make_composite_prior_kernel(log_w, latent_dim, matmul_dtype)

    batch_map = lambda i: (i, 0)     # tiles move with the batch grid index
    const_map = lambda i: (0, 0)     # frozen weights stay VMEM-resident

    x_spec = pl.BlockSpec((block_m, input_dim), batch_map)
    z_spec = pl.BlockSpec((block_m, latent_dim), batch_map)
    out_spec = pl.BlockSpec((block_m, latent_dim), batch_map)

    # Explicit VMEM budget (default scoped limits are 16/32/32 MiB) with headroom.
    vmem_limit = int(min(vmem_budget,
                         max(32 * 1024 * 1024, int(1.3 * vmem_estimate(block_m, 2)))))

    # Advisory cost estimate for the XLA scheduler.
    flops = 2 * B * (input_dim * hidden_dim
                     + 2 * hidden_dim * hidden_dim
                     + hidden_dim * 2 * latent_dim)
    bytes_accessed = int(x_stream.size * x_stream.dtype.itemsize
                         + z.size * z.dtype.itemsize
                         + param_bytes + B * latent_dim * 4)
    transcendentals = B * (3 * hidden_dim + 4 * latent_dim + 8)

    def build(param_pipeline_mode):
        if param_pipeline_mode is None:
            p_specs = [pl.BlockSpec(p.shape, const_map) for p in param_inputs]
        else:
            p_specs = [pl.BlockSpec(p.shape, const_map,
                                    pipeline_mode=param_pipeline_mode)
                       for p in param_inputs]
        return pl.pallas_call(
            kernel,
            out_shape=jax.ShapeDtypeStruct((B, latent_dim), jnp.float32),
            grid=grid,
            in_specs=[x_spec, z_spec] + p_specs,
            out_specs=out_spec,
            compiler_params=pltpu.CompilerParams(
                dimension_semantics=("parallel",),     # megacore split on v7x
                vmem_limit_bytes=vmem_limit),
            cost_estimate=pl.CostEstimate(flops=flops,
                                          transcendentals=transcendentals,
                                          bytes_accessed=bytes_accessed),
        )

    try:
        # Constant-index params: request a single buffer (their block index never
        # changes, so default double buffering only doubles resident VMEM).
        return build(pl.Buffered(1))(x_stream, z, *param_inputs)
    except Exception:
        # Fallback for jax builds that reject single buffering on the top-level
        # pipeline: identical semantics, default double-buffered param specs.
        return build(None)(x_stream, z, *param_inputs)


def init_params(key, hidden_dim, latent_dim, input_dim, *, weight_dtype=jnp.bfloat16):
    ks = jax.random.split(key, 5)
    scale = 0.05

    def lin(k, fan_in, fan_out):
        kw, kb = jax.random.split(k)
        w = (jax.random.normal(kw, (fan_in, fan_out), jnp.float32) * scale).astype(weight_dtype)
        b = jax.random.normal(kb, (1, fan_out), jnp.float32) * scale
        return w, b

    w1, b1 = lin(ks[0], input_dim, hidden_dim)
    w2, b2 = lin(ks[1], hidden_dim, hidden_dim)
    w3, b3 = lin(ks[2], hidden_dim, hidden_dim)
    wmu, bmu = lin(ks[3], hidden_dim, latent_dim)
    wlv, blv = lin(ks[4], hidden_dim, latent_dim)

    ones_h = jnp.ones((1, hidden_dim), jnp.float32)
    zeros_h = jnp.zeros((1, hidden_dim), jnp.float32)
    return dict(
        w1=w1, b1=b1, g1=ones_h, be1=zeros_h,
        w2=w2, b2=b2, g2=ones_h, be2=zeros_h,
        w3=w3, b3=b3, g3=ones_h, be3=zeros_h,
        wmu=wmu, bmu=bmu, wlv=wlv, blv=blv,
    )


def composite_prior_reference(x, z, params, mixture_weights):
    """Plain-JAX reference mirroring the PyTorch module (same bf16 matmul casts)."""
    f32 = jnp.float32
    x = x.astype(f32)
    sumsq = jnp.sum(x * x, axis=-1, keepdims=True)
    x = x * jax.lax.rsqrt(jnp.maximum(sumsq, 1e-24))   # F.normalize

    def mm(v, w, b):
        return jnp.dot(v.astype(w.dtype), w, preferred_element_type=f32) + b

    def swish(v):
        return v * jax.nn.sigmoid(v)

    def ln(v, g, b):
        m = jnp.mean(v, axis=-1, keepdims=True)
        var = jnp.mean((v - m) ** 2, axis=-1, keepdims=True)
        return (v - m) / jnp.sqrt(var + LN_EPS) * g + b

    p = params
    h1 = ln(swish(mm(x, p["w1"], p["b1"])), p["g1"], p["be1"])
    h2 = ln(swish(mm(h1, p["w2"], p["b2"]) + h1), p["g2"], p["be2"])
    h3 = ln(swish(mm(h2, p["w3"], p["b3"]) + h1 + h2), p["g3"], p["be3"])
    mu = mm(h3, p["wmu"], p["bmu"])
    logvar = mm(h3, p["wlv"], p["blv"])

    def lnp(zz, m_, lv):
        return -0.5 * (lv + LOG_2PI + (zz - m_) ** 2 / jnp.exp(lv))

    zeros = jnp.zeros_like(z)
    gs = [
        lnp(z, zeros, zeros) + np.log(mixture_weights[0]),
        lnp(z, mu, logvar) + np.log(mixture_weights[1]),
        lnp(z, zeros, jnp.full_like(z, UNIF_LOGVAR)) + np.log(mixture_weights[2]),
    ]
    return jax.scipy.special.logsumexp(jnp.stack(gs, axis=-1), axis=-1)


if __name__ == "__main__":
    B, INPUT_DIM, HIDDEN_DIM, LATENT_DIM = 64, 384, 256, 128
    mixture_weights = (3.0 / 20.0, 3.0 / 4.0, 1.0 / 10.0)   # RecVAE defaults

    key = jax.random.PRNGKey(0)
    kx, kz, kp = jax.random.split(key, 3)
    # x behaves like an interaction/count vector; supply it in bf16 (the MXU
    # consumes bf16 anyway) so the kernel's per-row HBM stream is halved.
    x = jnp.abs(jax.random.normal(kx, (B, INPUT_DIM), jnp.float32)).astype(jnp.bfloat16)
    z = jax.random.normal(kz, (B, LATENT_DIM), jnp.float32)
    params = init_params(kp, HIDDEN_DIM, LATENT_DIM, INPUT_DIM)

    out = composite_prior_forward(x, z, params, mixture_weights)
    out = jax.block_until_ready(out)

    ref = composite_prior_reference(x, z, params, mixture_weights)
    np.testing.assert_allclose(np.asarray(out), np.asarray(ref), rtol=2e-3, atol=2e-3)

    print("KERNEL_OK")
</pallas_src>

<mosaic_0001>
module attributes {stable_mosaic.version = 11 : i64} {
  func.func @kernel(%arg0: i32, %arg1: memref<32x384xbf16, #tpu.memory_space<vmem>>, %arg2: memref<32x128xf32, #tpu.memory_space<vmem>>, %arg3: memref<384x256xbf16, #tpu.memory_space<vmem>>, %arg4: memref<1x256xf32, #tpu.memory_space<vmem>>, %arg5: memref<1x256xf32, #tpu.memory_space<vmem>>, %arg6: memref<1x256xf32, #tpu.memory_space<vmem>>, %arg7: memref<256x256xbf16, #tpu.memory_space<vmem>>, %arg8: memref<1x256xf32, #tpu.memory_space<vmem>>, %arg9: memref<1x256xf32, #tpu.memory_space<vmem>>, %arg10: memref<1x256xf32, #tpu.memory_space<vmem>>, %arg11: memref<256x256xbf16, #tpu.memory_space<vmem>>, %arg12: memref<1x256xf32, #tpu.memory_space<vmem>>, %arg13: memref<1x256xf32, #tpu.memory_space<vmem>>, %arg14: memref<1x256xf32, #tpu.memory_space<vmem>>, %arg15: memref<256x256xbf16, #tpu.memory_space<vmem>>, %arg16: memref<1x256xf32, #tpu.memory_space<vmem>>, %arg17: memref<32x128xf32, #tpu.memory_space<vmem>>) attributes {dimension_semantics = [#tpu.dimension_semantics<parallel>], iteration_bounds = array<i64: 2>, scalar_prefetch = 0 : i64, scratch_operands = 0 : i64, tpu.core_type = #tpu.core_type<tc>, window_params = [{transform_indices = @transform_0, window_bounds = array<i64: 32, 384>}, {transform_indices = @transform_1, window_bounds = array<i64: 32, 128>}, {pipeline_mode = #tpu.pipeline_mode<synchronous>, transform_indices = @transform_2, window_bounds = array<i64: 384, 256>}, {pipeline_mode = #tpu.pipeline_mode<synchronous>, transform_indices = @transform_3, window_bounds = array<i64: 1, 256>}, {pipeline_mode = #tpu.pipeline_mode<synchronous>, transform_indices = @transform_4, window_bounds = array<i64: 1, 256>}, {pipeline_mode = #tpu.pipeline_mode<synchronous>, transform_indices = @transform_5, window_bounds = array<i64: 1, 256>}, {pipeline_mode = #tpu.pipeline_mode<synchronous>, transform_indices = @transform_6, window_bounds = array<i64: 256, 256>}, {pipeline_mode = #tpu.pipeline_mode<synchronous>, transform_indices = @transform_7, window_bounds = array<i64: 1, 256>}, {pipeline_mode = #tpu.pipeline_mode<synchronous>, transform_indices = @transform_8, window_bounds = array<i64: 1, 256>}, {pipeline_mode = #tpu.pipeline_mode<synchronous>, transform_indices = @transform_9, window_bounds = array<i64: 1, 256>}, {pipeline_mode = #tpu.pipeline_mode<synchronous>, transform_indices = @transform_10, window_bounds = array<i64: 256, 256>}, {pipeline_mode = #tpu.pipeline_mode<synchronous>, transform_indices = @transform_11, window_bounds = array<i64: 1, 256>}, {pipeline_mode = #tpu.pipeline_mode<synchronous>, transform_indices = @transform_12, window_bounds = array<i64: 1, 256>}, {pipeline_mode = #tpu.pipeline_mode<synchronous>, transform_indices = @transform_13, window_bounds = array<i64: 1, 256>}, {pipeline_mode = #tpu.pipeline_mode<synchronous>, transform_indices = @transform_14, window_bounds = array<i64: 256, 256>}, {pipeline_mode = #tpu.pipeline_mode<synchronous>, transform_indices = @transform_15, window_bounds = array<i64: 1, 256>}, {transform_indices = @transform_16, window_bounds = array<i64: 32, 128>}]} {
    %c0 = arith.constant 0 : index
    %c0_0 = arith.constant 0 : index
    %0 = vector.load %arg1[%c0, %c0_0] : memref<32x384xbf16, #tpu.memory_space<vmem>>, vector<32x384xbf16>
    %1 = arith.extf %0 : vector<32x384xbf16> to vector<32x384xf32>
    %c0_1 = arith.constant 0 : index
    %c0_2 = arith.constant 0 : index
    %2 = vector.load %arg2[%c0_1, %c0_2] : memref<32x128xf32, #tpu.memory_space<vmem>>, vector<32x128xf32>
    %3 = arith.mulf %1, %1 : vector<32x384xf32>
    %cst = arith.constant dense<0.000000e+00> : vector<32xf32>
    %4 = vector.multi_reduction <add>, %3, %cst [1] : vector<32x384xf32> to vector<32xf32>
    %5 = vector.shape_cast %4 : vector<32xf32> to vector<32x1xf32>
    %cst_3 = arith.constant 1.000000e-24 : f32
    %6 = vector.broadcast %cst_3 : f32 to vector<32x1xf32>
    %7 = arith.maximumf %5, %6 : vector<32x1xf32>
    %8 = math.rsqrt %7 : vector<32x1xf32>
    %9 = vector.broadcast %8 : vector<32x1xf32> to vector<32x384xf32>
    %10 = arith.mulf %1, %9 : vector<32x384xf32>
    %11 = arith.truncf %10 : vector<32x384xf32> to vector<32x384xbf16>
    %c0_4 = arith.constant 0 : index
    %c0_5 = arith.constant 0 : index
    %12 = vector.load %arg3[%c0_4, %c0_5] : memref<384x256xbf16, #tpu.memory_space<vmem>>, vector<384x256xbf16>
    %cst_6 = arith.constant dense<0.000000e+00> : vector<32x256xf32>
    %13 = tpu.matmul %11, %12, %cst_6 {dimension_numbers = #tpu.dot_dimension_numbers<[1], [0], [0], [1], [0, 0, 1, 1], [], []>} : vector<32x384xbf16>, vector<384x256xbf16>, vector<32x256xf32> -> vector<32x256xf32>
    %c0_7 = arith.constant 0 : index
    %c0_8 = arith.constant 0 : index
    %14 = vector.load %arg4[%c0_7, %c0_8] : memref<1x256xf32, #tpu.memory_space<vmem>>, vector<1x256xf32>
    %15 = vector.broadcast %14 : vector<1x256xf32> to vector<32x256xf32>
    %16 = arith.addf %13, %15 : vector<32x256xf32>
    %17 = arith.negf %16 : vector<32x256xf32>
    %18 = math.exp %17 : vector<32x256xf32>
    %cst_9 = arith.constant 1.000000e+00 : f32
    %19 = vector.broadcast %cst_9 : f32 to vector<32x256xf32>
    %20 = arith.addf %19, %18 : vector<32x256xf32>
    %21 = arith.divf %19, %20 : vector<32x256xf32>
    %22 = arith.mulf %16, %21 : vector<32x256xf32>
    %cst_10 = arith.constant dense<0.000000e+00> : vector<32xf32>
    %23 = vector.multi_reduction <add>, %22, %cst_10 [1] : vector<32x256xf32> to vector<32xf32>
    %24 = vector.shape_cast %23 : vector<32xf32> to vector<32x1xf32>
    %cst_11 = arith.constant 3.906250e-03 : f32
    %25 = vector.broadcast %cst_11 : f32 to vector<32x1xf32>
    %26 = arith.mulf %24, %25 : vector<32x1xf32>
    %27 = vector.broadcast %26 : vector<32x1xf32> to vector<32x256xf32>
    %28 = arith.subf %22, %27 : vector<32x256xf32>
    %29 = arith.mulf %28, %28 : vector<32x256xf32>
    %cst_12 = arith.constant dense<0.000000e+00> : vector<32xf32>
    %30 = vector.multi_reduction <add>, %29, %cst_12 [1] : vector<32x256xf32> to vector<32xf32>
    %31 = vector.shape_cast %30 : vector<32xf32> to vector<32x1xf32>
    %cst_13 = arith.constant 3.906250e-03 : f32
    %32 = vector.broadcast %cst_13 : f32 to vector<32x1xf32>
    %33 = arith.mulf %31, %32 : vector<32x1xf32>
    %cst_14 = arith.constant 1.000000e-01 : f32
    %34 = vector.broadcast %cst_14 : f32 to vector<32x1xf32>
    %35 = arith.addf %33, %34 : vector<32x1xf32>
    %36 = math.rsqrt %35 : vector<32x1xf32>
    %37 = vector.broadcast %36 : vector<32x1xf32> to vector<32x256xf32>
    %38 = arith.mulf %28, %37 : vector<32x256xf32>
    %c0_15 = arith.constant 0 : index
    %c0_16 = arith.constant 0 : index
    %39 = vector.load %arg5[%c0_15, %c0_16] : memref<1x256xf32, #tpu.memory_space<vmem>>, vector<1x256xf32>
    %40 = vector.broadcast %39 : vector<1x256xf32> to vector<32x256xf32>
    %41 = arith.mulf %38, %40 : vector<32x256xf32>
    %c0_17 = arith.constant 0 : index
    %c0_18 = arith.constant 0 : index
    %42 = vector.load %arg6[%c0_17, %c0_18] : memref<1x256xf32, #tpu.memory_space<vmem>>, vector<1x256xf32>
    %43 = vector.broadcast %42 : vector<1x256xf32> to vector<32x256xf32>
    %44 = arith.addf %41, %43 : vector<32x256xf32>
    %45 = arith.truncf %44 : vector<32x256xf32> to vector<32x256xbf16>
    %c0_19 = arith.constant 0 : index
    %c0_20 = arith.constant 0 : index
    %46 = vector.load %arg7[%c0_19, %c0_20] : memref<256x256xbf16, #tpu.memory_space<vmem>>, vector<256x256xbf16>
    %cst_21 = arith.constant dense<0.000000e+00> : vector<32x256xf32>
    %47 = tpu.matmul %45, %46, %cst_21 {dimension_numbers = #tpu.dot_dimension_numbers<[1], [0], [0], [1], [0, 0, 1, 1], [], []>} : vector<32x256xbf16>, vector<256x256xbf16>, vector<32x256xf32> -> vector<32x256xf32>
    %c0_22 = arith.constant 0 : index
    %c0_23 = arith.constant 0 : index
    %48 = vector.load %arg8[%c0_22, %c0_23] : memref<1x256xf32, #tpu.memory_space<vmem>>, vector<1x256xf32>
    %49 = vector.broadcast %48 : vector<1x256xf32> to vector<32x256xf32>
    %50 = arith.addf %47, %49 : vector<32x256xf32>
    %51 = arith.addf %50, %44 : vector<32x256xf32>
    %52 = arith.negf %51 : vector<32x256xf32>
    %53 = math.exp %52 : vector<32x256xf32>
    %cst_24 = arith.constant 1.000000e+00 : f32
    %54 = vector.broadcast %cst_24 : f32 to vector<32x256xf32>
    %55 = arith.addf %54, %53 : vector<32x256xf32>
    %56 = arith.divf %54, %55 : vector<32x256xf32>
    %57 = arith.mulf %51, %56 : vector<32x256xf32>
    %cst_25 = arith.constant dense<0.000000e+00> : vector<32xf32>
    %58 = vector.multi_reduction <add>, %57, %cst_25 [1] : vector<32x256xf32> to vector<32xf32>
    %59 = vector.shape_cast %58 : vector<32xf32> to vector<32x1xf32>
    %cst_26 = arith.constant 3.906250e-03 : f32
    %60 = vector.broadcast %cst_26 : f32 to vector<32x1xf32>
    %61 = arith.mulf %59, %60 : vector<32x1xf32>
    %62 = vector.broadcast %61 : vector<32x1xf32> to vector<32x256xf32>
    %63 = arith.subf %57, %62 : vector<32x256xf32>
    %64 = arith.mulf %63, %63 : vector<32x256xf32>
    %cst_27 = arith.constant dense<0.000000e+00> : vector<32xf32>
    %65 = vector.multi_reduction <add>, %64, %cst_27 [1] : vector<32x256xf32> to vector<32xf32>
    %66 = vector.shape_cast %65 : vector<32xf32> to vector<32x1xf32>
    %cst_28 = arith.constant 3.906250e-03 : f32
    %67 = vector.broadcast %cst_28 : f32 to vector<32x1xf32>
    %68 = arith.mulf %66, %67 : vector<32x1xf32>
    %cst_29 = arith.constant 1.000000e-01 : f32
    %69 = vector.broadcast %cst_29 : f32 to vector<32x1xf32>
    %70 = arith.addf %68, %69 : vector<32x1xf32>
    %71 = math.rsqrt %70 : vector<32x1xf32>
    %72 = vector.broadcast %71 : vector<32x1xf32> to vector<32x256xf32>
    %73 = arith.mulf %63, %72 : vector<32x256xf32>
    %c0_30 = arith.constant 0 : index
    %c0_31 = arith.constant 0 : index
    %74 = vector.load %arg9[%c0_30, %c0_31] : memref<1x256xf32, #tpu.memory_space<vmem>>, vector<1x256xf32>
    %75 = vector.broadcast %74 : vector<1x256xf32> to vector<32x256xf32>
    %76 = arith.mulf %73, %75 : vector<32x256xf32>
    %c0_32 = arith.constant 0 : index
    %c0_33 = arith.constant 0 : index
    %77 = vector.load %arg10[%c0_32, %c0_33] : memref<1x256xf32, #tpu.memory_space<vmem>>, vector<1x256xf32>
    %78 = vector.broadcast %77 : vector<1x256xf32> to vector<32x256xf32>
    %79 = arith.addf %76, %78 : vector<32x256xf32>
    %80 = arith.truncf %79 : vector<32x256xf32> to vector<32x256xbf16>
    %c0_34 = arith.constant 0 : index
    %c0_35 = arith.constant 0 : index
    %81 = vector.load %arg11[%c0_34, %c0_35] : memref<256x256xbf16, #tpu.memory_space<vmem>>, vector<256x256xbf16>
    %cst_36 = arith.constant dense<0.000000e+00> : vector<32x256xf32>
    %82 = tpu.matmul %80, %81, %cst_36 {dimension_numbers = #tpu.dot_dimension_numbers<[1], [0], [0], [1], [0, 0, 1, 1], [], []>} : vector<32x256xbf16>, vector<256x256xbf16>, vector<32x256xf32> -> vector<32x256xf32>
    %c0_37 = arith.constant 0 : index
    %c0_38 = arith.constant 0 : index
    %83 = vector.load %arg12[%c0_37, %c0_38] : memref<1x256xf32, #tpu.memory_space<vmem>>, vector<1x256xf32>
    %84 = vector.broadcast %83 : vector<1x256xf32> to vector<32x256xf32>
    %85 = arith.addf %82, %84 : vector<32x256xf32>
    %86 = arith.addf %85, %44 : vector<32x256xf32>
    %87 = arith.addf %86, %79 : vector<32x256xf32>
    %88 = arith.negf %87 : vector<32x256xf32>
    %89 = math.exp %88 : vector<32x256xf32>
    %cst_39 = arith.constant 1.000000e+00 : f32
    %90 = vector.broadcast %cst_39 : f32 to vector<32x256xf32>
    %91 = arith.addf %90, %89 : vector<32x256xf32>
    %92 = arith.divf %90, %91 : vector<32x256xf32>
    %93 = arith.mulf %87, %92 : vector<32x256xf32>
    %cst_40 = arith.constant dense<0.000000e+00> : vector<32xf32>
    %94 = vector.multi_reduction <add>, %93, %cst_40 [1] : vector<32x256xf32> to vector<32xf32>
    %95 = vector.shape_cast %94 : vector<32xf32> to vector<32x1xf32>
    %cst_41 = arith.constant 3.906250e-03 : f32
    %96 = vector.broadcast %cst_41 : f32 to vector<32x1xf32>
    %97 = arith.mulf %95, %96 : vector<32x1xf32>
    %98 = vector.broadcast %97 : vector<32x1xf32> to vector<32x256xf32>
    %99 = arith.subf %93, %98 : vector<32x256xf32>
    %100 = arith.mulf %99, %99 : vector<32x256xf32>
    %cst_42 = arith.constant dense<0.000000e+00> : vector<32xf32>
    %101 = vector.multi_reduction <add>, %100, %cst_42 [1] : vector<32x256xf32> to vector<32xf32>
    %102 = vector.shape_cast %101 : vector<32xf32> to vector<32x1xf32>
    %cst_43 = arith.constant 3.906250e-03 : f32
    %103 = vector.broadcast %cst_43 : f32 to vector<32x1xf32>
    %104 = arith.mulf %102, %103 : vector<32x1xf32>
    %cst_44 = arith.constant 1.000000e-01 : f32
    %105 = vector.broadcast %cst_44 : f32 to vector<32x1xf32>
    %106 = arith.addf %104, %105 : vector<32x1xf32>
    %107 = math.rsqrt %106 : vector<32x1xf32>
    %108 = vector.broadcast %107 : vector<32x1xf32> to vector<32x256xf32>
    %109 = arith.mulf %99, %108 : vector<32x256xf32>
    %c0_45 = arith.constant 0 : index
    %c0_46 = arith.constant 0 : index
    %110 = vector.load %arg13[%c0_45, %c0_46] : memref<1x256xf32, #tpu.memory_space<vmem>>, vector<1x256xf32>
    %111 = vector.broadcast %110 : vector<1x256xf32> to vector<32x256xf32>
    %112 = arith.mulf %109, %111 : vector<32x256xf32>
    %c0_47 = arith.constant 0 : index
    %c0_48 = arith.constant 0 : index
    %113 = vector.load %arg14[%c0_47, %c0_48] : memref<1x256xf32, #tpu.memory_space<vmem>>, vector<1x256xf32>
    %114 = vector.broadcast %113 : vector<1x256xf32> to vector<32x256xf32>
    %115 = arith.addf %112, %114 : vector<32x256xf32>
    %116 = arith.truncf %115 : vector<32x256xf32> to vector<32x256xbf16>
    %c0_49 = arith.constant 0 : index
    %c0_50 = arith.constant 0 : index
    %117 = vector.load %arg15[%c0_49, %c0_50] : memref<256x256xbf16, #tpu.memory_space<vmem>>, vector<256x256xbf16>
    %cst_51 = arith.constant dense<0.000000e+00> : vector<32x256xf32>
    %118 = tpu.matmul %116, %117, %cst_51 {dimension_numbers = #tpu.dot_dimension_numbers<[1], [0], [0], [1], [0, 0, 1, 1], [], []>} : vector<32x256xbf16>, vector<256x256xbf16>, vector<32x256xf32> -> vector<32x256xf32>
    %c0_52 = arith.constant 0 : index
    %c0_53 = arith.constant 0 : index
    %119 = vector.load %arg16[%c0_52, %c0_53] : memref<1x256xf32, #tpu.memory_space<vmem>>, vector<1x256xf32>
    %120 = vector.broadcast %119 : vector<1x256xf32> to vector<32x256xf32>
    %121 = arith.addf %118, %120 : vector<32x256xf32>
    %122 = vector.extract_strided_slice %121 {offsets = [0, 0], sizes = [32, 128], strides = [1, 1]} : vector<32x256xf32> to vector<32x128xf32>
    %123 = vector.extract_strided_slice %121 {offsets = [0, 128], sizes = [32, 128], strides = [1, 1]} : vector<32x256xf32> to vector<32x128xf32>
    %124 = arith.mulf %2, %2 : vector<32x128xf32>
    %cst_54 = arith.constant 1.83787704 : f32
    %125 = vector.broadcast %cst_54 : f32 to vector<32x128xf32>
    %126 = arith.addf %125, %124 : vector<32x128xf32>
    %cst_55 = arith.constant -5.000000e-01 : f32
    %127 = vector.broadcast %cst_55 : f32 to vector<32x128xf32>
    %128 = arith.mulf %127, %126 : vector<32x128xf32>
    %cst_56 = arith.constant -1.897120e+00 : f32
    %129 = vector.broadcast %cst_56 : f32 to vector<32x128xf32>
    %130 = arith.addf %128, %129 : vector<32x128xf32>
    %131 = arith.subf %2, %122 : vector<32x128xf32>
    %cst_57 = arith.constant 1.83787704 : f32
    %132 = vector.broadcast %cst_57 : f32 to vector<32x128xf32>
    %133 = arith.addf %123, %132 : vector<32x128xf32>
    %134 = arith.mulf %131, %131 : vector<32x128xf32>
    %cst_58 = arith.constant 0.000000e+00 : f32
    %135 = vector.broadcast %cst_58 : f32 to vector<32x128xf32>
    %136 = arith.subf %135, %123 : vector<32x128xf32>
    %137 = math.exp %136 : vector<32x128xf32>
    %138 = arith.mulf %134, %137 : vector<32x128xf32>
    %139 = arith.addf %133, %138 : vector<32x128xf32>
    %cst_59 = arith.constant -5.000000e-01 : f32
    %140 = vector.broadcast %cst_59 : f32 to vector<32x128xf32>
    %141 = arith.mulf %140, %139 : vector<32x128xf32>
    %cst_60 = arith.constant -0.287682086 : f32
    %142 = vector.broadcast %cst_60 : f32 to vector<32x128xf32>
    %143 = arith.addf %141, %142 : vector<32x128xf32>
    %cst_61 = arith.constant 4.5399931E-5 : f32
    %144 = vector.broadcast %cst_61 : f32 to vector<32x128xf32>
    %145 = arith.mulf %124, %144 : vector<32x128xf32>
    %cst_62 = arith.constant 11.8378773 : f32
    %146 = vector.broadcast %cst_62 : f32 to vector<32x128xf32>
    %147 = arith.addf %146, %145 : vector<32x128xf32>
    %cst_63 = arith.constant -5.000000e-01 : f32
    %148 = vector.broadcast %cst_63 : f32 to vector<32x128xf32>
    %149 = arith.mulf %148, %147 : vector<32x128xf32>
    %cst_64 = arith.constant -2.30258512 : f32
    %150 = vector.broadcast %cst_64 : f32 to vector<32x128xf32>
    %151 = arith.addf %149, %150 : vector<32x128xf32>
    %152 = arith.maximumf %130, %143 : vector<32x128xf32>
    %153 = arith.maximumf %152, %151 : vector<32x128xf32>
    %154 = arith.subf %130, %153 : vector<32x128xf32>
    %155 = math.exp %154 : vector<32x128xf32>
    %156 = arith.subf %143, %153 : vector<32x128xf32>
    %157 = math.exp %156 : vector<32x128xf32>
    %158 = arith.addf %155, %157 : vector<32x128xf32>
    %159 = arith.subf %151, %153 : vector<32x128xf32>
    %160 = math.exp %159 : vector<32x128xf32>
    %161 = arith.addf %158, %160 : vector<32x128xf32>
    %162 = math.log %161 : vector<32x128xf32>
    %163 = arith.addf %153, %162 : vector<32x128xf32>
    %c0_65 = arith.constant 0 : index
    %c0_66 = arith.constant 0 : index
    %164 = vector.load %arg17[%c0_65, %c0_66] : memref<32x128xf32, #tpu.memory_space<vmem>>, vector<32x128xf32>
    tpu.vector_store %arg17[%c0_65, %c0_66], %163 {strides = array<i32>} : memref<32x128xf32, #tpu.memory_space<vmem>>, vector<32x128xf32>,
    return
  }
  func.func @transform_0(%arg0: i32) -> (i32, i32) {
    %c0_i32 = arith.constant 0 : i32
    %c0_i32_0 = arith.constant 0 : i32
    return %arg0, %c0_i32 : i32, i32
  }
  func.func @transform_1(%arg0: i32) -> (i32, i32) {
    %c0_i32 = arith.constant 0 : i32
    %c0_i32_0 = arith.constant 0 : i32
    return %arg0, %c0_i32 : i32, i32
  }
  func.func @transform_2(%arg0: i32) -> (i32, i32) {
    %c0_i32 = arith.constant 0 : i32
    %c0_i32_0 = arith.constant 0 : i32
    %c0_i32_1 = arith.constant 0 : i32
    return %c0_i32, %c0_i32_0 : i32, i32
  }
  func.func @transform_3(%arg0: i32) -> (i32, i32) {
    %c0_i32 = arith.constant 0 : i32
    %c0_i32_0 = arith.constant 0 : i32
    %c0_i32_1 = arith.constant 0 : i32
    return %c0_i32, %c0_i32_0 : i32, i32
  }
  func.func @transform_4(%arg0: i32) -> (i32, i32) {
    %c0_i32 = arith.constant 0 : i32
    %c0_i32_0 = arith.constant 0 : i32
    %c0_i32_1 = arith.constant 0 : i32
    return %c0_i32, %c0_i32_0 : i32, i32
  }
  func.func @transform_5(%arg0: i32) -> (i32, i32) {
    %c0_i32 = arith.constant 0 : i32
    %c0_i32_0 = arith.constant 0 : i32
    %c0_i32_1 = arith.constant 0 : i32
    return %c0_i32, %c0_i32_0 : i32, i32
  }
  func.func @transform_6(%arg0: i32) -> (i32, i32) {
    %c0_i32 = arith.constant 0 : i32
    %c0_i32_0 = arith.constant 0 : i32
    %c0_i32_1 = arith.constant 0 : i32
    return %c0_i32, %c0_i32_0 : i32, i32
  }
  func.func @transform_7(%arg0: i32) -> (i32, i32) {
    %c0_i32 = arith.constant 0 : i32
    %c0_i32_0 = arith.constant 0 : i32
    %c0_i32_1 = arith.constant 0 : i32
    return %c0_i32, %c0_i32_0 : i32, i32
  }
  func.func @transform_8(%arg0: i32) -> (i32, i32) {
    %c0_i32 = arith.constant 0 : i32
    %c0_i32_0 = arith.constant 0 : i32
    %c0_i32_1 = arith.constant 0 : i32
    return %c0_i32, %c0_i32_0 : i32, i32
  }
  func.func @transform_9(%arg0: i32) -> (i32, i32) {
    %c0_i32 = arith.constant 0 : i32
    %c0_i32_0 = arith.constant 0 : i32
    %c0_i32_1 = arith.constant 0 : i32
    return %c0_i32, %c0_i32_0 : i32, i32
  }
  func.func @transform_10(%arg0: i32) -> (i32, i32) {
    %c0_i32 = arith.constant 0 : i32
    %c0_i32_0 = arith.constant 0 : i32
    %c0_i32_1 = arith.constant 0 : i32
    return %c0_i32, %c0_i32_0 : i32, i32
  }
  func.func @transform_11(%arg0: i32) -> (i32, i32) {
    %c0_i32 = arith.constant 0 : i32
    %c0_i32_0 = arith.constant 0 : i32
    %c0_i32_1 = arith.constant 0 : i32
    return %c0_i32, %c0_i32_0 : i32, i32
  }
  func.func @transform_12(%arg0: i32) -> (i32, i32) {
    %c0_i32 = arith.constant 0 : i32
    %c0_i32_0 = arith.constant 0 : i32
    %c0_i32_1 = arith.constant 0 : i32
    return %c0_i32, %c0_i32_0 : i32, i32
  }
  func.func @transform_13(%arg0: i32) -> (i32, i32) {
    %c0_i32 = arith.constant 0 : i32
    %c0_i32_0 = arith.constant 0 : i32
    %c0_i32_1 = arith.constant 0 : i32
    return %c0_i32, %c0_i32_0 : i32, i32
  }
  func.func @transform_14(%arg0: i32) -> (i32, i32) {
    %c0_i32 = arith.constant 0 : i32
    %c0_i32_0 = arith.constant 0 : i32
    %c0_i32_1 = arith.constant 0 : i32
    return %c0_i32, %c0_i32_0 : i32, i32
  }
  func.func @transform_15(%arg0: i32) -> (i32, i32) {
    %c0_i32 = arith.constant 0 : i32
    %c0_i32_0 = arith.constant 0 : i32
    %c0_i32_1 = arith.constant 0 : i32
    return %c0_i32, %c0_i32_0 : i32, i32
  }
  func.func @transform_16(%arg0: i32) -> (i32, i32) {
    %c0_i32 = arith.constant 0 : i32
    %c0_i32_0 = arith.constant 0 : i32
    return %arg0, %c0_i32 : i32, i32
  }
}

module attributes {stable_mosaic.version = 11 : i64} {
  func.func @kernel(%arg0: i32, %arg1: memref<32x384xbf16, #tpu.memory_space<vmem>>, %arg2: memref<32x128xf32, #tpu.memory_space<vmem>>, %arg3: memref<384x256xbf16, #tpu.memory_space<vmem>>, %arg4: memref<1x256xf32, #tpu.memory_space<vmem>>, %arg5: memref<1x256xf32, #tpu.memory_space<vmem>>, %arg6: memref<1x256xf32, #tpu.memory_space<vmem>>, %arg7: memref<256x256xbf16, #tpu.memory_space<vmem>>, %arg8: memref<1x256xf32, #tpu.memory_space<vmem>>, %arg9: memref<1x256xf32, #tpu.memory_space<vmem>>, %arg10: memref<1x256xf32, #tpu.memory_space<vmem>>, %arg11: memref<256x256xbf16, #tpu.memory_space<vmem>>, %arg12: memref<1x256xf32, #tpu.memory_space<vmem>>, %arg13: memref<1x256xf32, #tpu.memory_space<vmem>>, %arg14: memref<1x256xf32, #tpu.memory_space<vmem>>, %arg15: memref<256x256xbf16, #tpu.memory_space<vmem>>, %arg16: memref<1x256xf32, #tpu.memory_space<vmem>>, %arg17: memref<32x128xf32, #tpu.memory_space<vmem>>) attributes {dimension_semantics = [#tpu.dimension_semantics<parallel>], iteration_bounds = array<i64: 2>, scalar_prefetch = 0 : i64, scratch_operands = 0 : i64, tpu.core_type = #tpu.core_type<tc>, window_params = [{transform_indices = @transform_0, window_bounds = array<i64: 32, 384>}, {transform_indices = @transform_1, window_bounds = array<i64: 32, 128>}, {pipeline_mode = #tpu.pipeline_mode<synchronous>, transform_indices = @transform_2, window_bounds = array<i64: 384, 256>}, {pipeline_mode = #tpu.pipeline_mode<synchronous>, transform_indices = @transform_3, window_bounds = array<i64: 1, 256>}, {pipeline_mode = #tpu.pipeline_mode<synchronous>, transform_indices = @transform_4, window_bounds = array<i64: 1, 256>}, {pipeline_mode = #tpu.pipeline_mode<synchronous>, transform_indices = @transform_5, window_bounds = array<i64: 1, 256>}, {pipeline_mode = #tpu.pipeline_mode<synchronous>, transform_indices = @transform_6, window_bounds = array<i64: 256, 256>}, {pipeline_mode = #tpu.pipeline_mode<synchronous>, transform_indices = @transform_7, window_bounds = array<i64: 1, 256>}, {pipeline_mode = #tpu.pipeline_mode<synchronous>, transform_indices = @transform_8, window_bounds = array<i64: 1, 256>}, {pipeline_mode = #tpu.pipeline_mode<synchronous>, transform_indices = @transform_9, window_bounds = array<i64: 1, 256>}, {pipeline_mode = #tpu.pipeline_mode<synchronous>, transform_indices = @transform_10, window_bounds = array<i64: 256, 256>}, {pipeline_mode = #tpu.pipeline_mode<synchronous>, transform_indices = @transform_11, window_bounds = array<i64: 1, 256>}, {pipeline_mode = #tpu.pipeline_mode<synchronous>, transform_indices = @transform_12, window_bounds = array<i64: 1, 256>}, {pipeline_mode = #tpu.pipeline_mode<synchronous>, transform_indices = @transform_13, window_bounds = array<i64: 1, 256>}, {pipeline_mode = #tpu.pipeline_mode<synchronous>, transform_indices = @transform_14, window_bounds = array<i64: 256, 256>}, {pipeline_mode = #tpu.pipeline_mode<synchronous>, transform_indices = @transform_15, window_bounds = array<i64: 1, 256>}, {transform_indices = @transform_16, window_bounds = array<i64: 32, 128>}]} {
    %c0 = arith.constant 0 : index
    %c0_0 = arith.constant 0 : index
    %0 = vector.load %arg1[%c0, %c0_0] : memref<32x384xbf16, #tpu.memory_space<vmem>>, vector<32x384xbf16>
    %1 = arith.extf %0 : vector<32x384xbf16> to vector<32x384xf32>
    %c0_1 = arith.constant 0 : index
    %c0_2 = arith.constant 0 : index
    %2 = vector.load %arg2[%c0_1, %c0_2] : memref<32x128xf32, #tpu.memory_space<vmem>>, vector<32x128xf32>
    %3 = arith.mulf %1, %1 : vector<32x384xf32>
    %cst = arith.constant dense<0.000000e+00> : vector<32xf32>
    %4 = vector.multi_reduction <add>, %3, %cst [1] : vector<32x384xf32> to vector<32xf32>
    %5 = vector.shape_cast %4 : vector<32xf32> to vector<32x1xf32>
    %cst_3 = arith.constant 1.000000e-24 : f32
    %6 = vector.broadcast %cst_3 : f32 to vector<32x1xf32>
    %7 = arith.maximumf %5, %6 : vector<32x1xf32>
    %8 = math.rsqrt %7 : vector<32x1xf32>
    %9 = vector.broadcast %8 : vector<32x1xf32> to vector<32x384xf32>
    %10 = arith.mulf %1, %9 : vector<32x384xf32>
    %11 = arith.truncf %10 : vector<32x384xf32> to vector<32x384xbf16>
    %c0_4 = arith.constant 0 : index
    %c0_5 = arith.constant 0 : index
    %12 = vector.load %arg3[%c0_4, %c0_5] : memref<384x256xbf16, #tpu.memory_space<vmem>>, vector<384x256xbf16>
    %cst_6 = arith.constant dense<0.000000e+00> : vector<32x256xf32>
    %13 = tpu.matmul %11, %12, %cst_6 {dimension_numbers = #tpu.dot_dimension_numbers<[1], [0], [0], [1], [0, 0, 1, 1], [], []>} : vector<32x384xbf16>, vector<384x256xbf16>, vector<32x256xf32> -> vector<32x256xf32>
    %c0_7 = arith.constant 0 : index
    %c0_8 = arith.constant 0 : index
    %14 = vector.load %arg4[%c0_7, %c0_8] : memref<1x256xf32, #tpu.memory_space<vmem>>, vector<1x256xf32>
    %15 = vector.broadcast %14 : vector<1x256xf32> to vector<32x256xf32>
    %16 = arith.addf %13, %15 : vector<32x256xf32>
    %17 = arith.negf %16 : vector<32x256xf32>
    %18 = math.exp %17 : vector<32x256xf32>
    %cst_9 = arith.constant 1.000000e+00 : f32
    %19 = vector.broadcast %cst_9 : f32 to vector<32x256xf32>
    %20 = arith.addf %19, %18 : vector<32x256xf32>
    %21 = arith.divf %19, %20 : vector<32x256xf32>
    %22 = arith.mulf %16, %21 : vector<32x256xf32>
    %cst_10 = arith.constant dense<0.000000e+00> : vector<32xf32>
    %23 = vector.multi_reduction <add>, %22, %cst_10 [1] : vector<32x256xf32> to vector<32xf32>
    %24 = vector.shape_cast %23 : vector<32xf32> to vector<32x1xf32>
    %cst_11 = arith.constant 3.906250e-03 : f32
    %25 = vector.broadcast %cst_11 : f32 to vector<32x1xf32>
    %26 = arith.mulf %24, %25 : vector<32x1xf32>
    %27 = vector.broadcast %26 : vector<32x1xf32> to vector<32x256xf32>
    %28 = arith.subf %22, %27 : vector<32x256xf32>
    %29 = arith.mulf %28, %28 : vector<32x256xf32>
    %cst_12 = arith.constant dense<0.000000e+00> : vector<32xf32>
    %30 = vector.multi_reduction <add>, %29, %cst_12 [1] : vector<32x256xf32> to vector<32xf32>
    %31 = vector.shape_cast %30 : vector<32xf32> to vector<32x1xf32>
    %cst_13 = arith.constant 3.906250e-03 : f32
    %32 = vector.broadcast %cst_13 : f32 to vector<32x1xf32>
    %33 = arith.mulf %31, %32 : vector<32x1xf32>
    %cst_14 = arith.constant 1.000000e-01 : f32
    %34 = vector.broadcast %cst_14 : f32 to vector<32x1xf32>
    %35 = arith.addf %33, %34 : vector<32x1xf32>
    %36 = math.rsqrt %35 : vector<32x1xf32>
    %37 = vector.broadcast %36 : vector<32x1xf32> to vector<32x256xf32>
    %38 = arith.mulf %28, %37 : vector<32x256xf32>
    %c0_15 = arith.constant 0 : index
    %c0_16 = arith.constant 0 : index
    %39 = vector.load %arg5[%c0_15, %c0_16] : memref<1x256xf32, #tpu.memory_space<vmem>>, vector<1x256xf32>
    %40 = vector.broadcast %39 : vector<1x256xf32> to vector<32x256xf32>
    %41 = arith.mulf %38, %40 : vector<32x256xf32>
    %c0_17 = arith.constant 0 : index
    %c0_18 = arith.constant 0 : index
    %42 = vector.load %arg6[%c0_17, %c0_18] : memref<1x256xf32, #tpu.memory_space<vmem>>, vector<1x256xf32>
    %43 = vector.broadcast %42 : vector<1x256xf32> to vector<32x256xf32>
    %44 = arith.addf %41, %43 : vector<32x256xf32>
    %45 = arith.truncf %44 : vector<32x256xf32> to vector<32x256xbf16>
    %c0_19 = arith.constant 0 : index
    %c0_20 = arith.constant 0 : index
    %46 = vector.load %arg7[%c0_19, %c0_20] : memref<256x256xbf16, #tpu.memory_space<vmem>>, vector<256x256xbf16>
    %cst_21 = arith.constant dense<0.000000e+00> : vector<32x256xf32>
    %47 = tpu.matmul %45, %46, %cst_21 {dimension_numbers = #tpu.dot_dimension_numbers<[1], [0], [0], [1], [0, 0, 1, 1], [], []>} : vector<32x256xbf16>, vector<256x256xbf16>, vector<32x256xf32> -> vector<32x256xf32>
    %c0_22 = arith.constant 0 : index
    %c0_23 = arith.constant 0 : index
    %48 = vector.load %arg8[%c0_22, %c0_23] : memref<1x256xf32, #tpu.memory_space<vmem>>, vector<1x256xf32>
    %49 = vector.broadcast %48 : vector<1x256xf32> to vector<32x256xf32>
    %50 = arith.addf %47, %49 : vector<32x256xf32>
    %51 = arith.addf %50, %44 : vector<32x256xf32>
    %52 = arith.negf %51 : vector<32x256xf32>
    %53 = math.exp %52 : vector<32x256xf32>
    %cst_24 = arith.constant 1.000000e+00 : f32
    %54 = vector.broadcast %cst_24 : f32 to vector<32x256xf32>
    %55 = arith.addf %54, %53 : vector<32x256xf32>
    %56 = arith.divf %54, %55 : vector<32x256xf32>
    %57 = arith.mulf %51, %56 : vector<32x256xf32>
    %cst_25 = arith.constant dense<0.000000e+00> : vector<32xf32>
    %58 = vector.multi_reduction <add>, %57, %cst_25 [1] : vector<32x256xf32> to vector<32xf32>
    %59 = vector.shape_cast %58 : vector<32xf32> to vector<32x1xf32>
    %cst_26 = arith.constant 3.906250e-03 : f32
    %60 = vector.broadcast %cst_26 : f32 to vector<32x1xf32>
    %61 = arith.mulf %59, %60 : vector<32x1xf32>
    %62 = vector.broadcast %61 : vector<32x1xf32> to vector<32x256xf32>
    %63 = arith.subf %57, %62 : vector<32x256xf32>
    %64 = arith.mulf %63, %63 : vector<32x256xf32>
    %cst_27 = arith.constant dense<0.000000e+00> : vector<32xf32>
    %65 = vector.multi_reduction <add>, %64, %cst_27 [1] : vector<32x256xf32> to vector<32xf32>
    %66 = vector.shape_cast %65 : vector<32xf32> to vector<32x1xf32>
    %cst_28 = arith.constant 3.906250e-03 : f32
    %67 = vector.broadcast %cst_28 : f32 to vector<32x1xf32>
    %68 = arith.mulf %66, %67 : vector<32x1xf32>
    %cst_29 = arith.constant 1.000000e-01 : f32
    %69 = vector.broadcast %cst_29 : f32 to vector<32x1xf32>
    %70 = arith.addf %68, %69 : vector<32x1xf32>
    %71 = math.rsqrt %70 : vector<32x1xf32>
    %72 = vector.broadcast %71 : vector<32x1xf32> to vector<32x256xf32>
    %73 = arith.mulf %63, %72 : vector<32x256xf32>
    %c0_30 = arith.constant 0 : index
    %c0_31 = arith.constant 0 : index
    %74 = vector.load %arg9[%c0_30, %c0_31] : memref<1x256xf32, #tpu.memory_space<vmem>>, vector<1x256xf32>
    %75 = vector.broadcast %74 : vector<1x256xf32> to vector<32x256xf32>
    %76 = arith.mulf %73, %75 : vector<32x256xf32>
    %c0_32 = arith.constant 0 : index
    %c0_33 = arith.constant 0 : index
    %77 = vector.load %arg10[%c0_32, %c0_33] : memref<1x256xf32, #tpu.memory_space<vmem>>, vector<1x256xf32>
    %78 = vector.broadcast %77 : vector<1x256xf32> to vector<32x256xf32>
    %79 = arith.addf %76, %78 : vector<32x256xf32>
    %80 = arith.truncf %79 : vector<32x256xf32> to vector<32x256xbf16>
    %c0_34 = arith.constant 0 : index
    %c0_35 = arith.constant 0 : index
    %81 = vector.load %arg11[%c0_34, %c0_35] : memref<256x256xbf16, #tpu.memory_space<vmem>>, vector<256x256xbf16>
    %cst_36 = arith.constant dense<0.000000e+00> : vector<32x256xf32>
    %82 = tpu.matmul %80, %81, %cst_36 {dimension_numbers = #tpu.dot_dimension_numbers<[1], [0], [0], [1], [0, 0, 1, 1], [], []>} : vector<32x256xbf16>, vector<256x256xbf16>, vector<32x256xf32> -> vector<32x256xf32>
    %c0_37 = arith.constant 0 : index
    %c0_38 = arith.constant 0 : index
    %83 = vector.load %arg12[%c0_37, %c0_38] : memref<1x256xf32, #tpu.memory_space<vmem>>, vector<1x256xf32>
    %84 = vector.broadcast %83 : vector<1x256xf32> to vector<32x256xf32>
    %85 = arith.addf %82, %84 : vector<32x256xf32>
    %86 = arith.addf %85, %44 : vector<32x256xf32>
    %87 = arith.addf %86, %79 : vector<32x256xf32>
    %88 = arith.negf %87 : vector<32x256xf32>
    %89 = math.exp %88 : vector<32x256xf32>
    %cst_39 = arith.constant 1.000000e+00 : f32
    %90 = vector.broadcast %cst_39 : f32 to vector<32x256xf32>
    %91 = arith.addf %90, %89 : vector<32x256xf32>
    %92 = arith.divf %90, %91 : vector<32x256xf32>
    %93 = arith.mulf %87, %92 : vector<32x256xf32>
    %cst_40 = arith.constant dense<0.000000e+00> : vector<32xf32>
    %94 = vector.multi_reduction <add>, %93, %cst_40 [1] : vector<32x256xf32> to vector<32xf32>
    %95 = vector.shape_cast %94 : vector<32xf32> to vector<32x1xf32>
    %cst_41 = arith.constant 3.906250e-03 : f32
    %96 = vector.broadcast %cst_41 : f32 to vector<32x1xf32>
    %97 = arith.mulf %95, %96 : vector<32x1xf32>
    %98 = vector.broadcast %97 : vector<32x1xf32> to vector<32x256xf32>
    %99 = arith.subf %93, %98 : vector<32x256xf32>
    %100 = arith.mulf %99, %99 : vector<32x256xf32>
    %cst_42 = arith.constant dense<0.000000e+00> : vector<32xf32>
    %101 = vector.multi_reduction <add>, %100, %cst_42 [1] : vector<32x256xf32> to vector<32xf32>
    %102 = vector.shape_cast %101 : vector<32xf32> to vector<32x1xf32>
    %cst_43 = arith.constant 3.906250e-03 : f32
    %103 = vector.broadcast %cst_43 : f32 to vector<32x1xf32>
    %104 = arith.mulf %102, %103 : vector<32x1xf32>
    %cst_44 = arith.constant 1.000000e-01 : f32
    %105 = vector.broadcast %cst_44 : f32 to vector<32x1xf32>
    %106 = arith.addf %104, %105 : vector<32x1xf32>
    %107 = math.rsqrt %106 : vector<32x1xf32>
    %108 = vector.broadcast %107 : vector<32x1xf32> to vector<32x256xf32>
    %109 = arith.mulf %99, %108 : vector<32x256xf32>
    %c0_45 = arith.constant 0 : index
    %c0_46 = arith.constant 0 : index
    %110 = vector.load %arg13[%c0_45, %c0_46] : memref<1x256xf32, #tpu.memory_space<vmem>>, vector<1x256xf32>
    %111 = vector.broadcast %110 : vector<1x256xf32> to vector<32x256xf32>
    %112 = arith.mulf %109, %111 : vector<32x256xf32>
    %c0_47 = arith.constant 0 : index
    %c0_48 = arith.constant 0 : index
    %113 = vector.load %arg14[%c0_47, %c0_48] : memref<1x256xf32, #tpu.memory_space<vmem>>, vector<1x256xf32>
    %114 = vector.broadcast %113 : vector<1x256xf32> to vector<32x256xf32>
    %115 = arith.addf %112, %114 : vector<32x256xf32>
    %116 = arith.truncf %115 : vector<32x256xf32> to vector<32x256xbf16>
    %c0_49 = arith.constant 0 : index
    %c0_50 = arith.constant 0 : index
    %117 = vector.load %arg15[%c0_49, %c0_50] : memref<256x256xbf16, #tpu.memory_space<vmem>>, vector<256x256xbf16>
    %cst_51 = arith.constant dense<0.000000e+00> : vector<32x256xf32>
    %118 = tpu.matmul %116, %117, %cst_51 {dimension_numbers = #tpu.dot_dimension_numbers<[1], [0], [0], [1], [0, 0, 1, 1], [], []>} : vector<32x256xbf16>, vector<256x256xbf16>, vector<32x256xf32> -> vector<32x256xf32>
    %c0_52 = arith.constant 0 : index
    %c0_53 = arith.constant 0 : index
    %119 = vector.load %arg16[%c0_52, %c0_53] : memref<1x256xf32, #tpu.memory_space<vmem>>, vector<1x256xf32>
    %120 = vector.broadcast %119 : vector<1x256xf32> to vector<32x256xf32>
    %121 = arith.addf %118, %120 : vector<32x256xf32>
    %122 = vector.extract_strided_slice %121 {offsets = [0, 0], sizes = [32, 128], strides = [1, 1]} : vector<32x256xf32> to vector<32x128xf32>
    %123 = vector.extract_strided_slice %121 {offsets = [0, 128], sizes = [32, 128], strides = [1, 1]} : vector<32x256xf32> to vector<32x128xf32>
    %124 = arith.mulf %2, %2 : vector<32x128xf32>
    %cst_54 = arith.constant 1.83787704 : f32
    %125 = vector.broadcast %cst_54 : f32 to vector<32x128xf32>
    %126 = arith.addf %125, %124 : vector<32x128xf32>
    %cst_55 = arith.constant -5.000000e-01 : f32
    %127 = vector.broadcast %cst_55 : f32 to vector<32x128xf32>
    %128 = arith.mulf %127, %126 : vector<32x128xf32>
    %cst_56 = arith.constant -1.897120e+00 : f32
    %129 = vector.broadcast %cst_56 : f32 to vector<32x128xf32>
    %130 = arith.addf %128, %129 : vector<32x128xf32>
    %131 = arith.subf %2, %122 : vector<32x128xf32>
    %cst_57 = arith.constant 1.83787704 : f32
    %132 = vector.broadcast %cst_57 : f32 to vector<32x128xf32>
    %133 = arith.addf %123, %132 : vector<32x128xf32>
    %134 = arith.mulf %131, %131 : vector<32x128xf32>
    %cst_58 = arith.constant 0.000000e+00 : f32
    %135 = vector.broadcast %cst_58 : f32 to vector<32x128xf32>
    %136 = arith.subf %135, %123 : vector<32x128xf32>
    %137 = math.exp %136 : vector<32x128xf32>
    %138 = arith.mulf %134, %137 : vector<32x128xf32>
    %139 = arith.addf %133, %138 : vector<32x128xf32>
    %cst_59 = arith.constant -5.000000e-01 : f32
    %140 = vector.broadcast %cst_59 : f32 to vector<32x128xf32>
    %141 = arith.mulf %140, %139 : vector<32x128xf32>
    %cst_60 = arith.constant -0.287682086 : f32
    %142 = vector.broadcast %cst_60 : f32 to vector<32x128xf32>
    %143 = arith.addf %141, %142 : vector<32x128xf32>
    %cst_61 = arith.constant 4.5399931E-5 : f32
    %144 = vector.broadcast %cst_61 : f32 to vector<32x128xf32>
    %145 = arith.mulf %124, %144 : vector<32x128xf32>
    %cst_62 = arith.constant 11.8378773 : f32
    %146 = vector.broadcast %cst_62 : f32 to vector<32x128xf32>
    %147 = arith.addf %146, %145 : vector<32x128xf32>
    %cst_63 = arith.constant -5.000000e-01 : f32
    %148 = vector.broadcast %cst_63 : f32 to vector<32x128xf32>
    %149 = arith.mulf %148, %147 : vector<32x128xf32>
    %cst_64 = arith.constant -2.30258512 : f32
    %150 = vector.broadcast %cst_64 : f32 to vector<32x128xf32>
    %151 = arith.addf %149, %150 : vector<32x128xf32>
    %152 = arith.maximumf %130, %143 : vector<32x128xf32>
    %153 = arith.maximumf %152, %151 : vector<32x128xf32>
    %154 = arith.subf %130, %153 : vector<32x128xf32>
    %155 = math.exp %154 : vector<32x128xf32>
    %156 = arith.subf %143, %153 : vector<32x128xf32>
    %157 = math.exp %156 : vector<32x128xf32>
    %158 = arith.addf %155, %157 : vector<32x128xf32>
    %159 = arith.subf %151, %153 : vector<32x128xf32>
    %160 = math.exp %159 : vector<32x128xf32>
    %161 = arith.addf %158, %160 : vector<32x128xf32>
    %162 = math.log %161 : vector<32x128xf32>
    %163 = arith.addf %153, %162 : vector<32x128xf32>
    %c0_65 = arith.constant 0 : index
    %c0_66 = arith.constant 0 : index
    %164 = vector.load %arg17[%c0_65, %c0_66] : memref<32x128xf32, #tpu.memory_space<vmem>>, vector<32x128xf32>
    tpu.vector_store %arg17[%c0_65, %c0_66], %163 {strides = array<i32>} : memref<32x128xf32, #tpu.memory_space<vmem>>, vector<32x128xf32>,
    return
  }
  func.func @transform_0(%arg0: i32) -> (i32, i32) {
    %c0_i32 = arith.constant 0 : i32
    %c0_i32_0 = arith.constant 0 : i32
    return %arg0, %c0_i32 : i32, i32
  }
  func.func @transform_1(%arg0: i32) -> (i32, i32) {
    %c0_i32 = arith.constant 0 : i32
    %c0_i32_0 = arith.constant 0 : i32
    return %arg0, %c0_i32 : i32, i32
  }
  func.func @transform_2(%arg0: i32) -> (i32, i32) {
    %c0_i32 = arith.constant 0 : i32
    %c0_i32_0 = arith.constant 0 : i32
    %c0_i32_1 = arith.constant 0 : i32
    return %c0_i32, %c0_i32_0 : i32, i32
  }
  func.func @transform_3(%arg0: i32) -> (i32, i32) {
    %c0_i32 = arith.constant 0 : i32
    %c0_i32_0 = arith.constant 0 : i32
    %c0_i32_1 = arith.constant 0 : i32
    return %c0_i32, %c0_i32_0 : i32, i32
  }
  func.func @transform_4(%arg0: i32) -> (i32, i32) {
    %c0_i32 = arith.constant 0 : i32
    %c0_i32_0 = arith.constant 0 : i32
    %c0_i32_1 = arith.constant 0 : i32
    return %c0_i32, %c0_i32_0 : i32, i32
  }
  func.func @transform_5(%arg0: i32) -> (i32, i32) {
    %c0_i32 = arith.constant 0 : i32
    %c0_i32_0 = arith.constant 0 : i32
    %c0_i32_1 = arith.constant 0 : i32
    return %c0_i32, %c0_i32_0 : i32, i32
  }
  func.func @transform_6(%arg0: i32) -> (i32, i32) {
    %c0_i32 = arith.constant 0 : i32
    %c0_i32_0 = arith.constant 0 : i32
    %c0_i32_1 = arith.constant 0 : i32
    return %c0_i32, %c0_i32_0 : i32, i32
  }
  func.func @transform_7(%arg0: i32) -> (i32, i32) {
    %c0_i32 = arith.constant 0 : i32
    %c0_i32_0 = arith.constant 0 : i32
    %c0_i32_1 = arith.constant 0 : i32
    return %c0_i32, %c0_i32_0 : i32, i32
  }
  func.func @transform_8(%arg0: i32) -> (i32, i32) {
    %c0_i32 = arith.constant 0 : i32
    %c0_i32_0 = arith.constant 0 : i32
    %c0_i32_1 = arith.constant 0 : i32
    return %c0_i32, %c0_i32_0 : i32, i32
  }
  func.func @transform_9(%arg0: i32) -> (i32, i32) {
    %c0_i32 = arith.constant 0 : i32
    %c0_i32_0 = arith.constant 0 : i32
    %c0_i32_1 = arith.constant 0 : i32
    return %c0_i32, %c0_i32_0 : i32, i32
  }
  func.func @transform_10(%arg0: i32) -> (i32, i32) {
    %c0_i32 = arith.constant 0 : i32
    %c0_i32_0 = arith.constant 0 : i32
    %c0_i32_1 = arith.constant 0 : i32
    return %c0_i32, %c0_i32_0 : i32, i32
  }
  func.func @transform_11(%arg0: i32) -> (i32, i32) {
    %c0_i32 = arith.constant 0 : i32
    %c0_i32_0 = arith.constant 0 : i32
    %c0_i32_1 = arith.constant 0 : i32
    return %c0_i32, %c0_i32_0 : i32, i32
  }
  func.func @transform_12(%arg0: i32) -> (i32, i32) {
    %c0_i32 = arith.constant 0 : i32
    %c0_i32_0 = arith.constant 0 : i32
    %c0_i32_1 = arith.constant 0 : i32
    return %c0_i32, %c0_i32_0 : i32, i32
  }
  func.func @transform_13(%arg0: i32) -> (i32, i32) {
    %c0_i32 = arith.constant 0 : i32
    %c0_i32_0 = arith.constant 0 : i32
    %c0_i32_1 = arith.constant 0 : i32
    return %c0_i32, %c0_i32_0 : i32, i32
  }
  func.func @transform_14(%arg0: i32) -> (i32, i32) {
    %c0_i32 = arith.constant 0 : i32
    %c0_i32_0 = arith.constant 0 : i32
    %c0_i32_1 = arith.constant 0 : i32
    return %c0_i32, %c0_i32_0 : i32, i32
  }
  func.func @transform_15(%arg0: i32) -> (i32, i32) {
    %c0_i32 = arith.constant 0 : i32
    %c0_i32_0 = arith.constant 0 : i32
    %c0_i32_1 = arith.constant 0 : i32
    return %c0_i32, %c0_i32_0 : i32, i32
  }
  func.func @transform_16(%arg0: i32) -> (i32, i32) {
    %c0_i32 = arith.constant 0 : i32
    %c0_i32_0 = arith.constant 0 : i32
    return %arg0, %c0_i32 : i32, i32
  }
}

</mosaic_0001>

<llo_original>
// kernel: tpu_custom_call.1
$region0: #{tpu_custom_call.1}
  #allocation0 [shape = 'u32[]', space=smem, size = 0x4, offset = 0x4, fixed_abs, tag = 'smem constant byte address 0x4 - core index']
  #allocation1 [shape = 'u32[144,128]{1,0:T(1,128)}', space=vmem, size = 0x12000, scoped, tag = 'internal scratch']
  %s0 = inlined_call_operand.hbm [shape: bf16[64,384], index: 0, kind: input, shape index: {}]
  %s1 = inlined_call_operand.hbm [shape: f32[64,128], index: 1, kind: input, shape index: {}]
  %s2 = inlined_call_operand.hbm [shape: bf16[384,256], index: 2, kind: input, shape index: {}]
  %s3 = inlined_call_operand.vmem [shape: f32[1,256], index: 3, kind: input, shape index: {}]
  %s4 = inlined_call_operand.vmem [shape: f32[1,256], index: 4, kind: input, shape index: {}]
  %s5 = inlined_call_operand.vmem [shape: f32[1,256], index: 5, kind: input, shape index: {}]
  %s6 = inlined_call_operand.hbm [shape: bf16[256,256], index: 6, kind: input, shape index: {}]
  %s7 = inlined_call_operand.vmem [shape: f32[1,256], index: 7, kind: input, shape index: {}]
  %s8 = inlined_call_operand.vmem [shape: f32[1,256], index: 8, kind: input, shape index: {}]
  %s9 = inlined_call_operand.vmem [shape: f32[1,256], index: 9, kind: input, shape index: {}]
  %s10 = inlined_call_operand.hbm [shape: bf16[256,256], index: 10, kind: input, shape index: {}]
  %s11 = inlined_call_operand.vmem [shape: f32[1,256], index: 11, kind: input, shape index: {}]
  %s12 = inlined_call_operand.vmem [shape: f32[1,256], index: 12, kind: input, shape index: {}]
  %s13 = inlined_call_operand.vmem [shape: f32[1,256], index: 13, kind: input, shape index: {}]
  %s14 = inlined_call_operand.hbm [shape: bf16[256,256], index: 14, kind: input, shape index: {}]
  %s15 = inlined_call_operand.vmem [shape: f32[1,256], index: 15, kind: input, shape index: {}]
  %s16 = inlined_call_operand.hbm [shape: f32[64,128], index: 16, kind: output, shape index: {}]
  %s17 = sld [smem:[#allocation0]]
  $region121: #{tpu_custom_call.1} parent=0
    _
  %s19 = ssub.s32 1, %s17
  %s20 = scalar_select 0, %s19, %s17
  $region1: #{tpu_custom_call.1} parent=0
    #allocation2 [shape = 'u8[49152]{0}', space=vmem, size = 0xc000, scoped, tag = 'input window, operand 0']
    #allocation3 [shape = 's32[2]{0}', space=sflag, size = 0x8, scoped, tag = 'scoped memory for tpu_custom_call.1']
    #allocation4 [shape = 's32[2]{0}', space=sflag, size = 0x8, scoped, tag = 'scoped memory for tpu_custom_call.1']
    #allocation5 [shape = 'u8[32768]{0}', space=vmem, size = 0x8000, scoped, tag = 'input window, operand 1']
    #allocation6 [shape = 's32[2]{0}', space=sflag, size = 0x8, scoped, tag = 'scoped memory for tpu_custom_call.1']
    #allocation7 [shape = 'u8[196608]{0}', space=vmem, size = 0x30000, scoped, tag = 'input window, operand 2, single buffered']
    #allocation8 [shape = 'u8[131072]{0}', space=vmem, size = 0x20000, scoped, tag = 'input window, operand 6, single buffered']
    #allocation9 [shape = 's32[1]{0}', space=sflag, size = 0x4, scoped, tag = 'scoped memory for tpu_custom_call.1']
    #allocation10 [shape = 'u8[131072]{0}', space=vmem, size = 0x20000, scoped, tag = 'input window, operand 10, single buffered']
    #allocation11 [shape = 'u8[131072]{0}', space=vmem, size = 0x20000, scoped, tag = 'input window, operand 14, single buffered']
    #allocation12 [shape = 's32[1]{0}', space=sflag, size = 0x4, scoped, tag = 'scoped memory for tpu_custom_call.1']
    #allocation13 [shape = 'u8[32768]{0}', space=vmem, size = 0x8000, scoped, tag = 'output window, operand 0']
    %21 = vsyncpa [#allocation3], 0
    %s22 = scalar_lea.sflag [#allocation3], 1
    %23 = vsyncpa %s22, 0
    %24 = vsyncpa [#allocation6], 0
    %s25 = scalar_lea.sflag [#allocation6], 1
    %26 = vsyncpa %s25, 0
    %27 = vsyncpa [#allocation9], 0
    %28 = vsyncpa [#allocation12], 0
    %29 = vsyncpa [#allocation4], 0
    %s30 = scalar_lea.sflag [#allocation4], 1
    %31 = vsyncpa %s30, 0
    loop: start=0, step=1, limit=4
    $region2: #{tpu_custom_call.1} parent=1 // loop_pre_header
      _
    $region3: #{tpu_custom_call.1} parent=1 // loop_header
      %s33 = sphi 0, %s37
      %p34 = scmp.ge.s32.totalorder %s33, 4
      %s43 = sphi 0, %s45
      %s46 = sphi 0, %s43
      %s47 = sphi 0, %s46
      %s63 = sphi 0, %s47
      %s69 = sphi 0, %s71
      %s72 = sphi 0, %s69
      %s73 = sphi 0, %s72
      %s89 = sphi 0, %s73
      %s93 = sphi 0, %s93
      %s95 = sphi 0, %s93
      %s96 = sphi 0, %s95
      %s110 = sphi 0, %s96
      %s114 = sphi 0, %s114
      %s116 = sphi 0, %s114
      %s117 = sphi 0, %s116
      %s131 = sphi 0, %s117
      %s135 = sphi 0, %s135
      %s137 = sphi 0, %s135
      %s138 = sphi 0, %s137
      %s152 = sphi 0, %s138
      %s156 = sphi 0, %s156
      %s158 = sphi 0, %s156
      %s159 = sphi 0, %s158
      %s173 = sphi 0, %s159
      %s177 = sphi 0, %s177
      %s179 = sphi 0, %s177
      %s180 = sphi 0, %s179
      %s194 = sphi 0, %s180
      %s198 = sphi 0, %s198
      %s200 = sphi 0, %s198
      %s201 = sphi 0, %s200
      %s215 = sphi 0, %s201
      %s219 = sphi 0, %s219
      %s221 = sphi 0, %s219
      %s222 = sphi 0, %s221
      %s236 = sphi 0, %s222
      %s240 = sphi 0, %s240
      %s242 = sphi 0, %s240
      %s243 = sphi 0, %s242
      %s257 = sphi 0, %s243
      %s261 = sphi 0, %s261
      %s263 = sphi 0, %s261
      %s264 = sphi 0, %s263
      %s278 = sphi 0, %s264
      %s282 = sphi 0, %s282
      %s284 = sphi 0, %s282
      %s285 = sphi 0, %s284
      %s299 = sphi 0, %s285
      %s303 = sphi 0, %s303
      %s305 = sphi 0, %s303
      %s306 = sphi 0, %s305
      %s320 = sphi 0, %s306
      %s324 = sphi 0, %s324
      %s326 = sphi 0, %s324
      %s327 = sphi 0, %s326
      %s341 = sphi 0, %s327
      %s345 = sphi 0, %s345
      %s347 = sphi 0, %s345
      %s348 = sphi 0, %s347
      %s362 = sphi 0, %s348
      %s366 = sphi 0, %s366
      %s368 = sphi 0, %s366
      %s369 = sphi 0, %s368
      %s383 = sphi 0, %s369
      %s389 = sphi 0, %s391
      %s392 = sphi 0, %s389
      %s393 = sphi 0, %s392
      %s409 = sphi 0, %s393
    $region4: #{tpu_custom_call.1} parent=1 // loop_header_branch
      %36 = sbr.rel (%p34) target = $region8
    $region5: #{tpu_custom_call.1} parent=1 // loop_body
      %s38 = ssub.s32 %s33, 1
      %s39 = ssub.s32 %s33, 2
      %s40 = sadd.s32 %s33, 1
      %s41 = ssub.s32 %s33, %s40
      %p42 = scmp.eq.s32.totalorder %s41, 0
      %s44 = sadd.s32 %s43, 1
      %s45 = scalar_select %p42, %s43, %s44
      %p48 = pneg %p42
      %p49 = scmp.eq.s32.totalorder %s33, 1
      %p50 = por %p48, %p49
      %p51 = scmp.ne.s32.totalorder %s43, %s46
      %p52 = scmp.eq.s32.totalorder %s33, 0
      %p53 = por %p51, %p52
      %p54 = scmp.ne.s32.totalorder %s43, %s46
      %p55 = scmp.eq.s32.totalorder %s38, 1
      %p56 = por %p54, %p55
      %p57 = scmp.ne.s32.totalorder %s46, %s47
      %p58 = scmp.eq.s32.totalorder %s38, 0
      %p59 = por %p57, %p58
      %p60 = scmp.ne.s32.totalorder %s46, %s47
      %p61 = scmp.eq.s32.totalorder %s39, 1
      %p62 = por %p60, %p61
      %p64 = scmp.ne.s32.totalorder %s47, %s63
      %p65 = scmp.eq.s32.totalorder %s39, 0
      %p66 = por %p64, %p65
      %s67 = ssub.s32 %s33, %s40
      %p68 = scmp.eq.s32.totalorder %s67, 0
      %s70 = sadd.s32 %s69, 1
      %s71 = scalar_select %p68, %s69, %s70
      %p74 = pneg %p68
      %p75 = scmp.eq.s32.totalorder %s33, 1
      %p76 = por %p74, %p75
      %p77 = scmp.ne.s32.totalorder %s69, %s72
      %p78 = scmp.eq.s32.totalorder %s33, 0
      %p79 = por %p77, %p78
      %p80 = scmp.ne.s32.totalorder %s69, %s72
      %p81 = scmp.eq.s32.totalorder %s38, 1
      %p82 = por %p80, %p81
      %p83 = scmp.ne.s32.totalorder %s72, %s73
      %p84 = scmp.eq.s32.totalorder %s38, 0
      %p85 = por %p83, %p84
      %p86 = scmp.ne.s32.totalorder %s72, %s73
      %p87 = scmp.eq.s32.totalorder %s39, 1
      %p88 = por %p86, %p87
      %p90 = scmp.ne.s32.totalorder %s73, %s89
      %p91 = scmp.eq.s32.totalorder %s39, 0
      %p92 = por %p90, %p91
      %s94 = sadd.s32 %s93, 1
      %p97 = scmp.eq.s32.totalorder %s33, 1
      %p98 = scmp.ne.s32.totalorder %s93, %s95
      %p99 = scmp.eq.s32.totalorder %s33, 0
      %p100 = por %p98, %p99
      %p101 = scmp.ne.s32.totalorder %s93, %s95
      %p102 = scmp.eq.s32.totalorder %s38, 1
      %p103 = por %p101, %p102
      %p104 = scmp.ne.s32.totalorder %s95, %s96
      %p105 = scmp.eq.s32.totalorder %s38, 0
      %p106 = por %p104, %p105
      %p107 = scmp.ne.s32.totalorder %s95, %s96
      %p108 = scmp.eq.s32.totalorder %s39, 1
      %p109 = por %p107, %p108
      %p111 = scmp.ne.s32.totalorder %s96, %s110
      %p112 = scmp.eq.s32.totalorder %s39, 0
      %p113 = por %p111, %p112
      %s115 = sadd.s32 %s114, 1
      %p118 = scmp.eq.s32.totalorder %s33, 1
      %p119 = scmp.ne.s32.totalorder %s114, %s116
      %p120 = scmp.eq.s32.totalorder %s33, 0
      %p121 = por %p119, %p120
      %p122 = scmp.ne.s32.totalorder %s114, %s116
      %p123 = scmp.eq.s32.totalorder %s38, 1
      %p124 = por %p122, %p123
      %p125 = scmp.ne.s32.totalorder %s116, %s117
      %p126 = scmp.eq.s32.totalorder %s38, 0
      %p127 = por %p125, %p126
      %p128 = scmp.ne.s32.totalorder %s116, %s117
      %p129 = scmp.eq.s32.totalorder %s39, 1
      %p130 = por %p128, %p129
      %p132 = scmp.ne.s32.totalorder %s117, %s131
      %p133 = scmp.eq.s32.totalorder %s39, 0
      %p134 = por %p132, %p133
      %s136 = sadd.s32 %s135, 1
      %p139 = scmp.eq.s32.totalorder %s33, 1
      %p140 = scmp.ne.s32.totalorder %s135, %s137
      %p141 = scmp.eq.s32.totalorder %s33, 0
      %p142 = por %p140, %p141
      %p143 = scmp.ne.s32.totalorder %s135, %s137
      %p144 = scmp.eq.s32.totalorder %s38, 1
      %p145 = por %p143, %p144
      %p146 = scmp.ne.s32.totalorder %s137, %s138
      %p147 = scmp.eq.s32.totalorder %s38, 0
      %p148 = por %p146, %p147
      %p149 = scmp.ne.s32.totalorder %s137, %s138
      %p150 = scmp.eq.s32.totalorder %s39, 1
      %p151 = por %p149, %p150
      %p153 = scmp.ne.s32.totalorder %s138, %s152
      %p154 = scmp.eq.s32.totalorder %s39, 0
      %p155 = por %p153, %p154
      %s157 = sadd.s32 %s156, 1
      %p160 = scmp.eq.s32.totalorder %s33, 1
      %p161 = scmp.ne.s32.totalorder %s156, %s158
      %p162 = scmp.eq.s32.totalorder %s33, 0
      %p163 = por %p161, %p162
      %p164 = scmp.ne.s32.totalorder %s156, %s158
      %p165 = scmp.eq.s32.totalorder %s38, 1
      %p166 = por %p164, %p165
      %p167 = scmp.ne.s32.totalorder %s158, %s159
      %p168 = scmp.eq.s32.totalorder %s38, 0
      %p169 = por %p167, %p168
      %p170 = scmp.ne.s32.totalorder %s158, %s159
      %p171 = scmp.eq.s32.totalorder %s39, 1
      %p172 = por %p170, %p171
      %p174 = scmp.ne.s32.totalorder %s159, %s173
      %p175 = scmp.eq.s32.totalorder %s39, 0
      %p176 = por %p174, %p175
      %s178 = sadd.s32 %s177, 1
      %p181 = scmp.eq.s32.totalorder %s33, 1
      %p182 = scmp.ne.s32.totalorder %s177, %s179
      %p183 = scmp.eq.s32.totalorder %s33, 0
      %p184 = por %p182, %p183
      %p185 = scmp.ne.s32.totalorder %s177, %s179
      %p186 = scmp.eq.s32.totalorder %s38, 1
      %p187 = por %p185, %p186
      %p188 = scmp.ne.s32.totalorder %s179, %s180
      %p189 = scmp.eq.s32.totalorder %s38, 0
      %p190 = por %p188, %p189
      %p191 = scmp.ne.s32.totalorder %s179, %s180
      %p192 = scmp.eq.s32.totalorder %s39, 1
      %p193 = por %p191, %p192
      %p195 = scmp.ne.s32.totalorder %s180, %s194
      %p196 = scmp.eq.s32.totalorder %s39, 0
      %p197 = por %p195, %p196
      %s199 = sadd.s32 %s198, 1
      %p202 = scmp.eq.s32.totalorder %s33, 1
      %p203 = scmp.ne.s32.totalorder %s198, %s200
      %p204 = scmp.eq.s32.totalorder %s33, 0
      %p205 = por %p203, %p204
      %p206 = scmp.ne.s32.totalorder %s198, %s200
      %p207 = scmp.eq.s32.totalorder %s38, 1
      %p208 = por %p206, %p207
      %p209 = scmp.ne.s32.totalorder %s200, %s201
      %p210 = scmp.eq.s32.totalorder %s38, 0
      %p211 = por %p209, %p210
      %p212 = scmp.ne.s32.totalorder %s200, %s201
      %p213 = scmp.eq.s32.totalorder %s39, 1
      %p214 = por %p212, %p213
      %p216 = scmp.ne.s32.totalorder %s201, %s215
      %p217 = scmp.eq.s32.totalorder %s39, 0
      %p218 = por %p216, %p217
      %s220 = sadd.s32 %s219, 1
      %p223 = scmp.eq.s32.totalorder %s33, 1
      %p224 = scmp.ne.s32.totalorder %s219, %s221
      %p225 = scmp.eq.s32.totalorder %s33, 0
      %p226 = por %p224, %p225
      %p227 = scmp.ne.s32.totalorder %s219, %s221
      %p228 = scmp.eq.s32.totalorder %s38, 1
      %p229 = por %p227, %p228
      %p230 = scmp.ne.s32.totalorder %s221, %s222
      %p231 = scmp.eq.s32.totalorder %s38, 0
      %p232 = por %p230, %p231
      %p233 = scmp.ne.s32.totalorder %s221, %s222
      %p234 = scmp.eq.s32.totalorder %s39, 1
      %p235 = por %p233, %p234
      %p237 = scmp.ne.s32.totalorder %s222, %s236
      %p238 = scmp.eq.s32.totalorder %s39, 0
      %p239 = por %p237, %p238
      %s241 = sadd.s32 %s240, 1
      %p244 = scmp.eq.s32.totalorder %s33, 1
      %p245 = scmp.ne.s32.totalorder %s240, %s242
      %p246 = scmp.eq.s32.totalorder %s33, 0
      %p247 = por %p245, %p246
      %p248 = scmp.ne.s32.totalorder %s240, %s242
      %p249 = scmp.eq.s32.totalorder %s38, 1
      %p250 = por %p248, %p249
      %p251 = scmp.ne.s32.totalorder %s242, %s243
      %p252 = scmp.eq.s32.totalorder %s38, 0
      %p253 = por %p251, %p252
      %p254 = scmp.ne.s32.totalorder %s242, %s243
      %p255 = scmp.eq.s32.totalorder %s39, 1
      %p256 = por %p254, %p255
      %p258 = scmp.ne.s32.totalorder %s243, %s257
      %p259 = scmp.eq.s32.totalorder %s39, 0
      %p260 = por %p258, %p259
      %s262 = sadd.s32 %s261, 1
      %p265 = scmp.eq.s32.totalorder %s33, 1
      %p266 = scmp.ne.s32.totalorder %s261, %s263
      %p267 = scmp.eq.s32.totalorder %s33, 0
      %p268 = por %p266, %p267
      %p269 = scmp.ne.s32.totalorder %s261, %s263
      %p270 = scmp.eq.s32.totalorder %s38, 1
      %p271 = por %p269, %p270
      %p272 = scmp.ne.s32.totalorder %s263, %s264
      %p273 = scmp.eq.s32.totalorder %s38, 0
      %p274 = por %p272, %p273
      %p275 = scmp.ne.s32.totalorder %s263, %s264
      %p276 = scmp.eq.s32.totalorder %s39, 1
      %p277 = por %p275, %p276
      %p279 = scmp.ne.s32.totalorder %s264, %s278
      %p280 = scmp.eq.s32.totalorder %s39, 0
      %p281 = por %p279, %p280
      %s283 = sadd.s32 %s282, 1
      %p286 = scmp.eq.s32.totalorder %s33, 1
      %p287 = scmp.ne.s32.totalorder %s282, %s284
      %p288 = scmp.eq.s32.totalorder %s33, 0
      %p289 = por %p287, %p288
      %p290 = scmp.ne.s32.totalorder %s282, %s284
      %p291 = scmp.eq.s32.totalorder %s38, 1
      %p292 = por %p290, %p291
      %p293 = scmp.ne.s32.totalorder %s284, %s285
      %p294 = scmp.eq.s32.totalorder %s38, 0
      %p295 = por %p293, %p294
      %p296 = scmp.ne.s32.totalorder %s284, %s285
      %p297 = scmp.eq.s32.totalorder %s39, 1
      %p298 = por %p296, %p297
      %p300 = scmp.ne.s32.totalorder %s285, %s299
      %p301 = scmp.eq.s32.totalorder %s39, 0
      %p302 = por %p300, %p301
      %s304 = sadd.s32 %s303, 1
      %p307 = scmp.eq.s32.totalorder %s33, 1
      %p308 = scmp.ne.s32.totalorder %s303, %s305
      %p309 = scmp.eq.s32.totalorder %s33, 0
      %p310 = por %p308, %p309
      %p311 = scmp.ne.s32.totalorder %s303, %s305
      %p312 = scmp.eq.s32.totalorder %s38, 1
      %p313 = por %p311, %p312
      %p314 = scmp.ne.s32.totalorder %s305, %s306
      %p315 = scmp.eq.s32.totalorder %s38, 0
      %p316 = por %p314, %p315
      %p317 = scmp.ne.s32.totalorder %s305, %s306
      %p318 = scmp.eq.s32.totalorder %s39, 1
      %p319 = por %p317, %p318
      %p321 = scmp.ne.s32.totalorder %s306, %s320
      %p322 = scmp.eq.s32.totalorder %s39, 0
      %p323 = por %p321, %p322
      %s325 = sadd.s32 %s324, 1
      %p328 = scmp.eq.s32.totalorder %s33, 1
      %p329 = scmp.ne.s32.totalorder %s324, %s326
      %p330 = scmp.eq.s32.totalorder %s33, 0
      %p331 = por %p329, %p330
      %p332 = scmp.ne.s32.totalorder %s324, %s326
      %p333 = scmp.eq.s32.totalorder %s38, 1
      %p334 = por %p332, %p333
      %p335 = scmp.ne.s32.totalorder %s326, %s327
      %p336 = scmp.eq.s32.totalorder %s38, 0
      %p337 = por %p335, %p336
      %p338 = scmp.ne.s32.totalorder %s326, %s327
      %p339 = scmp.eq.s32.totalorder %s39, 1
      %p340 = por %p338, %p339
      %p342 = scmp.ne.s32.totalorder %s327, %s341
      %p343 = scmp.eq.s32.totalorder %s39, 0
      %p344 = por %p342, %p343
      %s346 = sadd.s32 %s345, 1
      %p349 = scmp.eq.s32.totalorder %s33, 1
      %p350 = scmp.ne.s32.totalorder %s345, %s347
      %p351 = scmp.eq.s32.totalorder %s33, 0
      %p352 = por %p350, %p351
      %p353 = scmp.ne.s32.totalorder %s345, %s347
      %p354 = scmp.eq.s32.totalorder %s38, 1
      %p355 = por %p353, %p354
      %p356 = scmp.ne.s32.totalorder %s347, %s348
      %p357 = scmp.eq.s32.totalorder %s38, 0
      %p358 = por %p356, %p357
      %p359 = scmp.ne.s32.totalorder %s347, %s348
      %p360 = scmp.eq.s32.totalorder %s39, 1
      %p361 = por %p359, %p360
      %p363 = scmp.ne.s32.totalorder %s348, %s362
      %p364 = scmp.eq.s32.totalorder %s39, 0
      %p365 = por %p363, %p364
      %s367 = sadd.s32 %s366, 1
      %p370 = scmp.eq.s32.totalorder %s33, 1
      %p371 = scmp.ne.s32.totalorder %s366, %s368
      %p372 = scmp.eq.s32.totalorder %s33, 0
      %p373 = por %p371, %p372
      %p374 = scmp.ne.s32.totalorder %s366, %s368
      %p375 = scmp.eq.s32.totalorder %s38, 1
      %p376 = por %p374, %p375
      %p377 = scmp.ne.s32.totalorder %s368, %s369
      %p378 = scmp.eq.s32.totalorder %s38, 0
      %p379 = por %p377, %p378
      %p380 = scmp.ne.s32.totalorder %s368, %s369
      %p381 = scmp.eq.s32.totalorder %s39, 1
      %p382 = por %p380, %p381
      %p384 = scmp.ne.s32.totalorder %s369, %s383
      %p385 = scmp.eq.s32.totalorder %s39, 0
      %p386 = por %p384, %p385
      %s387 = ssub.s32 %s33, %s40
      %p388 = scmp.eq.s32.totalorder %s387, 0
      %s390 = sadd.s32 %s389, 1
      %s391 = scalar_select %p388, %s389, %s390
      %p394 = pneg %p388
      %p395 = scmp.eq.s32.totalorder %s33, 1
      %p396 = por %p394, %p395
      %p397 = scmp.ne.s32.totalorder %s389, %s392
      %p398 = scmp.eq.s32.totalorder %s33, 0
      %p399 = por %p397, %p398
      %p400 = scmp.ne.s32.totalorder %s389, %s392
      %p401 = scmp.eq.s32.totalorder %s38, 1
      %p402 = por %p400, %p401
      %p403 = scmp.ne.s32.totalorder %s392, %s393
      %p404 = scmp.eq.s32.totalorder %s38, 0
      %p405 = por %p403, %p404
      %p406 = scmp.ne.s32.totalorder %s392, %s393
      %p407 = scmp.eq.s32.totalorder %s39, 1
      %p408 = por %p406, %p407
      %p410 = scmp.ne.s32.totalorder %s393, %s409
      %p411 = scmp.eq.s32.totalorder %s39, 0
      %p412 = por %p410, %p411
      %p413 = scmp.le.s32.totalorder 1, %s33
      %p414 = scmp.lt.s32.totalorder %s33, 3
      %p415 = pnand %p413, %p414
      %p416 = pneg %p415
      // Predicated region
      $region9: #{tpu_custom_call.1} parent=5 // pred_check
        _
      $region10: #{tpu_custom_call.1} parent=5 // pred_check_branch
        %418 = sbr.rel (%p415) target = $region12
      $region11: #{tpu_custom_call.1} parent=5 // pred_region
        %s419 = ssub.s32 %s33, 1
        // Predicated region
        $region13: #{tpu_custom_call.1} parent=11 // pred_check
          %p420 = pneg %p106
        $region14: #{tpu_custom_call.1} parent=11 // pred_check_branch
          %422 = sbr.rel (%p420) target = $region16
        $region15: #{tpu_custom_call.1} parent=11 // pred_region
          %s424 = ssub.s32 6144, 6144
          %425 = vsyncadd [#allocation6], %s424
          %s426 = sshll.u32 [#allocation7], 4
          %s427 = int_to_ptr.vmem [resolvable:$true] %s426
          %432 = dma.hbm_to_vmem [thread:$0]  %s2, 6144, %s427, [#allocation6], 128, 128, 8
        $region16: #{tpu_custom_call.1} parent=11 // pred_fallthru
          _
        // Predicated region
        $region17: #{tpu_custom_call.1} parent=11 // pred_check
          %p433 = pneg %p127
        $region18: #{tpu_custom_call.1} parent=11 // pred_check_branch
          %435 = sbr.rel (%p433) target = $region20
        $region19: #{tpu_custom_call.1} parent=11 // pred_region
          _
        $region20: #{tpu_custom_call.1} parent=11 // pred_fallthru
          _
        // Predicated region
        $region21: #{tpu_custom_call.1} parent=11 // pred_check
          %p436 = pneg %p148
        $region22: #{tpu_custom_call.1} parent=11 // pred_check_branch
          %438 = sbr.rel (%p436) target = $region24
        $region23: #{tpu_custom_call.1} parent=11 // pred_region
          _
        $region24: #{tpu_custom_call.1} parent=11 // pred_fallthru
          _
        // Predicated region
        $region25: #{tpu_custom_call.1} parent=11 // pred_check
          %p439 = pneg %p169
        $region26: #{tpu_custom_call.1} parent=11 // pred_check_branch
          %441 = sbr.rel (%p439) target = $region28
        $region27: #{tpu_custom_call.1} parent=11 // pred_region
          _
        $region28: #{tpu_custom_call.1} parent=11 // pred_fallthru
          _
        // Predicated region
        $region29: #{tpu_custom_call.1} parent=11 // pred_check
          %p442 = pneg %p190
        $region30: #{tpu_custom_call.1} parent=11 // pred_check_branch
          %444 = sbr.rel (%p442) target = $region32
        $region31: #{tpu_custom_call.1} parent=11 // pred_region
          %s446 = ssub.s32 4096, 4096
          %447 = vsyncadd [#allocation9], %s446
          %s448 = sshll.u32 [#allocation8], 4
          %s449 = int_to_ptr.vmem [resolvable:$true] %s448
          %454 = dma.hbm_to_vmem [thread:$0]  %s6, 4096, %s449, [#allocation9], 128, 128, 8
        $region32: #{tpu_custom_call.1} parent=11 // pred_fallthru
          _
        // Predicated region
        $region33: #{tpu_custom_call.1} parent=11 // pred_check
          %p455 = pneg %p211
        $region34: #{tpu_custom_call.1} parent=11 // pred_check_branch
          %457 = sbr.rel (%p455) target = $region36
        $region35: #{tpu_custom_call.1} parent=11 // pred_region
          _
        $region36: #{tpu_custom_call.1} parent=11 // pred_fallthru
          _
        // Predicated region
        $region37: #{tpu_custom_call.1} parent=11 // pred_check
          %p458 = pneg %p232
        $region38: #{tpu_custom_call.1} parent=11 // pred_check_branch
          %460 = sbr.rel (%p458) target = $region40
        $region39: #{tpu_custom_call.1} parent=11 // pred_region
          _
        $region40: #{tpu_custom_call.1} parent=11 // pred_fallthru
          _
        // Predicated region
        $region41: #{tpu_custom_call.1} parent=11 // pred_check
          %p461 = pneg %p253
        $region42: #{tpu_custom_call.1} parent=11 // pred_check_branch
          %463 = sbr.rel (%p461) target = $region44
        $region43: #{tpu_custom_call.1} parent=11 // pred_region
          _
        $region44: #{tpu_custom_call.1} parent=11 // pred_fallthru
          _
        // Predicated region
        $region45: #{tpu_custom_call.1} parent=11 // pred_check
          %p464 = pneg %p274
        $region46: #{tpu_custom_call.1} parent=11 // pred_check_branch
          %466 = sbr.rel (%p464) target = $region48
        $region47: #{tpu_custom_call.1} parent=11 // pred_region
          %s468 = ssub.s32 4096, 4096
          %469 = vsyncadd [#allocation9], %s468
          %s470 = sshll.u32 [#allocation10], 4
          %s471 = int_to_ptr.vmem [resolvable:$true] %s470
          %476 = dma.hbm_to_vmem [thread:$0]  %s10, 4096, %s471, [#allocation9], 128, 128, 8
        $region48: #{tpu_custom_call.1} parent=11 // pred_fallthru
          _
        // Predicated region
        $region49: #{tpu_custom_call.1} parent=11 // pred_check
          %p477 = pneg %p295
        $region50: #{tpu_custom_call.1} parent=11 // pred_check_branch
          %479 = sbr.rel (%p477) target = $region52
        $region51: #{tpu_custom_call.1} parent=11 // pred_region
          _
        $region52: #{tpu_custom_call.1} parent=11 // pred_fallthru
          _
        // Predicated region
        $region53: #{tpu_custom_call.1} parent=11 // pred_check
          %p480 = pneg %p316
        $region54: #{tpu_custom_call.1} parent=11 // pred_check_branch
          %482 = sbr.rel (%p480) target = $region56
        $region55: #{tpu_custom_call.1} parent=11 // pred_region
          _
        $region56: #{tpu_custom_call.1} parent=11 // pred_fallthru
          _
        // Predicated region
        $region57: #{tpu_custom_call.1} parent=11 // pred_check
          %p483 = pneg %p337
        $region58: #{tpu_custom_call.1} parent=11 // pred_check_branch
          %485 = sbr.rel (%p483) target = $region60
        $region59: #{tpu_custom_call.1} parent=11 // pred_region
          _
        $region60: #{tpu_custom_call.1} parent=11 // pred_fallthru
          _
        // Predicated region
        $region61: #{tpu_custom_call.1} parent=11 // pred_check
          %p486 = pneg %p358
        $region62: #{tpu_custom_call.1} parent=11 // pred_check_branch
          %488 = sbr.rel (%p486) target = $region64
        $region63: #{tpu_custom_call.1} parent=11 // pred_region
          %s490 = ssub.s32 4096, 4096
          %491 = vsyncadd [#allocation12], %s490
          %s492 = sshll.u32 [#allocation11], 4
          %s493 = int_to_ptr.vmem [resolvable:$true] %s492
          %498 = dma.hbm_to_vmem [thread:$0]  %s14, 4096, %s493, [#allocation12], 128, 128, 8
        $region64: #{tpu_custom_call.1} parent=11 // pred_fallthru
          _
        // Predicated region
        $region65: #{tpu_custom_call.1} parent=11 // pred_check
          %p499 = pneg %p379
        $region66: #{tpu_custom_call.1} parent=11 // pred_check_branch
          %501 = sbr.rel (%p499) target = $region68
        $region67: #{tpu_custom_call.1} parent=11 // pred_region
          _
        $region68: #{tpu_custom_call.1} parent=11 // pred_fallthru
          _
      $region12: #{tpu_custom_call.1} parent=5 // pred_fallthru
        _
      %p502 = scmp.lt.s32.totalorder %s33, 2
      // Predicated region
      $region69: #{tpu_custom_call.1} parent=5 // pred_check
        %p503 = pneg %p502
      $region70: #{tpu_custom_call.1} parent=5 // pred_check_branch
        %505 = sbr.rel (%p503) target = $region72
      $region71: #{tpu_custom_call.1} parent=5 // pred_region
        // Predicated region
        $region73: #{tpu_custom_call.1} parent=71 // pred_check
          %p506 = pneg %p53
        $region74: #{tpu_custom_call.1} parent=71 // pred_check_branch
          %508 = sbr.rel (%p506) target = $region76
        $region75: #{tpu_custom_call.1} parent=71 // pred_region
          %s509 = sand.u32 %s43, 1
          %s510 = scalar_lea.sflag [#allocation3], %s509
          %s511 = sand.u32 %s43, 1
          %s512 = smul.addr %s511, 48
          %s513 = scalar_lea.vmem [#allocation2], %s512
          %s514 = smul.u32 4, %s33
          %s516 = ssub.s32 768, 768
          %517 = vsyncadd %s510, %s516
          %s518 = smul.addr %s514, 3
          %s519 = smul.addr %s518, 64
          %s520 = scalar_lea.hbm %s0, %s519
          %s521 = sshll.u32 %s513, 4
          %s522 = int_to_ptr.vmem [resolvable:$true] %s521
          %527 = dma.hbm_to_vmem [thread:$0]  %s520, 768, %s522, %s510, 192, 192, 12
        $region76: #{tpu_custom_call.1} parent=71 // pred_fallthru
          _
        // Predicated region
        $region77: #{tpu_custom_call.1} parent=71 // pred_check
          %p528 = pneg %p79
        $region78: #{tpu_custom_call.1} parent=71 // pred_check_branch
          %530 = sbr.rel (%p528) target = $region80
        $region79: #{tpu_custom_call.1} parent=71 // pred_region
          %s531 = sand.u32 %s33, 1
          %s532 = scalar_lea.sflag [#allocation6], %s531
          %s533 = sand.u32 %s69, 1
          %s534 = smul.addr %s533, 32
          %s535 = scalar_lea.vmem [#allocation5], %s534
          %s536 = smul.u32 4, %s33
          %s538 = ssub.s32 512, 512
          %539 = vsyncadd %s532, %s538
          %s540 = smul.addr %s536, 128
          %s541 = scalar_lea.hbm %s1, %s540
          %s542 = sshll.u32 %s535, 4
          %s543 = int_to_ptr.vmem [resolvable:$true] %s542
          %548 = dma.hbm_to_vmem [thread:$0]  %s541, 512, %s543, %s532, 128, 128, 8
        $region80: #{tpu_custom_call.1} parent=71 // pred_fallthru
          _
      $region72: #{tpu_custom_call.1} parent=5 // pred_fallthru
        _
      %p549 = scmp.le.s32.totalorder 1, %s33
      %p550 = scmp.lt.s32.totalorder %s33, 3
      %p551 = pnand %p549, %p550
      %p552 = pneg %p551
      // Predicated region
      $region81: #{tpu_custom_call.1} parent=5 // pred_check
        _
      $region82: #{tpu_custom_call.1} parent=5 // pred_check_branch
        %554 = sbr.rel (%p551) target = $region84
      $region83: #{tpu_custom_call.1} parent=5 // pred_region
        %s555 = ssub.s32 %s33, 1
        %s556 = sand.u32 %s46, 1
        %s557 = scalar_lea.sflag [#allocation3], %s556
        %s558 = sand.u32 %s46, 1
        %s559 = smul.addr %s558, 48
        %s560 = scalar_lea.vmem [#allocation2], %s559
        // Predicated region
        $region85: #{tpu_custom_call.1} parent=83 // pred_check
          %p561 = pneg %p59
        $region86: #{tpu_custom_call.1} parent=83 // pred_check_branch
          %563 = sbr.rel (%p561) target = $region88
        $region87: #{tpu_custom_call.1} parent=83 // pred_region
          %564 = dma.done %s557, 768
        $region88: #{tpu_custom_call.1} parent=83 // pred_fallthru
          _
        %s565 = sand.u32 %s38, 1
        %s566 = scalar_lea.sflag [#allocation6], %s565
        %s567 = sand.u32 %s72, 1
        %s568 = smul.addr %s567, 32
        %s569 = scalar_lea.vmem [#allocation5], %s568
        // Predicated region
        $region89: #{tpu_custom_call.1} parent=83 // pred_check
          %p570 = pneg %p85
        $region90: #{tpu_custom_call.1} parent=83 // pred_check_branch
          %572 = sbr.rel (%p570) target = $region92
        $region91: #{tpu_custom_call.1} parent=83 // pred_region
          %573 = dma.done %s566, 512
        $region92: #{tpu_custom_call.1} parent=83 // pred_fallthru
          _
        // Predicated region
        $region93: #{tpu_custom_call.1} parent=83 // pred_check
          %p574 = pneg %p106
        $region94: #{tpu_custom_call.1} parent=83 // pred_check_branch
          %576 = sbr.rel (%p574) target = $region96
        $region95: #{tpu_custom_call.1} parent=83 // pred_region
          %577 = dma.done [#allocation6], 6144
        $region96: #{tpu_custom_call.1} parent=83 // pred_fallthru
          _
        // Predicated region
        $region97: #{tpu_custom_call.1} parent=83 // pred_check
          %p578 = pneg %p190
        $region98: #{tpu_custom_call.1} parent=83 // pred_check_branch
          %580 = sbr.rel (%p578) target = $region100
        $region99: #{tpu_custom_call.1} parent=83 // pred_region
          %581 = dma.done [#allocation9], 4096
        $region100: #{tpu_custom_call.1} parent=83 // pred_fallthru
          _
        // Predicated region
        $region101: #{tpu_custom_call.1} parent=83 // pred_check
          %p582 = pneg %p274
        $region102: #{tpu_custom_call.1} parent=83 // pred_check_branch
          %584 = sbr.rel (%p582) target = $region104
        $region103: #{tpu_custom_call.1} parent=83 // pred_region
          %585 = dma.done [#allocation9], 4096
        $region104: #{tpu_custom_call.1} parent=83 // pred_fallthru
          _
        // Predicated region
        $region105: #{tpu_custom_call.1} parent=83 // pred_check
          %p586 = pneg %p358
        $region106: #{tpu_custom_call.1} parent=83 // pred_check_branch
          %588 = sbr.rel (%p586) target = $region108
        $region107: #{tpu_custom_call.1} parent=83 // pred_region
          %589 = dma.done [#allocation12], 4096
        $region108: #{tpu_custom_call.1} parent=83 // pred_fallthru
          _
        %s590 = sand.u32 %s46, 1
        %s591 = scalar_lea.sflag [#allocation3], %s590
        %s592 = sand.u32 %s46, 1
        %s593 = smul.addr %s592, 48
        %s594 = scalar_lea.vmem [#allocation2], %s593
        %p595 = pneg %p59
        %p596 = pneg %p56
        %s597 = sand.u32 %s38, 1
        %s598 = scalar_lea.sflag [#allocation6], %s597
        %s599 = sand.u32 %s72, 1
        %s600 = smul.addr %s599, 32
        %s601 = scalar_lea.vmem [#allocation5], %s600
        %p602 = pneg %p85
        %p603 = pneg %p82
        %p604 = pneg %p106
        %p605 = pneg %p103
        %p606 = pneg %p127
        %p607 = pneg %p124
        %p608 = pneg %p148
        %p609 = pneg %p145
        %p610 = pneg %p169
        %p611 = pneg %p166
        %p612 = pneg %p190
        %p613 = pneg %p187
        %p614 = pneg %p211
        %p615 = pneg %p208
        %p616 = pneg %p232
        %p617 = pneg %p229
        %p618 = pneg %p253
        %p619 = pneg %p250
        %p620 = pneg %p274
        %p621 = pneg %p271
        %p622 = pneg %p295
        %p623 = pneg %p292
        %p624 = pneg %p316
        %p625 = pneg %p313
        %p626 = pneg %p337
        %p627 = pneg %p334
        %p628 = pneg %p358
        %p629 = pneg %p355
        %p630 = pneg %p379
        %p631 = pneg %p376
        %p632 = pneg %p405
        %p633 = pneg %p402
        %s634 = sand.u32 %s392, 1
        %s635 = scalar_lea.sflag [#allocation4], %s634
        %s636 = sand.u32 %s392, 1
        %s637 = smul.addr %s636, 32
        %s638 = scalar_lea.vmem [#allocation13], %s637
        %s639 = smul.u32 4, %s38
        %s640 = smul.u32 4, %s38
        %s641 = smul.u32 4, %s38
        %v643 = vld [vmem:[%s560] sm:$0xff]
        %v644 = vld [vmem:[%s560 + $0x8] sm:$0xf]
        %v645 = vld [vmem:[%s560 + $0xc] sm:$0xff]
        %v646 = vld [vmem:[%s560 + $0x14] sm:$0xf]
        %v647 = vld [vmem:[%s560 + $0x18] sm:$0xff]
        %v648 = vld [vmem:[%s560 + $0x20] sm:$0xf]
        %v649 = vld [vmem:[%s560 + $0x24] sm:$0xff]
        %v650 = vld [vmem:[%s560 + $0x2c] sm:$0xf]
        %v651 = vunpack.c.l.bf16 %v643
        %v652 = vunpack.c.h.bf16 %v643
        %v653 = vunpack.c.l.bf16 %v644
        %v654 = vunpack.c.l.bf16 %v645
        %v655 = vunpack.c.h.bf16 %v645
        %v656 = vunpack.c.l.bf16 %v646
        %v657 = vunpack.c.l.bf16 %v647
        %v658 = vunpack.c.h.bf16 %v647
        %v659 = vunpack.c.l.bf16 %v648
        %v660 = vunpack.c.l.bf16 %v649
        %v661 = vunpack.c.h.bf16 %v649
        %v662 = vunpack.c.l.bf16 %v650
        %v663 = vld [vmem:[%s569] sm:$0xff]
        %v664 = vld [vmem:[%s569 + $0x8] sm:$0xff]
        %v665 = vld [vmem:[%s569 + $0x10] sm:$0xff]
        %v666 = vld [vmem:[%s569 + $0x18] sm:$0xff]
        %v667 = vmul.f32 %v651, %v651
        %v668 = vmul.f32 %v652, %v652
        %v669 = vmul.f32 %v653, %v653
        %v670 = vmul.f32 %v654, %v654
        %v671 = vmul.f32 %v655, %v655
        %v672 = vmul.f32 %v656, %v656
        %v673 = vmul.f32 %v657, %v657
        %v674 = vmul.f32 %v658, %v658
        %v675 = vmul.f32 %v659, %v659
        %v676 = vmul.f32 %v660, %v660
        %v677 = vmul.f32 %v661, %v661
        %v678 = vmul.f32 %v662, %v662
        %v679 = vadd.f32 %v667, %v668
        %v680 = vadd.f32 %v679, %v669
        %681 = vadd.xlane.f32.xlu0 %v680
        %v682 = vpop.xlane.xlu0 %681
        %v683 = vadd.f32 %v670, %v671
        %v684 = vadd.f32 %v683, %v672
        %685 = vadd.xlane.f32.xlu0 %v684
        %v686 = vpop.xlane.xlu0 %685
        %v687 = vadd.f32 %v673, %v674
        %v688 = vadd.f32 %v687, %v675
        %689 = vadd.xlane.f32.xlu0 %v688
        %v690 = vpop.xlane.xlu0 %689
        %v691 = vadd.f32 %v676, %v677
        %v692 = vadd.f32 %v691, %v678
        %693 = vadd.xlane.f32.xlu0 %v692
        %v694 = vpop.xlane.xlu0 %693
        %v695 = vmax.f32 %v682, 1e-24
        %v696 = vmax.f32 %v686, 1e-24
        %v697 = vmax.f32 %v690, 1e-24
        %v698 = vmax.f32 %v694, 1e-24
        %v699 = vrsqrt.pop %v695
        %v700 = vrsqrt.pop %v696
        %v701 = vrsqrt.pop %v697
        %v702 = vrsqrt.pop %v698
        %v703 = vmul.f32 %v651, %v699
        %v704 = vmul.f32 %v652, %v699
        %v705 = vmul.f32 %v653, %v699
        %v706 = vmul.f32 %v654, %v700
        %v707 = vmul.f32 %v655, %v700
        %v708 = vmul.f32 %v656, %v700
        %v709 = vmul.f32 %v657, %v701
        %v710 = vmul.f32 %v658, %v701
        %v711 = vmul.f32 %v659, %v701
        %v712 = vmul.f32 %v660, %v702
        %v713 = vmul.f32 %v661, %v702
        %v714 = vmul.f32 %v662, %v702
        %v715 = vpack.c.bf16 %v706, %v703
        %v716 = vpack.c.bf16 %v707, %v704
        %v717 = vpack.c.bf16 %v708, %v705
        %v718 = vpack.c.bf16 %v712, %v709
        %v719 = vpack.c.bf16 %v713, %v710
        %v720 = vpack.c.bf16 %v714, %v711
        %v721 = vld [vmem:[#allocation7] sm:$0xff]
        %v722 = vld [vmem:[#allocation7 + $0x8] sm:$0xff]
        %v723 = vld [vmem:[#allocation7 + $0x10] sm:$0xff]
        %v724 = vld [vmem:[#allocation7 + $0x18] sm:$0xff]
        %v725 = vld [vmem:[#allocation7 + $0x20] sm:$0xff]
        %v726 = vld [vmem:[#allocation7 + $0x28] sm:$0xff]
        %v727 = vld [vmem:[#allocation7 + $0x30] sm:$0xff]
        %v728 = vld [vmem:[#allocation7 + $0x38] sm:$0xff]
        %v729 = vld [vmem:[#allocation7 + $0x40] sm:$0xff]
        %v730 = vld [vmem:[#allocation7 + $0x48] sm:$0xff]
        %v731 = vld [vmem:[#allocation7 + $0x50] sm:$0xff]
        %v732 = vld [vmem:[#allocation7 + $0x58] sm:$0xff]
        %v733 = vld [vmem:[#allocation7 + $0x60] sm:$0xff]
        %v734 = vld [vmem:[#allocation7 + $0x68] sm:$0xff]
        %v735 = vld [vmem:[#allocation7 + $0x70] sm:$0xff]
        %v736 = vld [vmem:[#allocation7 + $0x78] sm:$0xff]
        %v737 = vld [vmem:[#allocation7 + $0x80] sm:$0xff]
        %v738 = vld [vmem:[#allocation7 + $0x88] sm:$0xff]
        %v739 = vld [vmem:[#allocation7 + $0x90] sm:$0xff]
        %v740 = vld [vmem:[#allocation7 + $0x98] sm:$0xff]
        %v741 = vld [vmem:[#allocation7 + $0xa0] sm:$0xff]
        %v742 = vld [vmem:[#allocation7 + $0xa8] sm:$0xff]
        %v743 = vld [vmem:[#allocation7 + $0xb0] sm:$0xff]
        %v744 = vld [vmem:[#allocation7 + $0xb8] sm:$0xff]
        %v745 = vld [vmem:[#allocation7 + $0xc0] sm:$0xff]
        %v746 = vld [vmem:[#allocation7 + $0xc8] sm:$0xff]
        %v747 = vld [vmem:[#allocation7 + $0xd0] sm:$0xff]
        %v748 = vld [vmem:[#allocation7 + $0xd8] sm:$0xff]
        %v749 = vld [vmem:[#allocation7 + $0xe0] sm:$0xff]
        %v750 = vld [vmem:[#allocation7 + $0xe8] sm:$0xff]
        %v751 = vld [vmem:[#allocation7 + $0xf0] sm:$0xff]
        %v752 = vld [vmem:[#allocation7 + $0xf8] sm:$0xff]
        %v753 = vld [vmem:[#allocation7 + $0x100] sm:$0xff]
        %v754 = vld [vmem:[#allocation7 + $0x108] sm:$0xff]
        %v755 = vld [vmem:[#allocation7 + $0x110] sm:$0xff]
        %v756 = vld [vmem:[#allocation7 + $0x118] sm:$0xff]
        %v757 = vld [vmem:[#allocation7 + $0x120] sm:$0xff]
        %v758 = vld [vmem:[#allocation7 + $0x128] sm:$0xff]
        %v759 = vld [vmem:[#allocation7 + $0x130] sm:$0xff]
        %v760 = vld [vmem:[#allocation7 + $0x138] sm:$0xff]
        %v761 = vld [vmem:[#allocation7 + $0x140] sm:$0xff]
        %v762 = vld [vmem:[#allocation7 + $0x148] sm:$0xff]
        %v763 = vld [vmem:[#allocation7 + $0x150] sm:$0xff]
        %v764 = vld [vmem:[#allocation7 + $0x158] sm:$0xff]
        %v765 = vld [vmem:[#allocation7 + $0x160] sm:$0xff]
        %v766 = vld [vmem:[#allocation7 + $0x168] sm:$0xff]
        %v767 = vld [vmem:[#allocation7 + $0x170] sm:$0xff]
        %v768 = vld [vmem:[#allocation7 + $0x178] sm:$0xff]
        %v769 = vld [vmem:[%s3] sm:$0x3]
        %v771 = vlaneseq
        %v772 = vshrl.u32 %v771, 7
        %v773 = vsub.s32 0, %v772
        %v774 = vrot.slane %v769, %v773
        %v775 = vlaneseq
        %v776 = vshrl.u32 %v775, 7
        %v777 = vsub.s32 1, %v776
        %v778 = vrot.slane %v769, %v777
        %v829 = vunpack.c.l.b16 %v721
        %v830 = vunpack.c.h.b16 %v721
        %v831 = vunpack.c.l.b16 %v722
        %v832 = vunpack.c.h.b16 %v722
        %v833 = vunpack.c.l.b16 %v723
        %v834 = vunpack.c.h.b16 %v723
        %v835 = vunpack.c.l.b16 %v724
        %v836 = vunpack.c.h.b16 %v724
        %v837 = vunpack.c.l.b16 %v725
        %v838 = vunpack.c.h.b16 %v725
        %v839 = vunpack.c.l.b16 %v726
        %v840 = vunpack.c.h.b16 %v726
        %v841 = vunpack.c.l.b16 %v727
        %v842 = vunpack.c.h.b16 %v727
        %v843 = vunpack.c.l.b16 %v728
        %v844 = vunpack.c.h.b16 %v728
        %v845 = vunpack.c.l.b16 %v729
        %v846 = vunpack.c.h.b16 %v729
        %v847 = vunpack.c.l.b16 %v730
        %v848 = vunpack.c.h.b16 %v730
        %v849 = vunpack.c.l.b16 %v731
        %v850 = vunpack.c.h.b16 %v731
        %v851 = vunpack.c.l.b16 %v732
        %v852 = vunpack.c.h.b16 %v732
        %v853 = vunpack.c.l.b16 %v733
        %v854 = vunpack.c.h.b16 %v733
        %v855 = vunpack.c.l.b16 %v734
        %v856 = vunpack.c.h.b16 %v734
        %v857 = vunpack.c.l.b16 %v735
        %v858 = vunpack.c.h.b16 %v735
        %v859 = vunpack.c.l.b16 %v736
        %v860 = vunpack.c.h.b16 %v736
        %v861 = vunpack.c.l.b16 %v737
        %v862 = vunpack.c.h.b16 %v737
        %v863 = vunpack.c.l.b16 %v738
        %v864 = vunpack.c.h.b16 %v738
        %v865 = vunpack.c.l.b16 %v739
        %v866 = vunpack.c.h.b16 %v739
        %v867 = vunpack.c.l.b16 %v740
        %v868 = vunpack.c.h.b16 %v740
        %v869 = vunpack.c.l.b16 %v741
        %v870 = vunpack.c.h.b16 %v741
        %v871 = vunpack.c.l.b16 %v742
        %v872 = vunpack.c.h.b16 %v742
        %v873 = vunpack.c.l.b16 %v743
        %v874 = vunpack.c.h.b16 %v743
        %v875 = vunpack.c.l.b16 %v744
        %v876 = vunpack.c.h.b16 %v744
        %v877 = vunpack.c.l.b16 %v745
        %v878 = vunpack.c.h.b16 %v745
        %v879 = vunpack.c.l.b16 %v746
        %v880 = vunpack.c.h.b16 %v746
        %v881 = vunpack.c.l.b16 %v747
        %v882 = vunpack.c.h.b16 %v747
        %v883 = vunpack.c.l.b16 %v748
        %v884 = vunpack.c.h.b16 %v748
        %v885 = vunpack.c.l.b16 %v749
        %v886 = vunpack.c.h.b16 %v749
        %v887 = vunpack.c.l.b16 %v750
        %v888 = vunpack.c.h.b16 %v750
        %v889 = vunpack.c.l.b16 %v751
        %v890 = vunpack.c.h.b16 %v751
        %v891 = vunpack.c.l.b16 %v752
        %v892 = vunpack.c.h.b16 %v752
        %v893 = vunpack.c.l.b16 %v753
        %v894 = vunpack.c.h.b16 %v753
        %v895 = vunpack.c.l.b16 %v754
        %v896 = vunpack.c.h.b16 %v754
        %v897 = vunpack.c.l.b16 %v755
        %v898 = vunpack.c.h.b16 %v755
        %v899 = vunpack.c.l.b16 %v756
        %v900 = vunpack.c.h.b16 %v756
        %v901 = vunpack.c.l.b16 %v757
        %v902 = vunpack.c.h.b16 %v757
        %v903 = vunpack.c.l.b16 %v758
        %v904 = vunpack.c.h.b16 %v758
        %v905 = vunpack.c.l.b16 %v759
        %v906 = vunpack.c.h.b16 %v759
        %v907 = vunpack.c.l.b16 %v760
        %v908 = vunpack.c.h.b16 %v760
        %v909 = vunpack.c.l.b16 %v761
        %v910 = vunpack.c.h.b16 %v761
        %v911 = vunpack.c.l.b16 %v762
        %v912 = vunpack.c.h.b16 %v762
        %v913 = vunpack.c.l.b16 %v763
        %v914 = vunpack.c.h.b16 %v763
        %v915 = vunpack.c.l.b16 %v764
        %v916 = vunpack.c.h.b16 %v764
        %v917 = vunpack.c.l.b16 %v765
        %v918 = vunpack.c.h.b16 %v765
        %v919 = vunpack.c.l.b16 %v766
        %v920 = vunpack.c.h.b16 %v766
        %v921 = vunpack.c.l.b16 %v767
        %v922 = vunpack.c.h.b16 %v767
        %v923 = vunpack.c.l.b16 %v768
        %v924 = vunpack.c.h.b16 %v768
        %v925 = vpack.c.b16 %v831, %v829
        %v926 = vpack.c.b16 %v832, %v830
        %v927 = vpack.c.b16 %v835, %v833
        %v928 = vpack.c.b16 %v836, %v834
        %v929 = vpack.c.b16 %v839, %v837
        %v930 = vpack.c.b16 %v840, %v838
        %v931 = vpack.c.b16 %v843, %v841
        %v932 = vpack.c.b16 %v844, %v842
        %v933 = vpack.c.b16 %v847, %v845
        %v934 = vpack.c.b16 %v848, %v846
        %v935 = vpack.c.b16 %v851, %v849
        %v936 = vpack.c.b16 %v852, %v850
        %v937 = vpack.c.b16 %v855, %v853
        %v938 = vpack.c.b16 %v856, %v854
        %v939 = vpack.c.b16 %v859, %v857
        %v940 = vpack.c.b16 %v860, %v858
        %v941 = vpack.c.b16 %v863, %v861
        %v942 = vpack.c.b16 %v864, %v862
        %v943 = vpack.c.b16 %v867, %v865
        %v944 = vpack.c.b16 %v868, %v866
        %v945 = vpack.c.b16 %v871, %v869
        %v946 = vpack.c.b16 %v872, %v870
        %v947 = vpack.c.b16 %v875, %v873
        %v948 = vpack.c.b16 %v876, %v874
        %v949 = vpack.c.b16 %v879, %v877
        %v950 = vpack.c.b16 %v880, %v878
        %v951 = vpack.c.b16 %v883, %v881
        %v952 = vpack.c.b16 %v884, %v882
        %v953 = vpack.c.b16 %v887, %v885
        %v954 = vpack.c.b16 %v888, %v886
        %v955 = vpack.c.b16 %v891, %v889
        %v956 = vpack.c.b16 %v892, %v890
        %v957 = vpack.c.b16 %v895, %v893
        %v958 = vpack.c.b16 %v896, %v894
        %v959 = vpack.c.b16 %v899, %v897
        %v960 = vpack.c.b16 %v900, %v898
        %v961 = vpack.c.b16 %v903, %v901
        %v962 = vpack.c.b16 %v904, %v902
        %v963 = vpack.c.b16 %v907, %v905
        %v964 = vpack.c.b16 %v908, %v906
        %v965 = vpack.c.b16 %v911, %v909
        %v966 = vpack.c.b16 %v912, %v910
        %v967 = vpack.c.b16 %v915, %v913
        %v968 = vpack.c.b16 %v916, %v914
        %v969 = vpack.c.b16 %v919, %v917
        %v970 = vpack.c.b16 %v920, %v918
        %v971 = vpack.c.b16 %v923, %v921
        %v972 = vpack.c.b16 %v924, %v922
        %1021 = vmatprep.subr.bf16.mxu0 %v940
        %1022 = vmatpush1.bf16.msra.mxu0 %v939
        %1023 = vmatprep.subr.bf16.mxu0 %v938
        %1024 = vmatpush1.bf16.msra.mxu0 %v937
        %1025 = vmatprep.subr.bf16.mxu0 %v936
        %1026 = vmatpush1.bf16.msra.mxu0 %v935
        %1027 = vmatprep.subr.bf16.mxu0 %v934
        %1028 = vmatpush1.bf16.msra.mxu0 %v933
        %1029 = vmatprep.subr.bf16.mxu0 %v932
        %1030 = vmatpush1.bf16.msra.mxu0 %v931
        %1031 = vmatprep.subr.bf16.mxu0 %v930
        %1032 = vmatpush1.bf16.msra.mxu0 %v929
        %1033 = vmatprep.subr.bf16.mxu0 %v928
        %1034 = vmatpush1.bf16.msra.mxu0 %v927
        %1035 = vmatprep.subr.bf16.mxu0 %v926
        %1036 = vmatpush1.bf16.msra.mxu0 %v925
        %1037 = vmatprep.subr.bf16.mxu0 %v956
        %1038 = vmatpush2.bf16.msra.mxu0 %v955
        %1039 = vmatprep.subr.bf16.mxu0 %v954
        %1040 = vmatpush2.bf16.msra.mxu0 %v953
        %1041 = vmatprep.subr.bf16.mxu0 %v952
        %1042 = vmatpush2.bf16.msra.mxu0 %v951
        %1043 = vmatprep.subr.bf16.mxu0 %v950
        %1044 = vmatpush2.bf16.msra.mxu0 %v949
        %1045 = vmatprep.subr.bf16.mxu0 %v948
        %1046 = vmatpush2.bf16.msra.mxu0 %v947
        %1047 = vmatprep.subr.bf16.mxu0 %v946
        %1048 = vmatpush2.bf16.msra.mxu0 %v945
        %1049 = vmatprep.subr.bf16.mxu0 %v944
        %1050 = vmatpush2.bf16.msra.mxu0 %v943
        %1051 = vmatprep.subr.bf16.mxu0 %v942
        %1052 = vmatpush2.bf16.msra.mxu0 %v941
        %1053 = vmatprep.mubr.bf16.mxu0 %v716
        %1054 = vmatmul.mubr.bf16.gmra.mxu0 %v715
        %v1055 = vpop.f32.mrf.mxu0
        %v1056 = vadd.f32 %v774, %v1055
        %v1057 = vpop.f32.mrf.mxu0
        %v1058 = vadd.f32 %v778, %v1057
        %v1059 = vpop.f32.mrf.mxu0
        %v1060 = vadd.f32 %v774, %v1059
        %v1061 = vpop.f32.mrf.mxu0
        %v1062 = vadd.f32 %v778, %v1061
        %1063 = vmatprep.mubr.bf16.mxu0 %v719
        %1064 = vmatmul.mubr.bf16.gmra.mxu0 %v718
        %v1065 = vpop.f32.mrf.mxu0
        %v1066 = vadd.f32 %v774, %v1065
        %v1067 = vpop.f32.mrf.mxu0
        %v1068 = vadd.f32 %v778, %v1067
        %v1069 = vpop.f32.mrf.mxu0
        %v1070 = vadd.f32 %v774, %v1069
        %v1071 = vpop.f32.mrf.mxu0
        %v1072 = vadd.f32 %v778, %v1071
        %1073 = vdwg.mxu0
        %1074 = vmatprep.subr.bf16.mxu0 %v972
        %1075 = vmatpush1.bf16.msra.mxu0 %v971
        %1076 = vmatprep.subr.bf16.mxu0 %v970
        %1077 = vmatpush1.bf16.msra.mxu0 %v969
        %1078 = vmatprep.subr.bf16.mxu0 %v968
        %1079 = vmatpush1.bf16.msra.mxu0 %v967
        %1080 = vmatprep.subr.bf16.mxu0 %v966
        %1081 = vmatpush1.bf16.msra.mxu0 %v965
        %1082 = vmatprep.subr.bf16.mxu0 %v964
        %1083 = vmatpush1.bf16.msra.mxu0 %v963
        %1084 = vmatprep.subr.bf16.mxu0 %v962
        %1085 = vmatpush1.bf16.msra.mxu0 %v961
        %1086 = vmatprep.subr.bf16.mxu0 %v960
        %1087 = vmatpush1.bf16.msra.mxu0 %v959
        %1088 = vmatprep.subr.bf16.mxu0 %v958
        %1089 = vmatpush1.bf16.msra.mxu0 %v957
        %1090 = vmatprep.subr.bf16.mxu0 0
        %1091 = vmatpush2.bf16.msra.mxu0 0
        %1092 = vmatprep.subr.bf16.mxu0 0
        %1093 = vmatpush2.bf16.msra.mxu0 0
        %1094 = vmatprep.subr.bf16.mxu0 0
        %1095 = vmatpush2.bf16.msra.mxu0 0
        %1096 = vmatprep.subr.bf16.mxu0 0
        %1097 = vmatpush2.bf16.msra.mxu0 0
        %1098 = vmatprep.subr.bf16.mxu0 0
        %1099 = vmatpush2.bf16.msra.mxu0 0
        %1100 = vmatprep.subr.bf16.mxu0 0
        %1101 = vmatpush2.bf16.msra.mxu0 0
        %1102 = vmatprep.subr.bf16.mxu0 0
        %1103 = vmatpush2.bf16.msra.mxu0 0
        %1104 = vmatprep.subr.bf16.mxu0 0
        %1105 = vmatpush2.bf16.msra.mxu0 0
        %1106 = vmatprep.mubr.bf16.mxu0 0
        %1107 = vmatmul.mubr.bf16.gmra.mxu0 %v717
        %v1108 = vpop.f32.mrf.mxu0
        %v1109 = vadd.f32 %v1056, %v1108
        %v1110 = vpop.f32.mrf.mxu0
        %v1111 = vadd.f32 %v1058, %v1110
        %v1112 = vpop.f32.mrf.mxu0
        %v1113 = vadd.f32 %v1060, %v1112
        %v1114 = vpop.f32.mrf.mxu0
        %v1115 = vadd.f32 %v1062, %v1114
        %1116 = vmatprep.mubr.bf16.mxu0 0
        %1117 = vmatmul.mubr.bf16.gmra.mxu0 %v720
        %v1118 = vpop.f32.mrf.mxu0
        %v1119 = vadd.f32 %v1066, %v1118
        %v1120 = vpop.f32.mrf.mxu0
        %v1121 = vadd.f32 %v1068, %v1120
        %v1122 = vpop.f32.mrf.mxu0
        %v1123 = vadd.f32 %v1070, %v1122
        %v1124 = vpop.f32.mrf.mxu0
        %v1125 = vadd.f32 %v1072, %v1124
        %1126 = vdwg.mxu0
        %v1127 = vxor.u32 %v1109, 2147483648
        %v1128 = vxor.u32 %v1111, 2147483648
        %v1129 = vxor.u32 %v1113, 2147483648
        %v1130 = vxor.u32 %v1115, 2147483648
        %v1131 = vxor.u32 %v1119, 2147483648
        %v1132 = vxor.u32 %v1121, 2147483648
        %v1133 = vxor.u32 %v1123, 2147483648
        %v1134 = vxor.u32 %v1125, 2147483648
        %v1135 = vmul.f32 %v1127, 1.442695
        %v1136 = vpow.pop %v1135
        %v1137 = vmul.f32 %v1128, 1.442695
        %v1138 = vpow.pop %v1137
        %v1139 = vmul.f32 %v1129, 1.442695
        %v1140 = vpow.pop %v1139
        %v1141 = vmul.f32 %v1130, 1.442695
        %v1142 = vpow.pop %v1141
        %v1143 = vmul.f32 %v1131, 1.442695
        %v1144 = vpow.pop %v1143
        %v1145 = vmul.f32 %v1132, 1.442695
        %v1146 = vpow.pop %v1145
        %v1147 = vmul.f32 %v1133, 1.442695
        %v1148 = vpow.pop %v1147
        %v1149 = vmul.f32 %v1134, 1.442695
        %v1150 = vpow.pop %v1149
        %v1151 = vadd.f32 %v1136, 1.0
        %v1152 = vadd.f32 %v1138, 1.0
        %v1153 = vadd.f32 %v1140, 1.0
        %v1154 = vadd.f32 %v1142, 1.0
        %v1155 = vadd.f32 %v1144, 1.0
        %v1156 = vadd.f32 %v1146, 1.0
        %v1157 = vadd.f32 %v1148, 1.0
        %v1158 = vadd.f32 %v1150, 1.0
        %v1159 = vrcp.pop %v1151
        %v1160 = vmul.f32 1.0, %v1159
        %v1161 = vrcp.pop %v1152
        %v1162 = vmul.f32 1.0, %v1161
        %v1163 = vrcp.pop %v1153
        %v1164 = vmul.f32 1.0, %v1163
        %v1165 = vrcp.pop %v1154
        %v1166 = vmul.f32 1.0, %v1165
        %v1167 = vrcp.pop %v1155
        %v1168 = vmul.f32 1.0, %v1167
        %v1169 = vrcp.pop %v1156
        %v1170 = vmul.f32 1.0, %v1169
        %v1171 = vrcp.pop %v1157
        %v1172 = vmul.f32 1.0, %v1171
        %v1173 = vrcp.pop %v1158
        %v1174 = vmul.f32 1.0, %v1173
        %v1175 = vmul.f32 %v1109, %v1160
        %v1176 = vmul.f32 %v1111, %v1162
        %v1177 = vmul.f32 %v1113, %v1164
        %v1178 = vmul.f32 %v1115, %v1166
        %v1179 = vmul.f32 %v1119, %v1168
        %v1180 = vmul.f32 %v1121, %v1170
        %v1181 = vmul.f32 %v1123, %v1172
        %v1182 = vmul.f32 %v1125, %v1174
        %v1183 = vadd.f32 %v1175, %v1176
        %1184 = vadd.xlane.f32.xlu0 %v1183
        %v1185 = vpop.xlane.xlu0 %1184
        %v1186 = vadd.f32 %v1177, %v1178
        %1187 = vadd.xlane.f32.xlu0 %v1186
        %v1188 = vpop.xlane.xlu0 %1187
        %v1189 = vadd.f32 %v1179, %v1180
        %1190 = vadd.xlane.f32.xlu0 %v1189
        %v1191 = vpop.xlane.xlu0 %1190
        %v1192 = vadd.f32 %v1181, %v1182
        %1193 = vadd.xlane.f32.xlu0 %v1192
        %v1194 = vpop.xlane.xlu0 %1193
        %v1195 = vmul.f32 %v1185, 0.00390625
        %v1196 = vmul.f32 %v1188, 0.00390625
        %v1197 = vmul.f32 %v1191, 0.00390625
        %v1198 = vmul.f32 %v1194, 0.00390625
        %v1199 = vsub.f32 %v1175, %v1195
        %v1200 = vsub.f32 %v1176, %v1195
        %v1201 = vsub.f32 %v1177, %v1196
        %v1202 = vsub.f32 %v1178, %v1196
        %v1203 = vsub.f32 %v1179, %v1197
        %v1204 = vsub.f32 %v1180, %v1197
        %v1205 = vsub.f32 %v1181, %v1198
        %v1206 = vsub.f32 %v1182, %v1198
        %v1207 = vmul.f32 %v1199, %v1199
        %v1208 = vmul.f32 %v1200, %v1200
        %v1209 = vmul.f32 %v1201, %v1201
        %v1210 = vmul.f32 %v1202, %v1202
        %v1211 = vmul.f32 %v1203, %v1203
        %v1212 = vmul.f32 %v1204, %v1204
        %v1213 = vmul.f32 %v1205, %v1205
        %v1214 = vmul.f32 %v1206, %v1206
        %v1215 = vadd.f32 %v1207, %v1208
        %1216 = vadd.xlane.f32.xlu0 %v1215
        %v1217 = vpop.xlane.xlu0 %1216
        %v1218 = vadd.f32 %v1209, %v1210
        %1219 = vadd.xlane.f32.xlu0 %v1218
        %v1220 = vpop.xlane.xlu0 %1219
        %v1221 = vadd.f32 %v1211, %v1212
        %1222 = vadd.xlane.f32.xlu0 %v1221
        %v1223 = vpop.xlane.xlu0 %1222
        %v1224 = vadd.f32 %v1213, %v1214
        %1225 = vadd.xlane.f32.xlu0 %v1224
        %v1226 = vpop.xlane.xlu0 %1225
        %v1227 = vmul.f32 %v1217, 0.00390625
        %v1228 = vmul.f32 %v1220, 0.00390625
        %v1229 = vmul.f32 %v1223, 0.00390625
        %v1230 = vmul.f32 %v1226, 0.00390625
        %v1231 = vadd.f32 %v1227, 0.1
        %v1232 = vadd.f32 %v1228, 0.1
        %v1233 = vadd.f32 %v1229, 0.1
        %v1234 = vadd.f32 %v1230, 0.1
        %v1235 = vrsqrt.pop %v1231
        %v1236 = vrsqrt.pop %v1232
        %v1237 = vrsqrt.pop %v1233
        %v1238 = vrsqrt.pop %v1234
        %v1239 = vmul.f32 %v1199, %v1235
        %v1240 = vmul.f32 %v1200, %v1235
        %v1241 = vmul.f32 %v1201, %v1236
        %v1242 = vmul.f32 %v1202, %v1236
        %v1243 = vmul.f32 %v1203, %v1237
        %v1244 = vmul.f32 %v1204, %v1237
        %v1245 = vmul.f32 %v1205, %v1238
        %v1246 = vmul.f32 %v1206, %v1238
        %v1247 = vld [vmem:[%s4] sm:$0x3]
        %v1249 = vlaneseq
        %v1250 = vshrl.u32 %v1249, 7
        %v1251 = vsub.s32 0, %v1250
        %v1252 = vrot.slane %v1247, %v1251
        %v1253 = vlaneseq
        %v1254 = vshrl.u32 %v1253, 7
        %v1255 = vsub.s32 1, %v1254
        %v1256 = vrot.slane %v1247, %v1255
        %v1259 = vmul.f32 %v1239, %v1252
        %v1260 = vmul.f32 %v1240, %v1256
        %v1261 = vmul.f32 %v1241, %v1252
        %v1262 = vmul.f32 %v1242, %v1256
        %v1263 = vmul.f32 %v1243, %v1252
        %v1264 = vmul.f32 %v1244, %v1256
        %v1265 = vmul.f32 %v1245, %v1252
        %v1266 = vmul.f32 %v1246, %v1256
        %v1267 = vld [vmem:[%s5] sm:$0x3]
        %v1269 = vlaneseq
        %v1270 = vshrl.u32 %v1269, 7
        %v1271 = vsub.s32 0, %v1270
        %v1272 = vrot.slane %v1267, %v1271
        %v1273 = vlaneseq
        %v1274 = vshrl.u32 %v1273, 7
        %v1275 = vsub.s32 1, %v1274
        %v1276 = vrot.slane %v1267, %v1275
        %v1279 = vadd.f32 %v1259, %v1272
        %v1280 = vadd.f32 %v1260, %v1276
        %v1281 = vadd.f32 %v1261, %v1272
        %v1282 = vadd.f32 %v1262, %v1276
        %v1283 = vadd.f32 %v1263, %v1272
        %v1284 = vadd.f32 %v1264, %v1276
        %v1285 = vadd.f32 %v1265, %v1272
        %v1286 = vadd.f32 %v1266, %v1276
        %v1287 = vpack.c.bf16 %v1281, %v1279
        %v1288 = vpack.c.bf16 %v1282, %v1280
        %v1289 = vpack.c.bf16 %v1285, %v1283
        %v1290 = vpack.c.bf16 %v1286, %v1284
        %v1291 = vld [vmem:[#allocation8] sm:$0xff]
        %v1292 = vld [vmem:[#allocation8 + $0x8] sm:$0xff]
        %v1293 = vld [vmem:[#allocation8 + $0x10] sm:$0xff]
        %v1294 = vld [vmem:[#allocation8 + $0x18] sm:$0xff]
        %v1295 = vld [vmem:[#allocation8 + $0x20] sm:$0xff]
        %v1296 = vld [vmem:[#allocation8 + $0x28] sm:$0xff]
        %v1297 = vld [vmem:[#allocation8 + $0x30] sm:$0xff]
        %v1298 = vld [vmem:[#allocation8 + $0x38] sm:$0xff]
        %v1299 = vld [vmem:[#allocation8 + $0x40] sm:$0xff]
        %v1300 = vld [vmem:[#allocation8 + $0x48] sm:$0xff]
        %v1301 = vld [vmem:[#allocation8 + $0x50] sm:$0xff]
        %v1302 = vld [vmem:[#allocation8 + $0x58] sm:$0xff]
        %v1303 = vld [vmem:[#allocation8 + $0x60] sm:$0xff]
        %v1304 = vld [vmem:[#allocation8 + $0x68] sm:$0xff]
        %v1305 = vld [vmem:[#allocation8 + $0x70] sm:$0xff]
        %v1306 = vld [vmem:[#allocation8 + $0x78] sm:$0xff]
        %v1307 = vld [vmem:[#allocation8 + $0x80] sm:$0xff]
        %v1308 = vld [vmem:[#allocation8 + $0x88] sm:$0xff]
        %v1309 = vld [vmem:[#allocation8 + $0x90] sm:$0xff]
        %v1310 = vld [vmem:[#allocation8 + $0x98] sm:$0xff]
        %v1311 = vld [vmem:[#allocation8 + $0xa0] sm:$0xff]
        %v1312 = vld [vmem:[#allocation8 + $0xa8] sm:$0xff]
        %v1313 = vld [vmem:[#allocation8 + $0xb0] sm:$0xff]
        %v1314 = vld [vmem:[#allocation8 + $0xb8] sm:$0xff]
        %v1315 = vld [vmem:[#allocation8 + $0xc0] sm:$0xff]
        %v1316 = vld [vmem:[#allocation8 + $0xc8] sm:$0xff]
        %v1317 = vld [vmem:[#allocation8 + $0xd0] sm:$0xff]
        %v1318 = vld [vmem:[#allocation8 + $0xd8] sm:$0xff]
        %v1319 = vld [vmem:[#allocation8 + $0xe0] sm:$0xff]
        %v1320 = vld [vmem:[#allocation8 + $0xe8] sm:$0xff]
        %v1321 = vld [vmem:[#allocation8 + $0xf0] sm:$0xff]
        %v1322 = vld [vmem:[#allocation8 + $0xf8] sm:$0xff]
        %v1323 = vld [vmem:[%s7] sm:$0x3]
        %v1325 = vlaneseq
        %v1326 = vshrl.u32 %v1325, 7
        %v1327 = vsub.s32 0, %v1326
        %v1328 = vrot.slane %v1323, %v1327
        %v1329 = vlaneseq
        %v1330 = vshrl.u32 %v1329, 7
        %v1331 = vsub.s32 1, %v1330
        %v1332 = vrot.slane %v1323, %v1331
        %v1367 = vunpack.c.l.b16 %v1291
        %v1368 = vunpack.c.h.b16 %v1291
        %v1369 = vunpack.c.l.b16 %v1292
        %v1370 = vunpack.c.h.b16 %v1292
        %v1371 = vunpack.c.l.b16 %v1293
        %v1372 = vunpack.c.h.b16 %v1293
        %v1373 = vunpack.c.l.b16 %v1294
        %v1374 = vunpack.c.h.b16 %v1294
        %v1375 = vunpack.c.l.b16 %v1295
        %v1376 = vunpack.c.h.b16 %v1295
        %v1377 = vunpack.c.l.b16 %v1296
        %v1378 = vunpack.c.h.b16 %v1296
        %v1379 = vunpack.c.l.b16 %v1297
        %v1380 = vunpack.c.h.b16 %v1297
        %v1381 = vunpack.c.l.b16 %v1298
        %v1382 = vunpack.c.h.b16 %v1298
        %v1383 = vunpack.c.l.b16 %v1299
        %v1384 = vunpack.c.h.b16 %v1299
        %v1385 = vunpack.c.l.b16 %v1300
        %v1386 = vunpack.c.h.b16 %v1300
        %v1387 = vunpack.c.l.b16 %v1301
        %v1388 = vunpack.c.h.b16 %v1301
        %v1389 = vunpack.c.l.b16 %v1302
        %v1390 = vunpack.c.h.b16 %v1302
        %v1391 = vunpack.c.l.b16 %v1303
        %v1392 = vunpack.c.h.b16 %v1303
        %v1393 = vunpack.c.l.b16 %v1304
        %v1394 = vunpack.c.h.b16 %v1304
        %v1395 = vunpack.c.l.b16 %v1305
        %v1396 = vunpack.c.h.b16 %v1305
        %v1397 = vunpack.c.l.b16 %v1306
        %v1398 = vunpack.c.h.b16 %v1306
        %v1399 = vunpack.c.l.b16 %v1307
        %v1400 = vunpack.c.h.b16 %v1307
        %v1401 = vunpack.c.l.b16 %v1308
        %v1402 = vunpack.c.h.b16 %v1308
        %v1403 = vunpack.c.l.b16 %v1309
        %v1404 = vunpack.c.h.b16 %v1309
        %v1405 = vunpack.c.l.b16 %v1310
        %v1406 = vunpack.c.h.b16 %v1310
        %v1407 = vunpack.c.l.b16 %v1311
        %v1408 = vunpack.c.h.b16 %v1311
        %v1409 = vunpack.c.l.b16 %v1312
        %v1410 = vunpack.c.h.b16 %v1312
        %v1411 = vunpack.c.l.b16 %v1313
        %v1412 = vunpack.c.h.b16 %v1313
        %v1413 = vunpack.c.l.b16 %v1314
        %v1414 = vunpack.c.h.b16 %v1314
        %v1415 = vunpack.c.l.b16 %v1315
        %v1416 = vunpack.c.h.b16 %v1315
        %v1417 = vunpack.c.l.b16 %v1316
        %v1418 = vunpack.c.h.b16 %v1316
        %v1419 = vunpack.c.l.b16 %v1317
        %v1420 = vunpack.c.h.b16 %v1317
        %v1421 = vunpack.c.l.b16 %v1318
        %v1422 = vunpack.c.h.b16 %v1318
        %v1423 = vunpack.c.l.b16 %v1319
        %v1424 = vunpack.c.h.b16 %v1319
        %v1425 = vunpack.c.l.b16 %v1320
        %v1426 = vunpack.c.h.b16 %v1320
        %v1427 = vunpack.c.l.b16 %v1321
        %v1428 = vunpack.c.h.b16 %v1321
        %v1429 = vunpack.c.l.b16 %v1322
        %v1430 = vunpack.c.h.b16 %v1322
        %v1431 = vpack.c.b16 %v1369, %v1367
        %v1432 = vpack.c.b16 %v1370, %v1368
        %v1433 = vpack.c.b16 %v1373, %v1371
        %v1434 = vpack.c.b16 %v1374, %v1372
        %v1435 = vpack.c.b16 %v1377, %v1375
        %v1436 = vpack.c.b16 %v1378, %v1376
        %v1437 = vpack.c.b16 %v1381, %v1379
        %v1438 = vpack.c.b16 %v1382, %v1380
        %v1439 = vpack.c.b16 %v1385, %v1383
        %v1440 = vpack.c.b16 %v1386, %v1384
        %v1441 = vpack.c.b16 %v1389, %v1387
        %v1442 = vpack.c.b16 %v1390, %v1388
        %v1443 = vpack.c.b16 %v1393, %v1391
        %v1444 = vpack.c.b16 %v1394, %v1392
        %v1445 = vpack.c.b16 %v1397, %v1395
        %v1446 = vpack.c.b16 %v1398, %v1396
        %v1447 = vpack.c.b16 %v1401, %v1399
        %v1448 = vpack.c.b16 %v1402, %v1400
        %v1449 = vpack.c.b16 %v1405, %v1403
        %v1450 = vpack.c.b16 %v1406, %v1404
        %v1451 = vpack.c.b16 %v1409, %v1407
        %v1452 = vpack.c.b16 %v1410, %v1408
        %v1453 = vpack.c.b16 %v1413, %v1411
        %v1454 = vpack.c.b16 %v1414, %v1412
        %v1455 = vpack.c.b16 %v1417, %v1415
        %v1456 = vpack.c.b16 %v1418, %v1416
        %v1457 = vpack.c.b16 %v1421, %v1419
        %v1458 = vpack.c.b16 %v1422, %v1420
        %v1459 = vpack.c.b16 %v1425, %v1423
        %v1460 = vpack.c.b16 %v1426, %v1424
        %v1461 = vpack.c.b16 %v1429, %v1427
        %v1462 = vpack.c.b16 %v1430, %v1428
        %1495 = vmatprep.subr.bf16.mxu0 %v1446
        %1496 = vmatpush1.bf16.msra.mxu0 %v1445
        %1497 = vmatprep.subr.bf16.mxu0 %v1444
        %1498 = vmatpush1.bf16.msra.mxu0 %v1443
        %1499 = vmatprep.subr.bf16.mxu0 %v1442
        %1500 = vmatpush1.bf16.msra.mxu0 %v1441
        %1501 = vmatprep.subr.bf16.mxu0 %v1440
        %1502 = vmatpush1.bf16.msra.mxu0 %v1439
        %1503 = vmatprep.subr.bf16.mxu0 %v1438
        %1504 = vmatpush1.bf16.msra.mxu0 %v1437
        %1505 = vmatprep.subr.bf16.mxu0 %v1436
        %1506 = vmatpush1.bf16.msra.mxu0 %v1435
        %1507 = vmatprep.subr.bf16.mxu0 %v1434
        %1508 = vmatpush1.bf16.msra.mxu0 %v1433
        %1509 = vmatprep.subr.bf16.mxu0 %v1432
        %1510 = vmatpush1.bf16.msra.mxu0 %v1431
        %1511 = vmatprep.subr.bf16.mxu0 %v1462
        %1512 = vmatpush2.bf16.msra.mxu0 %v1461
        %1513 = vmatprep.subr.bf16.mxu0 %v1460
        %1514 = vmatpush2.bf16.msra.mxu0 %v1459
        %1515 = vmatprep.subr.bf16.mxu0 %v1458
        %1516 = vmatpush2.bf16.msra.mxu0 %v1457
        %1517 = vmatprep.subr.bf16.mxu0 %v1456
        %1518 = vmatpush2.bf16.msra.mxu0 %v1455
        %1519 = vmatprep.subr.bf16.mxu0 %v1454
        %1520 = vmatpush2.bf16.msra.mxu0 %v1453
        %1521 = vmatprep.subr.bf16.mxu0 %v1452
        %1522 = vmatpush2.bf16.msra.mxu0 %v1451
        %1523 = vmatprep.subr.bf16.mxu0 %v1450
        %1524 = vmatpush2.bf16.msra.mxu0 %v1449
        %1525 = vmatprep.subr.bf16.mxu0 %v1448
        %1526 = vmatpush2.bf16.msra.mxu0 %v1447
        %1527 = vmatprep.mubr.bf16.mxu0 %v1288
        %1528 = vmatmul.mubr.bf16.gmra.mxu0 %v1287
        %v1529 = vpop.f32.mrf.mxu0
        %v1530 = vadd.f32 %v1328, %v1529
        %v1531 = vpop.f32.mrf.mxu0
        %v1532 = vadd.f32 %v1332, %v1531
        %v1533 = vpop.f32.mrf.mxu0
        %v1534 = vadd.f32 %v1328, %v1533
        %v1535 = vpop.f32.mrf.mxu0
        %v1536 = vadd.f32 %v1332, %v1535
        %1537 = vmatprep.mubr.bf16.mxu0 %v1290
        %1538 = vmatmul.mubr.bf16.gmra.mxu0 %v1289
        %v1539 = vpop.f32.mrf.mxu0
        %v1540 = vadd.f32 %v1328, %v1539
        %v1541 = vpop.f32.mrf.mxu0
        %v1542 = vadd.f32 %v1332, %v1541
        %v1543 = vpop.f32.mrf.mxu0
        %v1544 = vadd.f32 %v1328, %v1543
        %v1545 = vpop.f32.mrf.mxu0
        %v1546 = vadd.f32 %v1332, %v1545
        %1547 = vdwg.mxu0
        %v1548 = vadd.f32 %v1530, %v1279
        %v1549 = vadd.f32 %v1532, %v1280
        %v1550 = vadd.f32 %v1534, %v1281
        %v1551 = vadd.f32 %v1536, %v1282
        %v1552 = vadd.f32 %v1540, %v1283
        %v1553 = vadd.f32 %v1542, %v1284
        %v1554 = vadd.f32 %v1544, %v1285
        %v1555 = vadd.f32 %v1546, %v1286
        %v1556 = vxor.u32 %v1548, 2147483648
        %v1557 = vxor.u32 %v1549, 2147483648
        %v1558 = vxor.u32 %v1550, 2147483648
        %v1559 = vxor.u32 %v1551, 2147483648
        %v1560 = vxor.u32 %v1552, 2147483648
        %v1561 = vxor.u32 %v1553, 2147483648
        %v1562 = vxor.u32 %v1554, 2147483648
        %v1563 = vxor.u32 %v1555, 2147483648
        %v1564 = vmul.f32 %v1556, 1.442695
        %v1565 = vpow.pop %v1564
        %v1566 = vmul.f32 %v1557, 1.442695
        %v1567 = vpow.pop %v1566
        %v1568 = vmul.f32 %v1558, 1.442695
        %v1569 = vpow.pop %v1568
        %v1570 = vmul.f32 %v1559, 1.442695
        %v1571 = vpow.pop %v1570
        %v1572 = vmul.f32 %v1560, 1.442695
        %v1573 = vpow.pop %v1572
        %v1574 = vmul.f32 %v1561, 1.442695
        %v1575 = vpow.pop %v1574
        %v1576 = vmul.f32 %v1562, 1.442695
        %v1577 = vpow.pop %v1576
        %v1578 = vmul.f32 %v1563, 1.442695
        %v1579 = vpow.pop %v1578
        %v1580 = vadd.f32 %v1565, 1.0
        %v1581 = vadd.f32 %v1567, 1.0
        %v1582 = vadd.f32 %v1569, 1.0
        %v1583 = vadd.f32 %v1571, 1.0
        %v1584 = vadd.f32 %v1573, 1.0
        %v1585 = vadd.f32 %v1575, 1.0
        %v1586 = vadd.f32 %v1577, 1.0
        %v1587 = vadd.f32 %v1579, 1.0
        %v1588 = vrcp.pop %v1580
        %v1589 = vmul.f32 1.0, %v1588
        %v1590 = vrcp.pop %v1581
        %v1591 = vmul.f32 1.0, %v1590
        %v1592 = vrcp.pop %v1582
        %v1593 = vmul.f32 1.0, %v1592
        %v1594 = vrcp.pop %v1583
        %v1595 = vmul.f32 1.0, %v1594
        %v1596 = vrcp.pop %v1584
        %v1597 = vmul.f32 1.0, %v1596
        %v1598 = vrcp.pop %v1585
        %v1599 = vmul.f32 1.0, %v1598
        %v1600 = vrcp.pop %v1586
        %v1601 = vmul.f32 1.0, %v1600
        %v1602 = vrcp.pop %v1587
        %v1603 = vmul.f32 1.0, %v1602
        %v1604 = vmul.f32 %v1548, %v1589
        %v1605 = vmul.f32 %v1549, %v1591
        %v1606 = vmul.f32 %v1550, %v1593
        %v1607 = vmul.f32 %v1551, %v1595
        %v1608 = vmul.f32 %v1552, %v1597
        %v1609 = vmul.f32 %v1553, %v1599
        %v1610 = vmul.f32 %v1554, %v1601
        %v1611 = vmul.f32 %v1555, %v1603
        %v1612 = vadd.f32 %v1604, %v1605
        %1613 = vadd.xlane.f32.xlu0 %v1612
        %v1614 = vpop.xlane.xlu0 %1613
        %v1615 = vadd.f32 %v1606, %v1607
        %1616 = vadd.xlane.f32.xlu0 %v1615
        %v1617 = vpop.xlane.xlu0 %1616
        %v1618 = vadd.f32 %v1608, %v1609
        %1619 = vadd.xlane.f32.xlu0 %v1618
        %v1620 = vpop.xlane.xlu0 %1619
        %v1621 = vadd.f32 %v1610, %v1611
        %1622 = vadd.xlane.f32.xlu0 %v1621
        %v1623 = vpop.xlane.xlu0 %1622
        %v1624 = vmul.f32 %v1614, 0.00390625
        %v1625 = vmul.f32 %v1617, 0.00390625
        %v1626 = vmul.f32 %v1620, 0.00390625
        %v1627 = vmul.f32 %v1623, 0.00390625
        %v1628 = vsub.f32 %v1604, %v1624
        %v1629 = vsub.f32 %v1605, %v1624
        %v1630 = vsub.f32 %v1606, %v1625
        %v1631 = vsub.f32 %v1607, %v1625
        %v1632 = vsub.f32 %v1608, %v1626
        %v1633 = vsub.f32 %v1609, %v1626
        %v1634 = vsub.f32 %v1610, %v1627
        %v1635 = vsub.f32 %v1611, %v1627
        %v1636 = vmul.f32 %v1628, %v1628
        %v1637 = vmul.f32 %v1629, %v1629
        %v1638 = vmul.f32 %v1630, %v1630
        %v1639 = vmul.f32 %v1631, %v1631
        %v1640 = vmul.f32 %v1632, %v1632
        %v1641 = vmul.f32 %v1633, %v1633
        %v1642 = vmul.f32 %v1634, %v1634
        %v1643 = vmul.f32 %v1635, %v1635
        %v1644 = vadd.f32 %v1636, %v1637
        %1645 = vadd.xlane.f32.xlu0 %v1644
        %v1646 = vpop.xlane.xlu0 %1645
        %v1647 = vadd.f32 %v1638, %v1639
        %1648 = vadd.xlane.f32.xlu0 %v1647
        %v1649 = vpop.xlane.xlu0 %1648
        %v1650 = vadd.f32 %v1640, %v1641
        %1651 = vadd.xlane.f32.xlu0 %v1650
        %v1652 = vpop.xlane.xlu0 %1651
        %v1653 = vadd.f32 %v1642, %v1643
        %1654 = vadd.xlane.f32.xlu0 %v1653
        %v1655 = vpop.xlane.xlu0 %1654
        %v1656 = vmul.f32 %v1646, 0.00390625
        %v1657 = vmul.f32 %v1649, 0.00390625
        %v1658 = vmul.f32 %v1652, 0.00390625
        %v1659 = vmul.f32 %v1655, 0.00390625
        %v1660 = vadd.f32 %v1656, 0.1
        %v1661 = vadd.f32 %v1657, 0.1
        %v1662 = vadd.f32 %v1658, 0.1
        %v1663 = vadd.f32 %v1659, 0.1
        %v1664 = vrsqrt.pop %v1660
        %v1665 = vrsqrt.pop %v1661
        %v1666 = vrsqrt.pop %v1662
        %v1667 = vrsqrt.pop %v1663
        %v1668 = vmul.f32 %v1628, %v1664
        %v1669 = vmul.f32 %v1629, %v1664
        %v1670 = vmul.f32 %v1630, %v1665
        %v1671 = vmul.f32 %v1631, %v1665
        %v1672 = vmul.f32 %v1632, %v1666
        %v1673 = vmul.f32 %v1633, %v1666
        %v1674 = vmul.f32 %v1634, %v1667
        %v1675 = vmul.f32 %v1635, %v1667
        %v1676 = vld [vmem:[%s8] sm:$0x3]
        %v1678 = vlaneseq
        %v1679 = vshrl.u32 %v1678, 7
        %v1680 = vsub.s32 0, %v1679
        %v1681 = vrot.slane %v1676, %v1680
        %v1682 = vlaneseq
        %v1683 = vshrl.u32 %v1682, 7
        %v1684 = vsub.s32 1, %v1683
        %v1685 = vrot.slane %v1676, %v1684
        %v1688 = vmul.f32 %v1668, %v1681
        %v1689 = vmul.f32 %v1669, %v1685
        %v1690 = vmul.f32 %v1670, %v1681
        %v1691 = vmul.f32 %v1671, %v1685
        %v1692 = vmul.f32 %v1672, %v1681
        %v1693 = vmul.f32 %v1673, %v1685
        %v1694 = vmul.f32 %v1674, %v1681
        %v1695 = vmul.f32 %v1675, %v1685
        %v1696 = vld [vmem:[%s9] sm:$0x3]
        %v1698 = vlaneseq
        %v1699 = vshrl.u32 %v1698, 7
        %v1700 = vsub.s32 0, %v1699
        %v1701 = vrot.slane %v1696, %v1700
        %v1702 = vlaneseq
        %v1703 = vshrl.u32 %v1702, 7
        %v1704 = vsub.s32 1, %v1703
        %v1705 = vrot.slane %v1696, %v1704
        %v1708 = vadd.f32 %v1688, %v1701
        %v1709 = vadd.f32 %v1689, %v1705
        %v1710 = vadd.f32 %v1690, %v1701
        %v1711 = vadd.f32 %v1691, %v1705
        %v1712 = vadd.f32 %v1692, %v1701
        %v1713 = vadd.f32 %v1693, %v1705
        %v1714 = vadd.f32 %v1694, %v1701
        %v1715 = vadd.f32 %v1695, %v1705
        %v1716 = vpack.c.bf16 %v1710, %v1708
        %v1717 = vpack.c.bf16 %v1711, %v1709
        %v1718 = vpack.c.bf16 %v1714, %v1712
        %v1719 = vpack.c.bf16 %v1715, %v1713
        %v1720 = vld [vmem:[#allocation10] sm:$0xff]
        %v1721 = vld [vmem:[#allocation10 + $0x8] sm:$0xff]
        %v1722 = vld [vmem:[#allocation10 + $0x10] sm:$0xff]
        %v1723 = vld [vmem:[#allocation10 + $0x18] sm:$0xff]
        %v1724 = vld [vmem:[#allocation10 + $0x20] sm:$0xff]
        %v1725 = vld [vmem:[#allocation10 + $0x28] sm:$0xff]
        %v1726 = vld [vmem:[#allocation10 + $0x30] sm:$0xff]
        %v1727 = vld [vmem:[#allocation10 + $0x38] sm:$0xff]
        %v1728 = vld [vmem:[#allocation10 + $0x40] sm:$0xff]
        %v1729 = vld [vmem:[#allocation10 + $0x48] sm:$0xff]
        %v1730 = vld [vmem:[#allocation10 + $0x50] sm:$0xff]
        %v1731 = vld [vmem:[#allocation10 + $0x58] sm:$0xff]
        %v1732 = vld [vmem:[#allocation10 + $0x60] sm:$0xff]
        %v1733 = vld [vmem:[#allocation10 + $0x68] sm:$0xff]
        %v1734 = vld [vmem:[#allocation10 + $0x70] sm:$0xff]
        %v1735 = vld [vmem:[#allocation10 + $0x78] sm:$0xff]
        %v1736 = vld [vmem:[#allocation10 + $0x80] sm:$0xff]
        %v1737 = vld [vmem:[#allocation10 + $0x88] sm:$0xff]
        %v1738 = vld [vmem:[#allocation10 + $0x90] sm:$0xff]
        %v1739 = vld [vmem:[#allocation10 + $0x98] sm:$0xff]
        %v1740 = vld [vmem:[#allocation10 + $0xa0] sm:$0xff]
        %v1741 = vld [vmem:[#allocation10 + $0xa8] sm:$0xff]
        %v1742 = vld [vmem:[#allocation10 + $0xb0] sm:$0xff]
        %v1743 = vld [vmem:[#allocation10 + $0xb8] sm:$0xff]
        %v1744 = vld [vmem:[#allocation10 + $0xc0] sm:$0xff]
        %v1745 = vld [vmem:[#allocation10 + $0xc8] sm:$0xff]
        %v1746 = vld [vmem:[#allocation10 + $0xd0] sm:$0xff]
        %v1747 = vld [vmem:[#allocation10 + $0xd8] sm:$0xff]
        %v1748 = vld [vmem:[#allocation10 + $0xe0] sm:$0xff]
        %v1749 = vld [vmem:[#allocation10 + $0xe8] sm:$0xff]
        %v1750 = vld [vmem:[#allocation10 + $0xf0] sm:$0xff]
        %v1751 = vld [vmem:[#allocation10 + $0xf8] sm:$0xff]
        %v1752 = vld [vmem:[%s11] sm:$0x3]
        %v1754 = vlaneseq
        %v1755 = vshrl.u32 %v1754, 7
        %v1756 = vsub.s32 0, %v1755
        %v1757 = vrot.slane %v1752, %v1756
        %v1758 = vlaneseq
        %v1759 = vshrl.u32 %v1758, 7
        %v1760 = vsub.s32 1, %v1759
        %v1761 = vrot.slane %v1752, %v1760
        %v1796 = vunpack.c.l.b16 %v1720
        %v1797 = vunpack.c.h.b16 %v1720
        %v1798 = vunpack.c.l.b16 %v1721
        %v1799 = vunpack.c.h.b16 %v1721
        %v1800 = vunpack.c.l.b16 %v1722
        %v1801 = vunpack.c.h.b16 %v1722
        %v1802 = vunpack.c.l.b16 %v1723
        %v1803 = vunpack.c.h.b16 %v1723
        %v1804 = vunpack.c.l.b16 %v1724
        %v1805 = vunpack.c.h.b16 %v1724
        %v1806 = vunpack.c.l.b16 %v1725
        %v1807 = vunpack.c.h.b16 %v1725
        %v1808 = vunpack.c.l.b16 %v1726
        %v1809 = vunpack.c.h.b16 %v1726
        %v1810 = vunpack.c.l.b16 %v1727
        %v1811 = vunpack.c.h.b16 %v1727
        %v1812 = vunpack.c.l.b16 %v1728
        %v1813 = vunpack.c.h.b16 %v1728
        %v1814 = vunpack.c.l.b16 %v1729
        %v1815 = vunpack.c.h.b16 %v1729
        %v1816 = vunpack.c.l.b16 %v1730
        %v1817 = vunpack.c.h.b16 %v1730
        %v1818 = vunpack.c.l.b16 %v1731
        %v1819 = vunpack.c.h.b16 %v1731
        %v1820 = vunpack.c.l.b16 %v1732
        %v1821 = vunpack.c.h.b16 %v1732
        %v1822 = vunpack.c.l.b16 %v1733
        %v1823 = vunpack.c.h.b16 %v1733
        %v1824 = vunpack.c.l.b16 %v1734
        %v1825 = vunpack.c.h.b16 %v1734
        %v1826 = vunpack.c.l.b16 %v1735
        %v1827 = vunpack.c.h.b16 %v1735
        %v1828 = vunpack.c.l.b16 %v1736
        %v1829 = vunpack.c.h.b16 %v1736
        %v1830 = vunpack.c.l.b16 %v1737
        %v1831 = vunpack.c.h.b16 %v1737
        %v1832 = vunpack.c.l.b16 %v1738
        %v1833 = vunpack.c.h.b16 %v1738
        %v1834 = vunpack.c.l.b16 %v1739
        %v1835 = vunpack.c.h.b16 %v1739
        %v1836 = vunpack.c.l.b16 %v1740
        %v1837 = vunpack.c.h.b16 %v1740
        %v1838 = vunpack.c.l.b16 %v1741
        %v1839 = vunpack.c.h.b16 %v1741
        %v1840 = vunpack.c.l.b16 %v1742
        %v1841 = vunpack.c.h.b16 %v1742
        %v1842 = vunpack.c.l.b16 %v1743
        %v1843 = vunpack.c.h.b16 %v1743
        %v1844 = vunpack.c.l.b16 %v1744
        %v1845 = vunpack.c.h.b16 %v1744
        %v1846 = vunpack.c.l.b16 %v1745
        %v1847 = vunpack.c.h.b16 %v1745
        %v1848 = vunpack.c.l.b16 %v1746
        %v1849 = vunpack.c.h.b16 %v1746
        %v1850 = vunpack.c.l.b16 %v1747
        %v1851 = vunpack.c.h.b16 %v1747
        %v1852 = vunpack.c.l.b16 %v1748
        %v1853 = vunpack.c.h.b16 %v1748
        %v1854 = vunpack.c.l.b16 %v1749
        %v1855 = vunpack.c.h.b16 %v1749
        %v1856 = vunpack.c.l.b16 %v1750
        %v1857 = vunpack.c.h.b16 %v1750
        %v1858 = vunpack.c.l.b16 %v1751
        %v1859 = vunpack.c.h.b16 %v1751
        %v1860 = vpack.c.b16 %v1798, %v1796
        %v1861 = vpack.c.b16 %v1799, %v1797
        %v1862 = vpack.c.b16 %v1802, %v1800
        %v1863 = vpack.c.b16 %v1803, %v1801
        %v1864 = vpack.c.b16 %v1806, %v1804
        %v1865 = vpack.c.b16 %v1807, %v1805
        %v1866 = vpack.c.b16 %v1810, %v1808
        %v1867 = vpack.c.b16 %v1811, %v1809
        %v1868 = vpack.c.b16 %v1814, %v1812
        %v1869 = vpack.c.b16 %v1815, %v1813
        %v1870 = vpack.c.b16 %v1818, %v1816
        %v1871 = vpack.c.b16 %v1819, %v1817
        %v1872 = vpack.c.b16 %v1822, %v1820
        %v1873 = vpack.c.b16 %v1823, %v1821
        %v1874 = vpack.c.b16 %v1826, %v1824
        %v1875 = vpack.c.b16 %v1827, %v1825
        %v1876 = vpack.c.b16 %v1830, %v1828
        %v1877 = vpack.c.b16 %v1831, %v1829
        %v1878 = vpack.c.b16 %v1834, %v1832
        %v1879 = vpack.c.b16 %v1835, %v1833
        %v1880 = vpack.c.b16 %v1838, %v1836
        %v1881 = vpack.c.b16 %v1839, %v1837
        %v1882 = vpack.c.b16 %v1842, %v1840
        %v1883 = vpack.c.b16 %v1843, %v1841
        %v1884 = vpack.c.b16 %v1846, %v1844
        %v1885 = vpack.c.b16 %v1847, %v1845
        %v1886 = vpack.c.b16 %v1850, %v1848
        %v1887 = vpack.c.b16 %v1851, %v1849
        %v1888 = vpack.c.b16 %v1854, %v1852
        %v1889 = vpack.c.b16 %v1855, %v1853
        %v1890 = vpack.c.b16 %v1858, %v1856
        %v1891 = vpack.c.b16 %v1859, %v1857
        %1924 = vmatprep.subr.bf16.mxu0 %v1875
        %1925 = vmatpush1.bf16.msra.mxu0 %v1874
        %1926 = vmatprep.subr.bf16.mxu0 %v1873
        %1927 = vmatpush1.bf16.msra.mxu0 %v1872
        %1928 = vmatprep.subr.bf16.mxu0 %v1871
        %1929 = vmatpush1.bf16.msra.mxu0 %v1870
        %1930 = vmatprep.subr.bf16.mxu0 %v1869
        %1931 = vmatpush1.bf16.msra.mxu0 %v1868
        %1932 = vmatprep.subr.bf16.mxu0 %v1867
        %1933 = vmatpush1.bf16.msra.mxu0 %v1866
        %1934 = vmatprep.subr.bf16.mxu0 %v1865
        %1935 = vmatpush1.bf16.msra.mxu0 %v1864
        %1936 = vmatprep.subr.bf16.mxu0 %v1863
        %1937 = vmatpush1.bf16.msra.mxu0 %v1862
        %1938 = vmatprep.subr.bf16.mxu0 %v1861
        %1939 = vmatpush1.bf16.msra.mxu0 %v1860
        %1940 = vmatprep.subr.bf16.mxu0 %v1891
        %1941 = vmatpush2.bf16.msra.mxu0 %v1890
        %1942 = vmatprep.subr.bf16.mxu0 %v1889
        %1943 = vmatpush2.bf16.msra.mxu0 %v1888
        %1944 = vmatprep.subr.bf16.mxu0 %v1887
        %1945 = vmatpush2.bf16.msra.mxu0 %v1886
        %1946 = vmatprep.subr.bf16.mxu0 %v1885
        %1947 = vmatpush2.bf16.msra.mxu0 %v1884
        %1948 = vmatprep.subr.bf16.mxu0 %v1883
        %1949 = vmatpush2.bf16.msra.mxu0 %v1882
        %1950 = vmatprep.subr.bf16.mxu0 %v1881
        %1951 = vmatpush2.bf16.msra.mxu0 %v1880
        %1952 = vmatprep.subr.bf16.mxu0 %v1879
        %1953 = vmatpush2.bf16.msra.mxu0 %v1878
        %1954 = vmatprep.subr.bf16.mxu0 %v1877
        %1955 = vmatpush2.bf16.msra.mxu0 %v1876
        %1956 = vmatprep.mubr.bf16.mxu0 %v1717
        %1957 = vmatmul.mubr.bf16.gmra.mxu0 %v1716
        %v1958 = vpop.f32.mrf.mxu0
        %v1959 = vadd.f32 %v1757, %v1958
        %v1960 = vpop.f32.mrf.mxu0
        %v1961 = vadd.f32 %v1761, %v1960
        %v1962 = vpop.f32.mrf.mxu0
        %v1963 = vadd.f32 %v1757, %v1962
        %v1964 = vpop.f32.mrf.mxu0
        %v1965 = vadd.f32 %v1761, %v1964
        %1966 = vmatprep.mubr.bf16.mxu0 %v1719
        %1967 = vmatmul.mubr.bf16.gmra.mxu0 %v1718
        %v1968 = vpop.f32.mrf.mxu0
        %v1969 = vadd.f32 %v1757, %v1968
        %v1970 = vpop.f32.mrf.mxu0
        %v1971 = vadd.f32 %v1761, %v1970
        %v1972 = vpop.f32.mrf.mxu0
        %v1973 = vadd.f32 %v1757, %v1972
        %v1974 = vpop.f32.mrf.mxu0
        %v1975 = vadd.f32 %v1761, %v1974
        %1976 = vdwg.mxu0
        %v1977 = vadd.f32 %v1959, %v1279
        %v1978 = vadd.f32 %v1961, %v1280
        %v1979 = vadd.f32 %v1963, %v1281
        %v1980 = vadd.f32 %v1965, %v1282
        %v1981 = vadd.f32 %v1969, %v1283
        %v1982 = vadd.f32 %v1971, %v1284
        %v1983 = vadd.f32 %v1973, %v1285
        %v1984 = vadd.f32 %v1975, %v1286
        %v1985 = vadd.f32 %v1977, %v1708
        %v1986 = vadd.f32 %v1978, %v1709
        %v1987 = vadd.f32 %v1979, %v1710
        %v1988 = vadd.f32 %v1980, %v1711
        %v1989 = vadd.f32 %v1981, %v1712
        %v1990 = vadd.f32 %v1982, %v1713
        %v1991 = vadd.f32 %v1983, %v1714
        %v1992 = vadd.f32 %v1984, %v1715
        %v1993 = vxor.u32 %v1985, 2147483648
        %v1994 = vxor.u32 %v1986, 2147483648
        %v1995 = vxor.u32 %v1987, 2147483648
        %v1996 = vxor.u32 %v1988, 2147483648
        %v1997 = vxor.u32 %v1989, 2147483648
        %v1998 = vxor.u32 %v1990, 2147483648
        %v1999 = vxor.u32 %v1991, 2147483648
        %v2000 = vxor.u32 %v1992, 2147483648
        %v2001 = vmul.f32 %v1993, 1.442695
        %v2002 = vpow.pop %v2001
        %v2003 = vmul.f32 %v1994, 1.442695
        %v2004 = vpow.pop %v2003
        %v2005 = vmul.f32 %v1995, 1.442695
        %v2006 = vpow.pop %v2005
        %v2007 = vmul.f32 %v1996, 1.442695
        %v2008 = vpow.pop %v2007
        %v2009 = vmul.f32 %v1997, 1.442695
        %v2010 = vpow.pop %v2009
        %v2011 = vmul.f32 %v1998, 1.442695
        %v2012 = vpow.pop %v2011
        %v2013 = vmul.f32 %v1999, 1.442695
        %v2014 = vpow.pop %v2013
        %v2015 = vmul.f32 %v2000, 1.442695
        %v2016 = vpow.pop %v2015
        %v2017 = vadd.f32 %v2002, 1.0
        %v2018 = vadd.f32 %v2004, 1.0
        %v2019 = vadd.f32 %v2006, 1.0
        %v2020 = vadd.f32 %v2008, 1.0
        %v2021 = vadd.f32 %v2010, 1.0
        %v2022 = vadd.f32 %v2012, 1.0
        %v2023 = vadd.f32 %v2014, 1.0
        %v2024 = vadd.f32 %v2016, 1.0
        %v2025 = vrcp.pop %v2017
        %v2026 = vmul.f32 1.0, %v2025
        %v2027 = vrcp.pop %v2018
        %v2028 = vmul.f32 1.0, %v2027
        %v2029 = vrcp.pop %v2019
        %v2030 = vmul.f32 1.0, %v2029
        %v2031 = vrcp.pop %v2020
        %v2032 = vmul.f32 1.0, %v2031
        %v2033 = vrcp.pop %v2021
        %v2034 = vmul.f32 1.0, %v2033
        %v2035 = vrcp.pop %v2022
        %v2036 = vmul.f32 1.0, %v2035
        %v2037 = vrcp.pop %v2023
        %v2038 = vmul.f32 1.0, %v2037
        %v2039 = vrcp.pop %v2024
        %v2040 = vmul.f32 1.0, %v2039
        %v2041 = vmul.f32 %v1985, %v2026
        %v2042 = vmul.f32 %v1986, %v2028
        %v2043 = vmul.f32 %v1987, %v2030
        %v2044 = vmul.f32 %v1988, %v2032
        %v2045 = vmul.f32 %v1989, %v2034
        %v2046 = vmul.f32 %v1990, %v2036
        %v2047 = vmul.f32 %v1991, %v2038
        %v2048 = vmul.f32 %v1992, %v2040
        %v2049 = vadd.f32 %v2041, %v2042
        %2050 = vadd.xlane.f32.xlu0 %v2049
        %v2051 = vpop.xlane.xlu0 %2050
        %v2052 = vadd.f32 %v2043, %v2044
        %2053 = vadd.xlane.f32.xlu0 %v2052
        %v2054 = vpop.xlane.xlu0 %2053
        %v2055 = vadd.f32 %v2045, %v2046
        %2056 = vadd.xlane.f32.xlu0 %v2055
        %v2057 = vpop.xlane.xlu0 %2056
        %v2058 = vadd.f32 %v2047, %v2048
        %2059 = vadd.xlane.f32.xlu0 %v2058
        %v2060 = vpop.xlane.xlu0 %2059
        %v2061 = vmul.f32 %v2051, 0.00390625
        %v2062 = vmul.f32 %v2054, 0.00390625
        %v2063 = vmul.f32 %v2057, 0.00390625
        %v2064 = vmul.f32 %v2060, 0.00390625
        %v2065 = vsub.f32 %v2041, %v2061
        %v2066 = vsub.f32 %v2042, %v2061
        %v2067 = vsub.f32 %v2043, %v2062
        %v2068 = vsub.f32 %v2044, %v2062
        %v2069 = vsub.f32 %v2045, %v2063
        %v2070 = vsub.f32 %v2046, %v2063
        %v2071 = vsub.f32 %v2047, %v2064
        %v2072 = vsub.f32 %v2048, %v2064
        %v2073 = vmul.f32 %v2065, %v2065
        %v2074 = vmul.f32 %v2066, %v2066
        %v2075 = vmul.f32 %v2067, %v2067
        %v2076 = vmul.f32 %v2068, %v2068
        %v2077 = vmul.f32 %v2069, %v2069
        %v2078 = vmul.f32 %v2070, %v2070
        %v2079 = vmul.f32 %v2071, %v2071
        %v2080 = vmul.f32 %v2072, %v2072
        %v2081 = vadd.f32 %v2073, %v2074
        %2082 = vadd.xlane.f32.xlu0 %v2081
        %v2083 = vpop.xlane.xlu0 %2082
        %v2084 = vadd.f32 %v2075, %v2076
        %2085 = vadd.xlane.f32.xlu0 %v2084
        %v2086 = vpop.xlane.xlu0 %2085
        %v2087 = vadd.f32 %v2077, %v2078
        %2088 = vadd.xlane.f32.xlu0 %v2087
        %v2089 = vpop.xlane.xlu0 %2088
        %v2090 = vadd.f32 %v2079, %v2080
        %2091 = vadd.xlane.f32.xlu0 %v2090
        %v2092 = vpop.xlane.xlu0 %2091
        %v2093 = vmul.f32 %v2083, 0.00390625
        %v2094 = vmul.f32 %v2086, 0.00390625
        %v2095 = vmul.f32 %v2089, 0.00390625
        %v2096 = vmul.f32 %v2092, 0.00390625
        %v2097 = vadd.f32 %v2093, 0.1
        %v2098 = vadd.f32 %v2094, 0.1
        %v2099 = vadd.f32 %v2095, 0.1
        %v2100 = vadd.f32 %v2096, 0.1
        %v2101 = vrsqrt.pop %v2097
        %v2102 = vrsqrt.pop %v2098
        %v2103 = vrsqrt.pop %v2099
        %v2104 = vrsqrt.pop %v2100
        %v2105 = vmul.f32 %v2065, %v2101
        %v2106 = vmul.f32 %v2066, %v2101
        %v2107 = vmul.f32 %v2067, %v2102
        %v2108 = vmul.f32 %v2068, %v2102
        %v2109 = vmul.f32 %v2069, %v2103
        %v2110 = vmul.f32 %v2070, %v2103
        %v2111 = vmul.f32 %v2071, %v2104
        %v2112 = vmul.f32 %v2072, %v2104
        %v2113 = vld [vmem:[%s12] sm:$0x3]
        %v2115 = vlaneseq
        %v2116 = vshrl.u32 %v2115, 7
        %v2117 = vsub.s32 0, %v2116
        %v2118 = vrot.slane %v2113, %v2117
        %v2119 = vlaneseq
        %v2120 = vshrl.u32 %v2119, 7
        %v2121 = vsub.s32 1, %v2120
        %v2122 = vrot.slane %v2113, %v2121
        %v2125 = vmul.f32 %v2105, %v2118
        %v2126 = vmul.f32 %v2106, %v2122
        %v2127 = vmul.f32 %v2107, %v2118
        %v2128 = vmul.f32 %v2108, %v2122
        %v2129 = vmul.f32 %v2109, %v2118
        %v2130 = vmul.f32 %v2110, %v2122
        %v2131 = vmul.f32 %v2111, %v2118
        %v2132 = vmul.f32 %v2112, %v2122
        %v2133 = vld [vmem:[%s13] sm:$0x3]
        %v2135 = vlaneseq
        %v2136 = vshrl.u32 %v2135, 7
        %v2137 = vsub.s32 0, %v2136
        %v2138 = vrot.slane %v2133, %v2137
        %v2139 = vlaneseq
        %v2140 = vshrl.u32 %v2139, 7
        %v2141 = vsub.s32 1, %v2140
        %v2142 = vrot.slane %v2133, %v2141
        %v2145 = vadd.f32 %v2125, %v2138
        %v2146 = vadd.f32 %v2126, %v2142
        %v2147 = vadd.f32 %v2127, %v2138
        %v2148 = vadd.f32 %v2128, %v2142
        %v2149 = vadd.f32 %v2129, %v2138
        %v2150 = vadd.f32 %v2130, %v2142
        %v2151 = vadd.f32 %v2131, %v2138
        %v2152 = vadd.f32 %v2132, %v2142
        %v2153 = vpack.c.bf16 %v2147, %v2145
        %v2154 = vpack.c.bf16 %v2148, %v2146
        %v2155 = vpack.c.bf16 %v2151, %v2149
        %v2156 = vpack.c.bf16 %v2152, %v2150
        %v2157 = vld [vmem:[#allocation11] sm:$0xff]
        %v2158 = vld [vmem:[#allocation11 + $0x8] sm:$0xff]
        %v2159 = vld [vmem:[#allocation11 + $0x10] sm:$0xff]
        %v2160 = vld [vmem:[#allocation11 + $0x18] sm:$0xff]
        %v2161 = vld [vmem:[#allocation11 + $0x20] sm:$0xff]
        %v2162 = vld [vmem:[#allocation11 + $0x28] sm:$0xff]
        %v2163 = vld [vmem:[#allocation11 + $0x30] sm:$0xff]
        %v2164 = vld [vmem:[#allocation11 + $0x38] sm:$0xff]
        %v2165 = vld [vmem:[#allocation11 + $0x40] sm:$0xff]
        %v2166 = vld [vmem:[#allocation11 + $0x48] sm:$0xff]
        %v2167 = vld [vmem:[#allocation11 + $0x50] sm:$0xff]
        %v2168 = vld [vmem:[#allocation11 + $0x58] sm:$0xff]
        %v2169 = vld [vmem:[#allocation11 + $0x60] sm:$0xff]
        %v2170 = vld [vmem:[#allocation11 + $0x68] sm:$0xff]
        %v2171 = vld [vmem:[#allocation11 + $0x70] sm:$0xff]
        %v2172 = vld [vmem:[#allocation11 + $0x78] sm:$0xff]
        %v2173 = vld [vmem:[#allocation11 + $0x80] sm:$0xff]
        %v2174 = vld [vmem:[#allocation11 + $0x88] sm:$0xff]
        %v2175 = vld [vmem:[#allocation11 + $0x90] sm:$0xff]
        %v2176 = vld [vmem:[#allocation11 + $0x98] sm:$0xff]
        %v2177 = vld [vmem:[#allocation11 + $0xa0] sm:$0xff]
        %v2178 = vld [vmem:[#allocation11 + $0xa8] sm:$0xff]
        %v2179 = vld [vmem:[#allocation11 + $0xb0] sm:$0xff]
        %v2180 = vld [vmem:[#allocation11 + $0xb8] sm:$0xff]
        %v2181 = vld [vmem:[#allocation11 + $0xc0] sm:$0xff]
        %v2182 = vld [vmem:[#allocation11 + $0xc8] sm:$0xff]
        %v2183 = vld [vmem:[#allocation11 + $0xd0] sm:$0xff]
        %v2184 = vld [vmem:[#allocation11 + $0xd8] sm:$0xff]
        %v2185 = vld [vmem:[#allocation11 + $0xe0] sm:$0xff]
        %v2186 = vld [vmem:[#allocation11 + $0xe8] sm:$0xff]
        %v2187 = vld [vmem:[#allocation11 + $0xf0] sm:$0xff]
        %v2188 = vld [vmem:[#allocation11 + $0xf8] sm:$0xff]
        %v2189 = vld [vmem:[%s15] sm:$0x3]
        %v2191 = vlaneseq
        %v2192 = vshrl.u32 %v2191, 7
        %v2193 = vsub.s32 0, %v2192
        %v2194 = vrot.slane %v2189, %v2193
        %v2195 = vlaneseq
        %v2196 = vshrl.u32 %v2195, 7
        %v2197 = vsub.s32 1, %v2196
        %v2198 = vrot.slane %v2189, %v2197
        %v2233 = vunpack.c.l.b16 %v2157
        %v2234 = vunpack.c.h.b16 %v2157
        %v2235 = vunpack.c.l.b16 %v2158
        %v2236 = vunpack.c.h.b16 %v2158
        %v2237 = vunpack.c.l.b16 %v2159
        %v2238 = vunpack.c.h.b16 %v2159
        %v2239 = vunpack.c.l.b16 %v2160
        %v2240 = vunpack.c.h.b16 %v2160
        %v2241 = vunpack.c.l.b16 %v2161
        %v2242 = vunpack.c.h.b16 %v2161
        %v2243 = vunpack.c.l.b16 %v2162
        %v2244 = vunpack.c.h.b16 %v2162
        %v2245 = vunpack.c.l.b16 %v2163
        %v2246 = vunpack.c.h.b16 %v2163
        %v2247 = vunpack.c.l.b16 %v2164
        %v2248 = vunpack.c.h.b16 %v2164
        %v2249 = vunpack.c.l.b16 %v2165
        %v2250 = vunpack.c.h.b16 %v2165
        %v2251 = vunpack.c.l.b16 %v2166
        %v2252 = vunpack.c.h.b16 %v2166
        %v2253 = vunpack.c.l.b16 %v2167
        %v2254 = vunpack.c.h.b16 %v2167
        %v2255 = vunpack.c.l.b16 %v2168
        %v2256 = vunpack.c.h.b16 %v2168
        %v2257 = vunpack.c.l.b16 %v2169
        %v2258 = vunpack.c.h.b16 %v2169
        %v2259 = vunpack.c.l.b16 %v2170
        %v2260 = vunpack.c.h.b16 %v2170
        %v2261 = vunpack.c.l.b16 %v2171
        %v2262 = vunpack.c.h.b16 %v2171
        %v2263 = vunpack.c.l.b16 %v2172
        %v2264 = vunpack.c.h.b16 %v2172
        %v2265 = vunpack.c.l.b16 %v2173
        %v2266 = vunpack.c.h.b16 %v2173
        %v2267 = vunpack.c.l.b16 %v2174
        %v2268 = vunpack.c.h.b16 %v2174
        %v2269 = vunpack.c.l.b16 %v2175
        %v2270 = vunpack.c.h.b16 %v2175
        %v2271 = vunpack.c.l.b16 %v2176
        %v2272 = vunpack.c.h.b16 %v2176
        %v2273 = vunpack.c.l.b16 %v2177
        %v2274 = vunpack.c.h.b16 %v2177
        %v2275 = vunpack.c.l.b16 %v2178
        %v2276 = vunpack.c.h.b16 %v2178
        %v2277 = vunpack.c.l.b16 %v2179
        %v2278 = vunpack.c.h.b16 %v2179
        %v2279 = vunpack.c.l.b16 %v2180
        %v2280 = vunpack.c.h.b16 %v2180
        %v2281 = vunpack.c.l.b16 %v2181
        %v2282 = vunpack.c.h.b16 %v2181
        %v2283 = vunpack.c.l.b16 %v2182
        %v2284 = vunpack.c.h.b16 %v2182
        %v2285 = vunpack.c.l.b16 %v2183
        %v2286 = vunpack.c.h.b16 %v2183
        %v2287 = vunpack.c.l.b16 %v2184
        %v2288 = vunpack.c.h.b16 %v2184
        %v2289 = vunpack.c.l.b16 %v2185
        %v2290 = vunpack.c.h.b16 %v2185
        %v2291 = vunpack.c.l.b16 %v2186
        %v2292 = vunpack.c.h.b16 %v2186
        %v2293 = vunpack.c.l.b16 %v2187
        %v2294 = vunpack.c.h.b16 %v2187
        %v2295 = vunpack.c.l.b16 %v2188
        %v2296 = vunpack.c.h.b16 %v2188
        %v2297 = vpack.c.b16 %v2235, %v2233
        %v2298 = vpack.c.b16 %v2236, %v2234
        %v2299 = vpack.c.b16 %v2239, %v2237
        %v2300 = vpack.c.b16 %v2240, %v2238
        %v2301 = vpack.c.b16 %v2243, %v2241
        %v2302 = vpack.c.b16 %v2244, %v2242
        %v2303 = vpack.c.b16 %v2247, %v2245
        %v2304 = vpack.c.b16 %v2248, %v2246
        %v2305 = vpack.c.b16 %v2251, %v2249
        %v2306 = vpack.c.b16 %v2252, %v2250
        %v2307 = vpack.c.b16 %v2255, %v2253
        %v2308 = vpack.c.b16 %v2256, %v2254
        %v2309 = vpack.c.b16 %v2259, %v2257
        %v2310 = vpack.c.b16 %v2260, %v2258
        %v2311 = vpack.c.b16 %v2263, %v2261
        %v2312 = vpack.c.b16 %v2264, %v2262
        %v2313 = vpack.c.b16 %v2267, %v2265
        %v2314 = vpack.c.b16 %v2268, %v2266
        %v2315 = vpack.c.b16 %v2271, %v2269
        %v2316 = vpack.c.b16 %v2272, %v2270
        %v2317 = vpack.c.b16 %v2275, %v2273
        %v2318 = vpack.c.b16 %v2276, %v2274
        %v2319 = vpack.c.b16 %v2279, %v2277
        %v2320 = vpack.c.b16 %v2280, %v2278
        %v2321 = vpack.c.b16 %v2283, %v2281
        %v2322 = vpack.c.b16 %v2284, %v2282
        %v2323 = vpack.c.b16 %v2287, %v2285
        %v2324 = vpack.c.b16 %v2288, %v2286
        %v2325 = vpack.c.b16 %v2291, %v2289
        %v2326 = vpack.c.b16 %v2292, %v2290
        %v2327 = vpack.c.b16 %v2295, %v2293
        %v2328 = vpack.c.b16 %v2296, %v2294
        %2361 = vmatprep.subr.bf16.mxu0 %v2312
        %2362 = vmatpush1.bf16.msra.mxu0 %v2311
        %2363 = vmatprep.subr.bf16.mxu0 %v2310
        %2364 = vmatpush1.bf16.msra.mxu0 %v2309
        %2365 = vmatprep.subr.bf16.mxu0 %v2308
        %2366 = vmatpush1.bf16.msra.mxu0 %v2307
        %2367 = vmatprep.subr.bf16.mxu0 %v2306
        %2368 = vmatpush1.bf16.msra.mxu0 %v2305
        %2369 = vmatprep.subr.bf16.mxu0 %v2304
        %2370 = vmatpush1.bf16.msra.mxu0 %v2303
        %2371 = vmatprep.subr.bf16.mxu0 %v2302
        %2372 = vmatpush1.bf16.msra.mxu0 %v2301
        %2373 = vmatprep.subr.bf16.mxu0 %v2300
        %2374 = vmatpush1.bf16.msra.mxu0 %v2299
        %2375 = vmatprep.subr.bf16.mxu0 %v2298
        %2376 = vmatpush1.bf16.msra.mxu0 %v2297
        %2377 = vmatprep.subr.bf16.mxu0 %v2328
        %2378 = vmatpush2.bf16.msra.mxu0 %v2327
        %2379 = vmatprep.subr.bf16.mxu0 %v2326
        %2380 = vmatpush2.bf16.msra.mxu0 %v2325
        %2381 = vmatprep.subr.bf16.mxu0 %v2324
        %2382 = vmatpush2.bf16.msra.mxu0 %v2323
        %2383 = vmatprep.subr.bf16.mxu0 %v2322
        %2384 = vmatpush2.bf16.msra.mxu0 %v2321
        %2385 = vmatprep.subr.bf16.mxu0 %v2320
        %2386 = vmatpush2.bf16.msra.mxu0 %v2319
        %2387 = vmatprep.subr.bf16.mxu0 %v2318
        %2388 = vmatpush2.bf16.msra.mxu0 %v2317
        %2389 = vmatprep.subr.bf16.mxu0 %v2316
        %2390 = vmatpush2.bf16.msra.mxu0 %v2315
        %2391 = vmatprep.subr.bf16.mxu0 %v2314
        %2392 = vmatpush2.bf16.msra.mxu0 %v2313
        %2393 = vmatprep.mubr.bf16.mxu0 %v2154
        %2394 = vmatmul.mubr.bf16.gmra.mxu0 %v2153
        %v2395 = vpop.f32.mrf.mxu0
        %v2396 = vadd.f32 %v2194, %v2395
        %v2397 = vpop.f32.mrf.mxu0
        %v2398 = vadd.f32 %v2198, %v2397
        %v2399 = vpop.f32.mrf.mxu0
        %v2400 = vadd.f32 %v2194, %v2399
        %v2401 = vpop.f32.mrf.mxu0
        %v2402 = vadd.f32 %v2198, %v2401
        %2403 = vmatprep.mubr.bf16.mxu0 %v2156
        %2404 = vmatmul.mubr.bf16.gmra.mxu0 %v2155
        %v2405 = vpop.f32.mrf.mxu0
        %v2406 = vadd.f32 %v2194, %v2405
        %v2407 = vpop.f32.mrf.mxu0
        %v2408 = vadd.f32 %v2198, %v2407
        %v2409 = vpop.f32.mrf.mxu0
        %v2410 = vadd.f32 %v2194, %v2409
        %v2411 = vpop.f32.mrf.mxu0
        %v2412 = vadd.f32 %v2198, %v2411
        %2413 = vdwg.mxu0
        %v2414 = vmul.f32 %v663, %v663
        %v2415 = vmul.f32 %v664, %v664
        %v2416 = vmul.f32 %v665, %v665
        %v2417 = vmul.f32 %v666, %v666
        %v2418 = vadd.f32 %v2414, 1.837877
        %v2419 = vadd.f32 %v2415, 1.837877
        %v2420 = vadd.f32 %v2416, 1.837877
        %v2421 = vadd.f32 %v2417, 1.837877
        %v2422 = vmul.f32 %v2418, -0.5
        %v2423 = vmul.f32 %v2419, -0.5
        %v2424 = vmul.f32 %v2420, -0.5
        %v2425 = vmul.f32 %v2421, -0.5
        %v2426 = vadd.f32 %v2422, -1.89712
        %v2427 = vadd.f32 %v2423, -1.89712
        %v2428 = vadd.f32 %v2424, -1.89712
        %v2429 = vadd.f32 %v2425, -1.89712
        %v2430 = vsub.f32 %v663, %v2396
        %v2431 = vsub.f32 %v664, %v2400
        %v2432 = vsub.f32 %v665, %v2406
        %v2433 = vsub.f32 %v666, %v2410
        %v2434 = vadd.f32 %v2398, 1.837877
        %v2435 = vadd.f32 %v2402, 1.837877
        %v2436 = vadd.f32 %v2408, 1.837877
        %v2437 = vadd.f32 %v2412, 1.837877
        %v2438 = vmul.f32 %v2430, %v2430
        %v2439 = vmul.f32 %v2431, %v2431
        %v2440 = vmul.f32 %v2432, %v2432
        %v2441 = vmul.f32 %v2433, %v2433
        %v2442 = vsub.f32 0.0, %v2398
        %v2443 = vsub.f32 0.0, %v2402
        %v2444 = vsub.f32 0.0, %v2408
        %v2445 = vsub.f32 0.0, %v2412
        %v2446 = vmul.f32 %v2442, 1.442695
        %v2447 = vpow.pop %v2446
        %v2448 = vmul.f32 %v2443, 1.442695
        %v2449 = vpow.pop %v2448
        %v2450 = vmul.f32 %v2444, 1.442695
        %v2451 = vpow.pop %v2450
        %v2452 = vmul.f32 %v2445, 1.442695
        %v2453 = vpow.pop %v2452
        %v2454 = vmul.f32 %v2438, %v2447
        %v2455 = vmul.f32 %v2439, %v2449
        %v2456 = vmul.f32 %v2440, %v2451
        %v2457 = vmul.f32 %v2441, %v2453
        %v2458 = vadd.f32 %v2434, %v2454
        %v2459 = vadd.f32 %v2435, %v2455
        %v2460 = vadd.f32 %v2436, %v2456
        %v2461 = vadd.f32 %v2437, %v2457
        %v2462 = vmul.f32 %v2458, -0.5
        %v2463 = vmul.f32 %v2459, -0.5
        %v2464 = vmul.f32 %v2460, -0.5
        %v2465 = vmul.f32 %v2461, -0.5
        %v2466 = vadd.f32 %v2462, -0.2876821
        %v2467 = vadd.f32 %v2463, -0.2876821
        %v2468 = vadd.f32 %v2464, -0.2876821
        %v2469 = vadd.f32 %v2465, -0.2876821
        %v2470 = vmul.f32 %v2414, 4.539993e-05
        %v2471 = vmul.f32 %v2415, 4.539993e-05
        %v2472 = vmul.f32 %v2416, 4.539993e-05
        %v2473 = vmul.f32 %v2417, 4.539993e-05
        %v2474 = vadd.f32 %v2470, 11.837877
        %v2475 = vadd.f32 %v2471, 11.837877
        %v2476 = vadd.f32 %v2472, 11.837877
        %v2477 = vadd.f32 %v2473, 11.837877
        %v2478 = vmul.f32 %v2474, -0.5
        %v2479 = vmul.f32 %v2475, -0.5
        %v2480 = vmul.f32 %v2476, -0.5
        %v2481 = vmul.f32 %v2477, -0.5
        %v2482 = vadd.f32 %v2478, -2.3025851
        %v2483 = vadd.f32 %v2479, -2.3025851
        %v2484 = vadd.f32 %v2480, -2.3025851
        %v2485 = vadd.f32 %v2481, -2.3025851
        %v2486 = vmax.f32 %v2426, %v2466
        %v2487 = vmax.f32 %v2427, %v2467
        %v2488 = vmax.f32 %v2428, %v2468
        %v2489 = vmax.f32 %v2429, %v2469
        %v2490 = vmax.f32 %v2486, %v2482
        %v2491 = vmax.f32 %v2487, %v2483
        %v2492 = vmax.f32 %v2488, %v2484
        %v2493 = vmax.f32 %v2489, %v2485
        %v2494 = vsub.f32 %v2426, %v2490
        %v2495 = vsub.f32 %v2427, %v2491
        %v2496 = vsub.f32 %v2428, %v2492
        %v2497 = vsub.f32 %v2429, %v2493
        %v2498 = vmul.f32 %v2494, 1.442695
        %v2499 = vpow.pop %v2498
        %v2500 = vmul.f32 %v2495, 1.442695
        %v2501 = vpow.pop %v2500
        %v2502 = vmul.f32 %v2496, 1.442695
        %v2503 = vpow.pop %v2502
        %v2504 = vmul.f32 %v2497, 1.442695
        %v2505 = vpow.pop %v2504
        %v2506 = vsub.f32 %v2466, %v2490
        %v2507 = vsub.f32 %v2467, %v2491
        %v2508 = vsub.f32 %v2468, %v2492
        %v2509 = vsub.f32 %v2469, %v2493
        %v2510 = vmul.f32 %v2506, 1.442695
        %v2511 = vpow.pop %v2510
        %v2512 = vmul.f32 %v2507, 1.442695
        %v2513 = vpow.pop %v2512
        %v2514 = vmul.f32 %v2508, 1.442695
        %v2515 = vpow.pop %v2514
        %v2516 = vmul.f32 %v2509, 1.442695
        %v2517 = vpow.pop %v2516
        %v2518 = vadd.f32 %v2499, %v2511
        %v2519 = vadd.f32 %v2501, %v2513
        %v2520 = vadd.f32 %v2503, %v2515
        %v2521 = vadd.f32 %v2505, %v2517
        %v2522 = vsub.f32 %v2482, %v2490
        %v2523 = vsub.f32 %v2483, %v2491
        %v2524 = vsub.f32 %v2484, %v2492
        %v2525 = vsub.f32 %v2485, %v2493
        %v2526 = vmul.f32 %v2522, 1.442695
        %v2527 = vpow.pop %v2526
        %v2528 = vmul.f32 %v2523, 1.442695
        %v2529 = vpow.pop %v2528
        %v2530 = vmul.f32 %v2524, 1.442695
        %v2531 = vpow.pop %v2530
        %v2532 = vmul.f32 %v2525, 1.442695
        %v2533 = vpow.pop %v2532
        %v2534 = vadd.f32 %v2518, %v2527
        %v2535 = vadd.f32 %v2519, %v2529
        %v2536 = vadd.f32 %v2520, %v2531
        %v2537 = vadd.f32 %v2521, %v2533
        %v2538 = vlog2.pop %v2534
        %v2539 = vmul.f32 %v2538, 0.6931472
        %v2540 = vlog2.pop %v2535
        %v2541 = vmul.f32 %v2540, 0.6931472
        %v2542 = vlog2.pop %v2536
        %v2543 = vmul.f32 %v2542, 0.6931472
        %v2544 = vlog2.pop %v2537
        %v2545 = vmul.f32 %v2544, 0.6931472
        %v2546 = vadd.f32 %v2490, %v2539
        %v2547 = vadd.f32 %v2491, %v2541
        %v2548 = vadd.f32 %v2492, %v2543
        %v2549 = vadd.f32 %v2493, %v2545
        %2550 = vst [vmem:[%s638] sm:$0xff] %v2546
        %2551 = vst [vmem:[%s638 + $0x8] sm:$0xff] %v2547
        %2552 = vst [vmem:[%s638 + $0x10] sm:$0xff] %v2548
        %2553 = vst [vmem:[%s638 + $0x18] sm:$0xff] %v2549
        %s2554 = sand.u32 %s392, 1
        %s2555 = scalar_lea.sflag [#allocation4], %s2554
        %s2556 = sand.u32 %s392, 1
        %s2557 = smul.addr %s2556, 32
        %s2558 = scalar_lea.vmem [#allocation13], %s2557
        // Predicated region
        $region109: #{tpu_custom_call.1} parent=83 // pred_check
          %p2559 = pneg %p402
        $region110: #{tpu_custom_call.1} parent=83 // pred_check_branch
          %2561 = sbr.rel (%p2559) target = $region112
        $region111: #{tpu_custom_call.1} parent=83 // pred_region
          %s2562 = smul.u32 4, %s38
          %s2564 = ssub.s32 512, 512
          %2565 = vsyncadd %s2555, %s2564
          %s2566 = smul.addr %s2562, 128
          %s2567 = scalar_lea.hbm %s16, %s2566
          %s2568 = sshll.u32 %s2558, 4
          %s2569 = int_to_ptr.vmem [resolvable:$true] %s2568
          %2574 = dma.vmem_to_hbm [thread:$0]  %s2569, 512, %s2567, %s2555, 128, 128, 8
        $region112: #{tpu_custom_call.1} parent=83 // pred_fallthru
          _
      $region84: #{tpu_custom_call.1} parent=5 // pred_fallthru
        _
      %p2575 = scmp.le.s32.totalorder 2, %s33
      // Predicated region
      $region113: #{tpu_custom_call.1} parent=5 // pred_check
        %p2576 = pneg %p2575
      $region114: #{tpu_custom_call.1} parent=5 // pred_check_branch
        %2578 = sbr.rel (%p2576) target = $region116
      $region115: #{tpu_custom_call.1} parent=5 // pred_region
        %s2579 = ssub.s32 %s33, 2
        // Predicated region
        $region117: #{tpu_custom_call.1} parent=115 // pred_check
          %p2580 = pneg %p408
        $region118: #{tpu_custom_call.1} parent=115 // pred_check_branch
          %2582 = sbr.rel (%p2580) target = $region120
        $region119: #{tpu_custom_call.1} parent=115 // pred_region
          %s2583 = sand.u32 %s393, 1
          %s2584 = scalar_lea.sflag [#allocation4], %s2583
          %s2585 = sand.u32 %s393, 1
          %s2586 = smul.addr %s2585, 32
          %s2587 = scalar_lea.vmem [#allocation13], %s2586
          %2588 = dma.done %s2584, 512
        $region120: #{tpu_custom_call.1} parent=115 // pred_fallthru
          _
      $region116: #{tpu_custom_call.1} parent=5 // pred_fallthru
        _
    $region6: #{tpu_custom_call.1} parent=1 // loop_footer
      %s37 = sadd.s32 1, %s33
    $region7: #{tpu_custom_call.1} parent=1 // loop_footer_branch
      %32 = sbr.rel target = $region3
    $region8: #{tpu_custom_call.1} parent=1 // loop_exit
      _
    %2589 = vsyncpa [#allocation3], 1
    %s2590 = scalar_lea.sflag [#allocation3], 1
    %2591 = vsyncpa %s2590, 1
    %2592 = vsyncpa [#allocation6], 1
    %s2593 = scalar_lea.sflag [#allocation6], 1
    %2594 = vsyncpa %s2593, 1
    %2595 = vsyncpa [#allocation9], 1
    %2596 = vsyncpa [#allocation12], 1
    %2597 = vsyncpa [#allocation4], 1
    %s2598 = scalar_lea.sflag [#allocation4], 1
    %2599 = vsyncpa %s2598, 1

// kernel: tpu_custom_call.1
$region0: #{tpu_custom_call.1}
  #allocation0 [shape = 'u32[]', space=smem, size = 0x4, offset = 0x4, fixed_abs, tag = 'smem constant byte address 0x4 - core index']
  #allocation1 [shape = 'u32[144,128]{1,0:T(1,128)}', space=vmem, size = 0x12000, scoped, tag = 'internal scratch']
  %s0 = inlined_call_operand.hbm [shape: bf16[64,384], index: 0, kind: input, shape index: {}]
  %s1 = inlined_call_operand.hbm [shape: f32[64,128], index: 1, kind: input, shape index: {}]
  %s2 = inlined_call_operand.hbm [shape: bf16[384,256], index: 2, kind: input, shape index: {}]
  %s3 = inlined_call_operand.vmem [shape: f32[1,256], index: 3, kind: input, shape index: {}]
  %s4 = inlined_call_operand.vmem [shape: f32[1,256], index: 4, kind: input, shape index: {}]
  %s5 = inlined_call_operand.vmem [shape: f32[1,256], index: 5, kind: input, shape index: {}]
  %s6 = inlined_call_operand.hbm [shape: bf16[256,256], index: 6, kind: input, shape index: {}]
  %s7 = inlined_call_operand.vmem [shape: f32[1,256], index: 7, kind: input, shape index: {}]
  %s8 = inlined_call_operand.vmem [shape: f32[1,256], index: 8, kind: input, shape index: {}]
  %s9 = inlined_call_operand.vmem [shape: f32[1,256], index: 9, kind: input, shape index: {}]
  %s10 = inlined_call_operand.hbm [shape: bf16[256,256], index: 10, kind: input, shape index: {}]
  %s11 = inlined_call_operand.vmem [shape: f32[1,256], index: 11, kind: input, shape index: {}]
  %s12 = inlined_call_operand.vmem [shape: f32[1,256], index: 12, kind: input, shape index: {}]
  %s13 = inlined_call_operand.vmem [shape: f32[1,256], index: 13, kind: input, shape index: {}]
  %s14 = inlined_call_operand.hbm [shape: bf16[256,256], index: 14, kind: input, shape index: {}]
  %s15 = inlined_call_operand.vmem [shape: f32[1,256], index: 15, kind: input, shape index: {}]
  %s16 = inlined_call_operand.hbm [shape: f32[64,128], index: 16, kind: output, shape index: {}]
  %s17 = sld [smem:[#allocation0]]
  $region121: #{tpu_custom_call.1} parent=0
    _
  %s19 = ssub.s32 1, %s17
  %s20 = scalar_select 0, %s19, %s17
  $region1: #{tpu_custom_call.1} parent=0
    #allocation2 [shape = 'u8[49152]{0}', space=vmem, size = 0xc000, scoped, tag = 'input window, operand 0']
    #allocation3 [shape = 's32[2]{0}', space=sflag, size = 0x8, scoped, tag = 'scoped memory for tpu_custom_call.1']
    #allocation4 [shape = 's32[2]{0}', space=sflag, size = 0x8, scoped, tag = 'scoped memory for tpu_custom_call.1']
    #allocation5 [shape = 'u8[32768]{0}', space=vmem, size = 0x8000, scoped, tag = 'input window, operand 1']
    #allocation6 [shape = 's32[2]{0}', space=sflag, size = 0x8, scoped, tag = 'scoped memory for tpu_custom_call.1']
    #allocation7 [shape = 'u8[196608]{0}', space=vmem, size = 0x30000, scoped, tag = 'input window, operand 2, single buffered']
    #allocation8 [shape = 'u8[131072]{0}', space=vmem, size = 0x20000, scoped, tag = 'input window, operand 6, single buffered']
    #allocation9 [shape = 's32[1]{0}', space=sflag, size = 0x4, scoped, tag = 'scoped memory for tpu_custom_call.1']
    #allocation10 [shape = 'u8[131072]{0}', space=vmem, size = 0x20000, scoped, tag = 'input window, operand 10, single buffered']
    #allocation11 [shape = 'u8[131072]{0}', space=vmem, size = 0x20000, scoped, tag = 'input window, operand 14, single buffered']
    #allocation12 [shape = 's32[1]{0}', space=sflag, size = 0x4, scoped, tag = 'scoped memory for tpu_custom_call.1']
    #allocation13 [shape = 'u8[32768]{0}', space=vmem, size = 0x8000, scoped, tag = 'output window, operand 0']
    %21 = vsyncpa [#allocation3], 0
    %s22 = scalar_lea.sflag [#allocation3], 1
    %23 = vsyncpa %s22, 0
    %24 = vsyncpa [#allocation6], 0
    %s25 = scalar_lea.sflag [#allocation6], 1
    %26 = vsyncpa %s25, 0
    %27 = vsyncpa [#allocation9], 0
    %28 = vsyncpa [#allocation12], 0
    %29 = vsyncpa [#allocation4], 0
    %s30 = scalar_lea.sflag [#allocation4], 1
    %31 = vsyncpa %s30, 0
    loop: start=0, step=1, limit=4
    $region2: #{tpu_custom_call.1} parent=1 // loop_pre_header
      _
    $region3: #{tpu_custom_call.1} parent=1 // loop_header
      %s33 = sphi 0, %s37
      %p34 = scmp.ge.s32.totalorder %s33, 4
      %s43 = sphi 0, %s45
      %s46 = sphi 0, %s43
      %s47 = sphi 0, %s46
      %s63 = sphi 0, %s47
      %s69 = sphi 0, %s71
      %s72 = sphi 0, %s69
      %s73 = sphi 0, %s72
      %s89 = sphi 0, %s73
      %s93 = sphi 0, %s93
      %s95 = sphi 0, %s93
      %s96 = sphi 0, %s95
      %s110 = sphi 0, %s96
      %s114 = sphi 0, %s114
      %s116 = sphi 0, %s114
      %s117 = sphi 0, %s116
      %s131 = sphi 0, %s117
      %s135 = sphi 0, %s135
      %s137 = sphi 0, %s135
      %s138 = sphi 0, %s137
      %s152 = sphi 0, %s138
      %s156 = sphi 0, %s156
      %s158 = sphi 0, %s156
      %s159 = sphi 0, %s158
      %s173 = sphi 0, %s159
      %s177 = sphi 0, %s177
      %s179 = sphi 0, %s177
      %s180 = sphi 0, %s179
      %s194 = sphi 0, %s180
      %s198 = sphi 0, %s198
      %s200 = sphi 0, %s198
      %s201 = sphi 0, %s200
      %s215 = sphi 0, %s201
      %s219 = sphi 0, %s219
      %s221 = sphi 0, %s219
      %s222 = sphi 0, %s221
      %s236 = sphi 0, %s222
      %s240 = sphi 0, %s240
      %s242 = sphi 0, %s240
      %s243 = sphi 0, %s242
      %s257 = sphi 0, %s243
      %s261 = sphi 0, %s261
      %s263 = sphi 0, %s261
      %s264 = sphi 0, %s263
      %s278 = sphi 0, %s264
      %s282 = sphi 0, %s282
      %s284 = sphi 0, %s282
      %s285 = sphi 0, %s284
      %s299 = sphi 0, %s285
      %s303 = sphi 0, %s303
      %s305 = sphi 0, %s303
      %s306 = sphi 0, %s305
      %s320 = sphi 0, %s306
      %s324 = sphi 0, %s324
      %s326 = sphi 0, %s324
      %s327 = sphi 0, %s326
      %s341 = sphi 0, %s327
      %s345 = sphi 0, %s345
      %s347 = sphi 0, %s345
      %s348 = sphi 0, %s347
      %s362 = sphi 0, %s348
      %s366 = sphi 0, %s366
      %s368 = sphi 0, %s366
      %s369 = sphi 0, %s368
      %s383 = sphi 0, %s369
      %s389 = sphi 0, %s391
      %s392 = sphi 0, %s389
      %s393 = sphi 0, %s392
      %s409 = sphi 0, %s393
    $region4: #{tpu_custom_call.1} parent=1 // loop_header_branch
      %36 = sbr.rel (%p34) target = $region8
    $region5: #{tpu_custom_call.1} parent=1 // loop_body
      %s38 = ssub.s32 %s33, 1
      %s39 = ssub.s32 %s33, 2
      %s40 = sadd.s32 %s33, 1
      %s41 = ssub.s32 %s33, %s40
      %p42 = scmp.eq.s32.totalorder %s41, 0
      %s44 = sadd.s32 %s43, 1
      %s45 = scalar_select %p42, %s43, %s44
      %p48 = pneg %p42
      %p49 = scmp.eq.s32.totalorder %s33, 1
      %p50 = por %p48, %p49
      %p51 = scmp.ne.s32.totalorder %s43, %s46
      %p52 = scmp.eq.s32.totalorder %s33, 0
      %p53 = por %p51, %p52
      %p54 = scmp.ne.s32.totalorder %s43, %s46
      %p55 = scmp.eq.s32.totalorder %s38, 1
      %p56 = por %p54, %p55
      %p57 = scmp.ne.s32.totalorder %s46, %s47
      %p58 = scmp.eq.s32.totalorder %s38, 0
      %p59 = por %p57, %p58
      %p60 = scmp.ne.s32.totalorder %s46, %s47
      %p61 = scmp.eq.s32.totalorder %s39, 1
      %p62 = por %p60, %p61
      %p64 = scmp.ne.s32.totalorder %s47, %s63
      %p65 = scmp.eq.s32.totalorder %s39, 0
      %p66 = por %p64, %p65
      %s67 = ssub.s32 %s33, %s40
      %p68 = scmp.eq.s32.totalorder %s67, 0
      %s70 = sadd.s32 %s69, 1
      %s71 = scalar_select %p68, %s69, %s70
      %p74 = pneg %p68
      %p75 = scmp.eq.s32.totalorder %s33, 1
      %p76 = por %p74, %p75
      %p77 = scmp.ne.s32.totalorder %s69, %s72
      %p78 = scmp.eq.s32.totalorder %s33, 0
      %p79 = por %p77, %p78
      %p80 = scmp.ne.s32.totalorder %s69, %s72
      %p81 = scmp.eq.s32.totalorder %s38, 1
      %p82 = por %p80, %p81
      %p83 = scmp.ne.s32.totalorder %s72, %s73
      %p84 = scmp.eq.s32.totalorder %s38, 0
      %p85 = por %p83, %p84
      %p86 = scmp.ne.s32.totalorder %s72, %s73
      %p87 = scmp.eq.s32.totalorder %s39, 1
      %p88 = por %p86, %p87
      %p90 = scmp.ne.s32.totalorder %s73, %s89
      %p91 = scmp.eq.s32.totalorder %s39, 0
      %p92 = por %p90, %p91
      %s94 = sadd.s32 %s93, 1
      %p97 = scmp.eq.s32.totalorder %s33, 1
      %p98 = scmp.ne.s32.totalorder %s93, %s95
      %p99 = scmp.eq.s32.totalorder %s33, 0
      %p100 = por %p98, %p99
      %p101 = scmp.ne.s32.totalorder %s93, %s95
      %p102 = scmp.eq.s32.totalorder %s38, 1
      %p103 = por %p101, %p102
      %p104 = scmp.ne.s32.totalorder %s95, %s96
      %p105 = scmp.eq.s32.totalorder %s38, 0
      %p106 = por %p104, %p105
      %p107 = scmp.ne.s32.totalorder %s95, %s96
      %p108 = scmp.eq.s32.totalorder %s39, 1
      %p109 = por %p107, %p108
      %p111 = scmp.ne.s32.totalorder %s96, %s110
      %p112 = scmp.eq.s32.totalorder %s39, 0
      %p113 = por %p111, %p112
      %s115 = sadd.s32 %s114, 1
      %p118 = scmp.eq.s32.totalorder %s33, 1
      %p119 = scmp.ne.s32.totalorder %s114, %s116
      %p120 = scmp.eq.s32.totalorder %s33, 0
      %p121 = por %p119, %p120
      %p122 = scmp.ne.s32.totalorder %s114, %s116
      %p123 = scmp.eq.s32.totalorder %s38, 1
      %p124 = por %p122, %p123
      %p125 = scmp.ne.s32.totalorder %s116, %s117
      %p126 = scmp.eq.s32.totalorder %s38, 0
      %p127 = por %p125, %p126
      %p128 = scmp.ne.s32.totalorder %s116, %s117
      %p129 = scmp.eq.s32.totalorder %s39, 1
      %p130 = por %p128, %p129
      %p132 = scmp.ne.s32.totalorder %s117, %s131
      %p133 = scmp.eq.s32.totalorder %s39, 0
      %p134 = por %p132, %p133
      %s136 = sadd.s32 %s135, 1
      %p139 = scmp.eq.s32.totalorder %s33, 1
      %p140 = scmp.ne.s32.totalorder %s135, %s137
      %p141 = scmp.eq.s32.totalorder %s33, 0
      %p142 = por %p140, %p141
      %p143 = scmp.ne.s32.totalorder %s135, %s137
      %p144 = scmp.eq.s32.totalorder %s38, 1
      %p145 = por %p143, %p144
      %p146 = scmp.ne.s32.totalorder %s137, %s138
      %p147 = scmp.eq.s32.totalorder %s38, 0
      %p148 = por %p146, %p147
      %p149 = scmp.ne.s32.totalorder %s137, %s138
      %p150 = scmp.eq.s32.totalorder %s39, 1
      %p151 = por %p149, %p150
      %p153 = scmp.ne.s32.totalorder %s138, %s152
      %p154 = scmp.eq.s32.totalorder %s39, 0
      %p155 = por %p153, %p154
      %s157 = sadd.s32 %s156, 1
      %p160 = scmp.eq.s32.totalorder %s33, 1
      %p161 = scmp.ne.s32.totalorder %s156, %s158
      %p162 = scmp.eq.s32.totalorder %s33, 0
      %p163 = por %p161, %p162
      %p164 = scmp.ne.s32.totalorder %s156, %s158
      %p165 = scmp.eq.s32.totalorder %s38, 1
      %p166 = por %p164, %p165
      %p167 = scmp.ne.s32.totalorder %s158, %s159
      %p168 = scmp.eq.s32.totalorder %s38, 0
      %p169 = por %p167, %p168
      %p170 = scmp.ne.s32.totalorder %s158, %s159
      %p171 = scmp.eq.s32.totalorder %s39, 1
      %p172 = por %p170, %p171
      %p174 = scmp.ne.s32.totalorder %s159, %s173
      %p175 = scmp.eq.s32.totalorder %s39, 0
      %p176 = por %p174, %p175
      %s178 = sadd.s32 %s177, 1
      %p181 = scmp.eq.s32.totalorder %s33, 1
      %p182 = scmp.ne.s32.totalorder %s177, %s179
      %p183 = scmp.eq.s32.totalorder %s33, 0
      %p184 = por %p182, %p183
      %p185 = scmp.ne.s32.totalorder %s177, %s179
      %p186 = scmp.eq.s32.totalorder %s38, 1
      %p187 = por %p185, %p186
      %p188 = scmp.ne.s32.totalorder %s179, %s180
      %p189 = scmp.eq.s32.totalorder %s38, 0
      %p190 = por %p188, %p189
      %p191 = scmp.ne.s32.totalorder %s179, %s180
      %p192 = scmp.eq.s32.totalorder %s39, 1
      %p193 = por %p191, %p192
      %p195 = scmp.ne.s32.totalorder %s180, %s194
      %p196 = scmp.eq.s32.totalorder %s39, 0
      %p197 = por %p195, %p196
      %s199 = sadd.s32 %s198, 1
      %p202 = scmp.eq.s32.totalorder %s33, 1
      %p203 = scmp.ne.s32.totalorder %s198, %s200
      %p204 = scmp.eq.s32.totalorder %s33, 0
      %p205 = por %p203, %p204
      %p206 = scmp.ne.s32.totalorder %s198, %s200
      %p207 = scmp.eq.s32.totalorder %s38, 1
      %p208 = por %p206, %p207
      %p209 = scmp.ne.s32.totalorder %s200, %s201
      %p210 = scmp.eq.s32.totalorder %s38, 0
      %p211 = por %p209, %p210
      %p212 = scmp.ne.s32.totalorder %s200, %s201
      %p213 = scmp.eq.s32.totalorder %s39, 1
      %p214 = por %p212, %p213
      %p216 = scmp.ne.s32.totalorder %s201, %s215
      %p217 = scmp.eq.s32.totalorder %s39, 0
      %p218 = por %p216, %p217
      %s220 = sadd.s32 %s219, 1
      %p223 = scmp.eq.s32.totalorder %s33, 1
      %p224 = scmp.ne.s32.totalorder %s219, %s221
      %p225 = scmp.eq.s32.totalorder %s33, 0
      %p226 = por %p224, %p225
      %p227 = scmp.ne.s32.totalorder %s219, %s221
      %p228 = scmp.eq.s32.totalorder %s38, 1
      %p229 = por %p227, %p228
      %p230 = scmp.ne.s32.totalorder %s221, %s222
      %p231 = scmp.eq.s32.totalorder %s38, 0
      %p232 = por %p230, %p231
      %p233 = scmp.ne.s32.totalorder %s221, %s222
      %p234 = scmp.eq.s32.totalorder %s39, 1
      %p235 = por %p233, %p234
      %p237 = scmp.ne.s32.totalorder %s222, %s236
      %p238 = scmp.eq.s32.totalorder %s39, 0
      %p239 = por %p237, %p238
      %s241 = sadd.s32 %s240, 1
      %p244 = scmp.eq.s32.totalorder %s33, 1
      %p245 = scmp.ne.s32.totalorder %s240, %s242
      %p246 = scmp.eq.s32.totalorder %s33, 0
      %p247 = por %p245, %p246
      %p248 = scmp.ne.s32.totalorder %s240, %s242
      %p249 = scmp.eq.s32.totalorder %s38, 1
      %p250 = por %p248, %p249
      %p251 = scmp.ne.s32.totalorder %s242, %s243
      %p252 = scmp.eq.s32.totalorder %s38, 0
      %p253 = por %p251, %p252
      %p254 = scmp.ne.s32.totalorder %s242, %s243
      %p255 = scmp.eq.s32.totalorder %s39, 1
      %p256 = por %p254, %p255
      %p258 = scmp.ne.s32.totalorder %s243, %s257
      %p259 = scmp.eq.s32.totalorder %s39, 0
      %p260 = por %p258, %p259
      %s262 = sadd.s32 %s261, 1
      %p265 = scmp.eq.s32.totalorder %s33, 1
      %p266 = scmp.ne.s32.totalorder %s261, %s263
      %p267 = scmp.eq.s32.totalorder %s33, 0
      %p268 = por %p266, %p267
      %p269 = scmp.ne.s32.totalorder %s261, %s263
      %p270 = scmp.eq.s32.totalorder %s38, 1
      %p271 = por %p269, %p270
      %p272 = scmp.ne.s32.totalorder %s263, %s264
      %p273 = scmp.eq.s32.totalorder %s38, 0
      %p274 = por %p272, %p273
      %p275 = scmp.ne.s32.totalorder %s263, %s264
      %p276 = scmp.eq.s32.totalorder %s39, 1
      %p277 = por %p275, %p276
      %p279 = scmp.ne.s32.totalorder %s264, %s278
      %p280 = scmp.eq.s32.totalorder %s39, 0
      %p281 = por %p279, %p280
      %s283 = sadd.s32 %s282, 1
      %p286 = scmp.eq.s32.totalorder %s33, 1
      %p287 = scmp.ne.s32.totalorder %s282, %s284
      %p288 = scmp.eq.s32.totalorder %s33, 0
      %p289 = por %p287, %p288
      %p290 = scmp.ne.s32.totalorder %s282, %s284
      %p291 = scmp.eq.s32.totalorder %s38, 1
      %p292 = por %p290, %p291
      %p293 = scmp.ne.s32.totalorder %s284, %s285
      %p294 = scmp.eq.s32.totalorder %s38, 0
      %p295 = por %p293, %p294
      %p296 = scmp.ne.s32.totalorder %s284, %s285
      %p297 = scmp.eq.s32.totalorder %s39, 1
      %p298 = por %p296, %p297
      %p300 = scmp.ne.s32.totalorder %s285, %s299
      %p301 = scmp.eq.s32.totalorder %s39, 0
      %p302 = por %p300, %p301
      %s304 = sadd.s32 %s303, 1
      %p307 = scmp.eq.s32.totalorder %s33, 1
      %p308 = scmp.ne.s32.totalorder %s303, %s305
      %p309 = scmp.eq.s32.totalorder %s33, 0
      %p310 = por %p308, %p309
      %p311 = scmp.ne.s32.totalorder %s303, %s305
      %p312 = scmp.eq.s32.totalorder %s38, 1
      %p313 = por %p311, %p312
      %p314 = scmp.ne.s32.totalorder %s305, %s306
      %p315 = scmp.eq.s32.totalorder %s38, 0
      %p316 = por %p314, %p315
      %p317 = scmp.ne.s32.totalorder %s305, %s306
      %p318 = scmp.eq.s32.totalorder %s39, 1
      %p319 = por %p317, %p318
      %p321 = scmp.ne.s32.totalorder %s306, %s320
      %p322 = scmp.eq.s32.totalorder %s39, 0
      %p323 = por %p321, %p322
      %s325 = sadd.s32 %s324, 1
      %p328 = scmp.eq.s32.totalorder %s33, 1
      %p329 = scmp.ne.s32.totalorder %s324, %s326
      %p330 = scmp.eq.s32.totalorder %s33, 0
      %p331 = por %p329, %p330
      %p332 = scmp.ne.s32.totalorder %s324, %s326
      %p333 = scmp.eq.s32.totalorder %s38, 1
      %p334 = por %p332, %p333
      %p335 = scmp.ne.s32.totalorder %s326, %s327
      %p336 = scmp.eq.s32.totalorder %s38, 0
      %p337 = por %p335, %p336
      %p338 = scmp.ne.s32.totalorder %s326, %s327
      %p339 = scmp.eq.s32.totalorder %s39, 1
      %p340 = por %p338, %p339
      %p342 = scmp.ne.s32.totalorder %s327, %s341
      %p343 = scmp.eq.s32.totalorder %s39, 0
      %p344 = por %p342, %p343
      %s346 = sadd.s32 %s345, 1
      %p349 = scmp.eq.s32.totalorder %s33, 1
      %p350 = scmp.ne.s32.totalorder %s345, %s347
      %p351 = scmp.eq.s32.totalorder %s33, 0
      %p352 = por %p350, %p351
      %p353 = scmp.ne.s32.totalorder %s345, %s347
      %p354 = scmp.eq.s32.totalorder %s38, 1
      %p355 = por %p353, %p354
      %p356 = scmp.ne.s32.totalorder %s347, %s348
      %p357 = scmp.eq.s32.totalorder %s38, 0
      %p358 = por %p356, %p357
      %p359 = scmp.ne.s32.totalorder %s347, %s348
      %p360 = scmp.eq.s32.totalorder %s39, 1
      %p361 = por %p359, %p360
      %p363 = scmp.ne.s32.totalorder %s348, %s362
      %p364 = scmp.eq.s32.totalorder %s39, 0
      %p365 = por %p363, %p364
      %s367 = sadd.s32 %s366, 1
      %p370 = scmp.eq.s32.totalorder %s33, 1
      %p371 = scmp.ne.s32.totalorder %s366, %s368
      %p372 = scmp.eq.s32.totalorder %s33, 0
      %p373 = por %p371, %p372
      %p374 = scmp.ne.s32.totalorder %s366, %s368
      %p375 = scmp.eq.s32.totalorder %s38, 1
      %p376 = por %p374, %p375
      %p377 = scmp.ne.s32.totalorder %s368, %s369
      %p378 = scmp.eq.s32.totalorder %s38, 0
      %p379 = por %p377, %p378
      %p380 = scmp.ne.s32.totalorder %s368, %s369
      %p381 = scmp.eq.s32.totalorder %s39, 1
      %p382 = por %p380, %p381
      %p384 = scmp.ne.s32.totalorder %s369, %s383
      %p385 = scmp.eq.s32.totalorder %s39, 0
      %p386 = por %p384, %p385
      %s387 = ssub.s32 %s33, %s40
      %p388 = scmp.eq.s32.totalorder %s387, 0
      %s390 = sadd.s32 %s389, 1
      %s391 = scalar_select %p388, %s389, %s390
      %p394 = pneg %p388
      %p395 = scmp.eq.s32.totalorder %s33, 1
      %p396 = por %p394, %p395
      %p397 = scmp.ne.s32.totalorder %s389, %s392
      %p398 = scmp.eq.s32.totalorder %s33, 0
      %p399 = por %p397, %p398
      %p400 = scmp.ne.s32.totalorder %s389, %s392
      %p401 = scmp.eq.s32.totalorder %s38, 1
      %p402 = por %p400, %p401
      %p403 = scmp.ne.s32.totalorder %s392, %s393
      %p404 = scmp.eq.s32.totalorder %s38, 0
      %p405 = por %p403, %p404
      %p406 = scmp.ne.s32.totalorder %s392, %s393
      %p407 = scmp.eq.s32.totalorder %s39, 1
      %p408 = por %p406, %p407
      %p410 = scmp.ne.s32.totalorder %s393, %s409
      %p411 = scmp.eq.s32.totalorder %s39, 0
      %p412 = por %p410, %p411
      %p413 = scmp.le.s32.totalorder 1, %s33
      %p414 = scmp.lt.s32.totalorder %s33, 3
      %p415 = pnand %p413, %p414
      %p416 = pneg %p415
      // Predicated region
      $region9: #{tpu_custom_call.1} parent=5 // pred_check
        _
      $region10: #{tpu_custom_call.1} parent=5 // pred_check_branch
        %418 = sbr.rel (%p415) target = $region12
      $region11: #{tpu_custom_call.1} parent=5 // pred_region
        %s419 = ssub.s32 %s33, 1
        // Predicated region
        $region13: #{tpu_custom_call.1} parent=11 // pred_check
          %p420 = pneg %p106
        $region14: #{tpu_custom_call.1} parent=11 // pred_check_branch
          %422 = sbr.rel (%p420) target = $region16
        $region15: #{tpu_custom_call.1} parent=11 // pred_region
          %s424 = ssub.s32 6144, 6144
          %425 = vsyncadd [#allocation6], %s424
          %s426 = sshll.u32 [#allocation7], 4
          %s427 = int_to_ptr.vmem [resolvable:$true] %s426
          %432 = dma.hbm_to_vmem [thread:$0]  %s2, 6144, %s427, [#allocation6], 128, 128, 8
        $region16: #{tpu_custom_call.1} parent=11 // pred_fallthru
          _
        // Predicated region
        $region17: #{tpu_custom_call.1} parent=11 // pred_check
          %p433 = pneg %p127
        $region18: #{tpu_custom_call.1} parent=11 // pred_check_branch
          %435 = sbr.rel (%p433) target = $region20
        $region19: #{tpu_custom_call.1} parent=11 // pred_region
          _
        $region20: #{tpu_custom_call.1} parent=11 // pred_fallthru
          _
        // Predicated region
        $region21: #{tpu_custom_call.1} parent=11 // pred_check
          %p436 = pneg %p148
        $region22: #{tpu_custom_call.1} parent=11 // pred_check_branch
          %438 = sbr.rel (%p436) target = $region24
        $region23: #{tpu_custom_call.1} parent=11 // pred_region
          _
        $region24: #{tpu_custom_call.1} parent=11 // pred_fallthru
          _
        // Predicated region
        $region25: #{tpu_custom_call.1} parent=11 // pred_check
          %p439 = pneg %p169
        $region26: #{tpu_custom_call.1} parent=11 // pred_check_branch
          %441 = sbr.rel (%p439) target = $region28
        $region27: #{tpu_custom_call.1} parent=11 // pred_region
          _
        $region28: #{tpu_custom_call.1} parent=11 // pred_fallthru
          _
        // Predicated region
        $region29: #{tpu_custom_call.1} parent=11 // pred_check
          %p442 = pneg %p190
        $region30: #{tpu_custom_call.1} parent=11 // pred_check_branch
          %444 = sbr.rel (%p442) target = $region32
        $region31: #{tpu_custom_call.1} parent=11 // pred_region
          %s446 = ssub.s32 4096, 4096
          %447 = vsyncadd [#allocation9], %s446
          %s448 = sshll.u32 [#allocation8], 4
          %s449 = int_to_ptr.vmem [resolvable:$true] %s448
          %454 = dma.hbm_to_vmem [thread:$0]  %s6, 4096, %s449, [#allocation9], 128, 128, 8
        $region32: #{tpu_custom_call.1} parent=11 // pred_fallthru
          _
        // Predicated region
        $region33: #{tpu_custom_call.1} parent=11 // pred_check
          %p455 = pneg %p211
        $region34: #{tpu_custom_call.1} parent=11 // pred_check_branch
          %457 = sbr.rel (%p455) target = $region36
        $region35: #{tpu_custom_call.1} parent=11 // pred_region
          _
        $region36: #{tpu_custom_call.1} parent=11 // pred_fallthru
          _
        // Predicated region
        $region37: #{tpu_custom_call.1} parent=11 // pred_check
          %p458 = pneg %p232
        $region38: #{tpu_custom_call.1} parent=11 // pred_check_branch
          %460 = sbr.rel (%p458) target = $region40
        $region39: #{tpu_custom_call.1} parent=11 // pred_region
          _
        $region40: #{tpu_custom_call.1} parent=11 // pred_fallthru
          _
        // Predicated region
        $region41: #{tpu_custom_call.1} parent=11 // pred_check
          %p461 = pneg %p253
        $region42: #{tpu_custom_call.1} parent=11 // pred_check_branch
          %463 = sbr.rel (%p461) target = $region44
        $region43: #{tpu_custom_call.1} parent=11 // pred_region
          _
        $region44: #{tpu_custom_call.1} parent=11 // pred_fallthru
          _
        // Predicated region
        $region45: #{tpu_custom_call.1} parent=11 // pred_check
          %p464 = pneg %p274
        $region46: #{tpu_custom_call.1} parent=11 // pred_check_branch
          %466 = sbr.rel (%p464) target = $region48
        $region47: #{tpu_custom_call.1} parent=11 // pred_region
          %s468 = ssub.s32 4096, 4096
          %469 = vsyncadd [#allocation9], %s468
          %s470 = sshll.u32 [#allocation10], 4
          %s471 = int_to_ptr.vmem [resolvable:$true] %s470
          %476 = dma.hbm_to_vmem [thread:$0]  %s10, 4096, %s471, [#allocation9], 128, 128, 8
        $region48: #{tpu_custom_call.1} parent=11 // pred_fallthru
          _
        // Predicated region
        $region49: #{tpu_custom_call.1} parent=11 // pred_check
          %p477 = pneg %p295
        $region50: #{tpu_custom_call.1} parent=11 // pred_check_branch
          %479 = sbr.rel (%p477) target = $region52
        $region51: #{tpu_custom_call.1} parent=11 // pred_region
          _
        $region52: #{tpu_custom_call.1} parent=11 // pred_fallthru
          _
        // Predicated region
        $region53: #{tpu_custom_call.1} parent=11 // pred_check
          %p480 = pneg %p316
        $region54: #{tpu_custom_call.1} parent=11 // pred_check_branch
          %482 = sbr.rel (%p480) target = $region56
        $region55: #{tpu_custom_call.1} parent=11 // pred_region
          _
        $region56: #{tpu_custom_call.1} parent=11 // pred_fallthru
          _
        // Predicated region
        $region57: #{tpu_custom_call.1} parent=11 // pred_check
          %p483 = pneg %p337
        $region58: #{tpu_custom_call.1} parent=11 // pred_check_branch
          %485 = sbr.rel (%p483) target = $region60
        $region59: #{tpu_custom_call.1} parent=11 // pred_region
          _
        $region60: #{tpu_custom_call.1} parent=11 // pred_fallthru
          _
        // Predicated region
        $region61: #{tpu_custom_call.1} parent=11 // pred_check
          %p486 = pneg %p358
        $region62: #{tpu_custom_call.1} parent=11 // pred_check_branch
          %488 = sbr.rel (%p486) target = $region64
        $region63: #{tpu_custom_call.1} parent=11 // pred_region
          %s490 = ssub.s32 4096, 4096
          %491 = vsyncadd [#allocation12], %s490
          %s492 = sshll.u32 [#allocation11], 4
          %s493 = int_to_ptr.vmem [resolvable:$true] %s492
          %498 = dma.hbm_to_vmem [thread:$0]  %s14, 4096, %s493, [#allocation12], 128, 128, 8
        $region64: #{tpu_custom_call.1} parent=11 // pred_fallthru
          _
        // Predicated region
        $region65: #{tpu_custom_call.1} parent=11 // pred_check
          %p499 = pneg %p379
        $region66: #{tpu_custom_call.1} parent=11 // pred_check_branch
          %501 = sbr.rel (%p499) target = $region68
        $region67: #{tpu_custom_call.1} parent=11 // pred_region
          _
        $region68: #{tpu_custom_call.1} parent=11 // pred_fallthru
          _
      $region12: #{tpu_custom_call.1} parent=5 // pred_fallthru
        _
      %p502 = scmp.lt.s32.totalorder %s33, 2
      // Predicated region
      $region69: #{tpu_custom_call.1} parent=5 // pred_check
        %p503 = pneg %p502
      $region70: #{tpu_custom_call.1} parent=5 // pred_check_branch
        %505 = sbr.rel (%p503) target = $region72
      $region71: #{tpu_custom_call.1} parent=5 // pred_region
        // Predicated region
        $region73: #{tpu_custom_call.1} parent=71 // pred_check
          %p506 = pneg %p53
        $region74: #{tpu_custom_call.1} parent=71 // pred_check_branch
          %508 = sbr.rel (%p506) target = $region76
        $region75: #{tpu_custom_call.1} parent=71 // pred_region
          %s509 = sand.u32 %s43, 1
          %s510 = scalar_lea.sflag [#allocation3], %s509
          %s511 = sand.u32 %s43, 1
          %s512 = smul.addr %s511, 48
          %s513 = scalar_lea.vmem [#allocation2], %s512
          %s514 = smul.u32 4, %s33
          %s516 = ssub.s32 768, 768
          %517 = vsyncadd %s510, %s516
          %s518 = smul.addr %s514, 3
          %s519 = smul.addr %s518, 64
          %s520 = scalar_lea.hbm %s0, %s519
          %s521 = sshll.u32 %s513, 4
          %s522 = int_to_ptr.vmem [resolvable:$true] %s521
          %527 = dma.hbm_to_vmem [thread:$0]  %s520, 768, %s522, %s510, 192, 192, 12
        $region76: #{tpu_custom_call.1} parent=71 // pred_fallthru
          _
        // Predicated region
        $region77: #{tpu_custom_call.1} parent=71 // pred_check
          %p528 = pneg %p79
        $region78: #{tpu_custom_call.1} parent=71 // pred_check_branch
          %530 = sbr.rel (%p528) target = $region80
        $region79: #{tpu_custom_call.1} parent=71 // pred_region
          %s531 = sand.u32 %s33, 1
          %s532 = scalar_lea.sflag [#allocation6], %s531
          %s533 = sand.u32 %s69, 1
          %s534 = smul.addr %s533, 32
          %s535 = scalar_lea.vmem [#allocation5], %s534
          %s536 = smul.u32 4, %s33
          %s538 = ssub.s32 512, 512
          %539 = vsyncadd %s532, %s538
          %s540 = smul.addr %s536, 128
          %s541 = scalar_lea.hbm %s1, %s540
          %s542 = sshll.u32 %s535, 4
          %s543 = int_to_ptr.vmem [resolvable:$true] %s542
          %548 = dma.hbm_to_vmem [thread:$0]  %s541, 512, %s543, %s532, 128, 128, 8
        $region80: #{tpu_custom_call.1} parent=71 // pred_fallthru
          _
      $region72: #{tpu_custom_call.1} parent=5 // pred_fallthru
        _
      %p549 = scmp.le.s32.totalorder 1, %s33
      %p550 = scmp.lt.s32.totalorder %s33, 3
      %p551 = pnand %p549, %p550
      %p552 = pneg %p551
      // Predicated region
      $region81: #{tpu_custom_call.1} parent=5 // pred_check
        _
      $region82: #{tpu_custom_call.1} parent=5 // pred_check_branch
        %554 = sbr.rel (%p551) target = $region84
      $region83: #{tpu_custom_call.1} parent=5 // pred_region
        %s555 = ssub.s32 %s33, 1
        %s556 = sand.u32 %s46, 1
        %s557 = scalar_lea.sflag [#allocation3], %s556
        %s558 = sand.u32 %s46, 1
        %s559 = smul.addr %s558, 48
        %s560 = scalar_lea.vmem [#allocation2], %s559
        // Predicated region
        $region85: #{tpu_custom_call.1} parent=83 // pred_check
          %p561 = pneg %p59
        $region86: #{tpu_custom_call.1} parent=83 // pred_check_branch
          %563 = sbr.rel (%p561) target = $region88
        $region87: #{tpu_custom_call.1} parent=83 // pred_region
          %564 = dma.done %s557, 768
        $region88: #{tpu_custom_call.1} parent=83 // pred_fallthru
          _
        %s565 = sand.u32 %s38, 1
        %s566 = scalar_lea.sflag [#allocation6], %s565
        %s567 = sand.u32 %s72, 1
        %s568 = smul.addr %s567, 32
        %s569 = scalar_lea.vmem [#allocation5], %s568
        // Predicated region
        $region89: #{tpu_custom_call.1} parent=83 // pred_check
          %p570 = pneg %p85
        $region90: #{tpu_custom_call.1} parent=83 // pred_check_branch
          %572 = sbr.rel (%p570) target = $region92
        $region91: #{tpu_custom_call.1} parent=83 // pred_region
          %573 = dma.done %s566, 512
        $region92: #{tpu_custom_call.1} parent=83 // pred_fallthru
          _
        // Predicated region
        $region93: #{tpu_custom_call.1} parent=83 // pred_check
          %p574 = pneg %p106
        $region94: #{tpu_custom_call.1} parent=83 // pred_check_branch
          %576 = sbr.rel (%p574) target = $region96
        $region95: #{tpu_custom_call.1} parent=83 // pred_region
          %577 = dma.done [#allocation6], 6144
        $region96: #{tpu_custom_call.1} parent=83 // pred_fallthru
          _
        // Predicated region
        $region97: #{tpu_custom_call.1} parent=83 // pred_check
          %p578 = pneg %p190
        $region98: #{tpu_custom_call.1} parent=83 // pred_check_branch
          %580 = sbr.rel (%p578) target = $region100
        $region99: #{tpu_custom_call.1} parent=83 // pred_region
          %581 = dma.done [#allocation9], 4096
        $region100: #{tpu_custom_call.1} parent=83 // pred_fallthru
          _
        // Predicated region
        $region101: #{tpu_custom_call.1} parent=83 // pred_check
          %p582 = pneg %p274
        $region102: #{tpu_custom_call.1} parent=83 // pred_check_branch
          %584 = sbr.rel (%p582) target = $region104
        $region103: #{tpu_custom_call.1} parent=83 // pred_region
          %585 = dma.done [#allocation9], 4096
        $region104: #{tpu_custom_call.1} parent=83 // pred_fallthru
          _
        // Predicated region
        $region105: #{tpu_custom_call.1} parent=83 // pred_check
          %p586 = pneg %p358
        $region106: #{tpu_custom_call.1} parent=83 // pred_check_branch
          %588 = sbr.rel (%p586) target = $region108
        $region107: #{tpu_custom_call.1} parent=83 // pred_region
          %589 = dma.done [#allocation12], 4096
        $region108: #{tpu_custom_call.1} parent=83 // pred_fallthru
          _
        %s590 = sand.u32 %s46, 1
        %s591 = scalar_lea.sflag [#allocation3], %s590
        %s592 = sand.u32 %s46, 1
        %s593 = smul.addr %s592, 48
        %s594 = scalar_lea.vmem [#allocation2], %s593
        %p595 = pneg %p59
        %p596 = pneg %p56
        %s597 = sand.u32 %s38, 1
        %s598 = scalar_lea.sflag [#allocation6], %s597
        %s599 = sand.u32 %s72, 1
        %s600 = smul.addr %s599, 32
        %s601 = scalar_lea.vmem [#allocation5], %s600
        %p602 = pneg %p85
        %p603 = pneg %p82
        %p604 = pneg %p106
        %p605 = pneg %p103
        %p606 = pneg %p127
        %p607 = pneg %p124
        %p608 = pneg %p148
        %p609 = pneg %p145
        %p610 = pneg %p169
        %p611 = pneg %p166
        %p612 = pneg %p190
        %p613 = pneg %p187
        %p614 = pneg %p211
        %p615 = pneg %p208
        %p616 = pneg %p232
        %p617 = pneg %p229
        %p618 = pneg %p253
        %p619 = pneg %p250
        %p620 = pneg %p274
        %p621 = pneg %p271
        %p622 = pneg %p295
        %p623 = pneg %p292
        %p624 = pneg %p316
        %p625 = pneg %p313
        %p626 = pneg %p337
        %p627 = pneg %p334
        %p628 = pneg %p358
        %p629 = pneg %p355
        %p630 = pneg %p379
        %p631 = pneg %p376
        %p632 = pneg %p405
        %p633 = pneg %p402
        %s634 = sand.u32 %s392, 1
        %s635 = scalar_lea.sflag [#allocation4], %s634
        %s636 = sand.u32 %s392, 1
        %s637 = smul.addr %s636, 32
        %s638 = scalar_lea.vmem [#allocation13], %s637
        %s639 = smul.u32 4, %s38
        %s640 = smul.u32 4, %s38
        %s641 = smul.u32 4, %s38
        %v643 = vld [vmem:[%s560] sm:$0xff]
        %v644 = vld [vmem:[%s560 + $0x8] sm:$0xf]
        %v645 = vld [vmem:[%s560 + $0xc] sm:$0xff]
        %v646 = vld [vmem:[%s560 + $0x14] sm:$0xf]
        %v647 = vld [vmem:[%s560 + $0x18] sm:$0xff]
        %v648 = vld [vmem:[%s560 + $0x20] sm:$0xf]
        %v649 = vld [vmem:[%s560 + $0x24] sm:$0xff]
        %v650 = vld [vmem:[%s560 + $0x2c] sm:$0xf]
        %v651 = vunpack.c.l.bf16 %v643
        %v652 = vunpack.c.h.bf16 %v643
        %v653 = vunpack.c.l.bf16 %v644
        %v654 = vunpack.c.l.bf16 %v645
        %v655 = vunpack.c.h.bf16 %v645
        %v656 = vunpack.c.l.bf16 %v646
        %v657 = vunpack.c.l.bf16 %v647
        %v658 = vunpack.c.h.bf16 %v647
        %v659 = vunpack.c.l.bf16 %v648
        %v660 = vunpack.c.l.bf16 %v649
        %v661 = vunpack.c.h.bf16 %v649
        %v662 = vunpack.c.l.bf16 %v650
        %v663 = vld [vmem:[%s569] sm:$0xff]
        %v664 = vld [vmem:[%s569 + $0x8] sm:$0xff]
        %v665 = vld [vmem:[%s569 + $0x10] sm:$0xff]
        %v666 = vld [vmem:[%s569 + $0x18] sm:$0xff]
        %v667 = vmul.f32 %v651, %v651
        %v668 = vmul.f32 %v652, %v652
        %v669 = vmul.f32 %v653, %v653
        %v670 = vmul.f32 %v654, %v654
        %v671 = vmul.f32 %v655, %v655
        %v672 = vmul.f32 %v656, %v656
        %v673 = vmul.f32 %v657, %v657
        %v674 = vmul.f32 %v658, %v658
        %v675 = vmul.f32 %v659, %v659
        %v676 = vmul.f32 %v660, %v660
        %v677 = vmul.f32 %v661, %v661
        %v678 = vmul.f32 %v662, %v662
        %v679 = vadd.f32 %v667, %v668
        %v680 = vadd.f32 %v679, %v669
        %681 = vadd.xlane.f32.xlu0 %v680
        %v682 = vpop.xlane.xlu0 %681
        %v683 = vadd.f32 %v670, %v671
        %v684 = vadd.f32 %v683, %v672
        %685 = vadd.xlane.f32.xlu0 %v684
        %v686 = vpop.xlane.xlu0 %685
        %v687 = vadd.f32 %v673, %v674
        %v688 = vadd.f32 %v687, %v675
        %689 = vadd.xlane.f32.xlu0 %v688
        %v690 = vpop.xlane.xlu0 %689
        %v691 = vadd.f32 %v676, %v677
        %v692 = vadd.f32 %v691, %v678
        %693 = vadd.xlane.f32.xlu0 %v692
        %v694 = vpop.xlane.xlu0 %693
        %v695 = vmax.f32 %v682, 1e-24
        %v696 = vmax.f32 %v686, 1e-24
        %v697 = vmax.f32 %v690, 1e-24
        %v698 = vmax.f32 %v694, 1e-24
        %v699 = vrsqrt.pop %v695
        %v700 = vrsqrt.pop %v696
        %v701 = vrsqrt.pop %v697
        %v702 = vrsqrt.pop %v698
        %v703 = vmul.f32 %v651, %v699
        %v704 = vmul.f32 %v652, %v699
        %v705 = vmul.f32 %v653, %v699
        %v706 = vmul.f32 %v654, %v700
        %v707 = vmul.f32 %v655, %v700
        %v708 = vmul.f32 %v656, %v700
        %v709 = vmul.f32 %v657, %v701
        %v710 = vmul.f32 %v658, %v701
        %v711 = vmul.f32 %v659, %v701
        %v712 = vmul.f32 %v660, %v702
        %v713 = vmul.f32 %v661, %v702
        %v714 = vmul.f32 %v662, %v702
        %v715 = vpack.c.bf16 %v706, %v703
        %v716 = vpack.c.bf16 %v707, %v704
        %v717 = vpack.c.bf16 %v708, %v705
        %v718 = vpack.c.bf16 %v712, %v709
        %v719 = vpack.c.bf16 %v713, %v710
        %v720 = vpack.c.bf16 %v714, %v711
        %v721 = vld [vmem:[#allocation7] sm:$0xff]
        %v722 = vld [vmem:[#allocation7 + $0x8] sm:$0xff]
        %v723 = vld [vmem:[#allocation7 + $0x10] sm:$0xff]
        %v724 = vld [vmem:[#allocation7 + $0x18] sm:$0xff]
        %v725 = vld [vmem:[#allocation7 + $0x20] sm:$0xff]
        %v726 = vld [vmem:[#allocation7 + $0x28] sm:$0xff]
        %v727 = vld [vmem:[#allocation7 + $0x30] sm:$0xff]
        %v728 = vld [vmem:[#allocation7 + $0x38] sm:$0xff]
        %v729 = vld [vmem:[#allocation7 + $0x40] sm:$0xff]
        %v730 = vld [vmem:[#allocation7 + $0x48] sm:$0xff]
        %v731 = vld [vmem:[#allocation7 + $0x50] sm:$0xff]
        %v732 = vld [vmem:[#allocation7 + $0x58] sm:$0xff]
        %v733 = vld [vmem:[#allocation7 + $0x60] sm:$0xff]
        %v734 = vld [vmem:[#allocation7 + $0x68] sm:$0xff]
        %v735 = vld [vmem:[#allocation7 + $0x70] sm:$0xff]
        %v736 = vld [vmem:[#allocation7 + $0x78] sm:$0xff]
        %v737 = vld [vmem:[#allocation7 + $0x80] sm:$0xff]
        %v738 = vld [vmem:[#allocation7 + $0x88] sm:$0xff]
        %v739 = vld [vmem:[#allocation7 + $0x90] sm:$0xff]
        %v740 = vld [vmem:[#allocation7 + $0x98] sm:$0xff]
        %v741 = vld [vmem:[#allocation7 + $0xa0] sm:$0xff]
        %v742 = vld [vmem:[#allocation7 + $0xa8] sm:$0xff]
        %v743 = vld [vmem:[#allocation7 + $0xb0] sm:$0xff]
        %v744 = vld [vmem:[#allocation7 + $0xb8] sm:$0xff]
        %v745 = vld [vmem:[#allocation7 + $0xc0] sm:$0xff]
        %v746 = vld [vmem:[#allocation7 + $0xc8] sm:$0xff]
        %v747 = vld [vmem:[#allocation7 + $0xd0] sm:$0xff]
        %v748 = vld [vmem:[#allocation7 + $0xd8] sm:$0xff]
        %v749 = vld [vmem:[#allocation7 + $0xe0] sm:$0xff]
        %v750 = vld [vmem:[#allocation7 + $0xe8] sm:$0xff]
        %v751 = vld [vmem:[#allocation7 + $0xf0] sm:$0xff]
        %v752 = vld [vmem:[#allocation7 + $0xf8] sm:$0xff]
        %v753 = vld [vmem:[#allocation7 + $0x100] sm:$0xff]
        %v754 = vld [vmem:[#allocation7 + $0x108] sm:$0xff]
        %v755 = vld [vmem:[#allocation7 + $0x110] sm:$0xff]
        %v756 = vld [vmem:[#allocation7 + $0x118] sm:$0xff]
        %v757 = vld [vmem:[#allocation7 + $0x120] sm:$0xff]
        %v758 = vld [vmem:[#allocation7 + $0x128] sm:$0xff]
        %v759 = vld [vmem:[#allocation7 + $0x130] sm:$0xff]
        %v760 = vld [vmem:[#allocation7 + $0x138] sm:$0xff]
        %v761 = vld [vmem:[#allocation7 + $0x140] sm:$0xff]
        %v762 = vld [vmem:[#allocation7 + $0x148] sm:$0xff]
        %v763 = vld [vmem:[#allocation7 + $0x150] sm:$0xff]
        %v764 = vld [vmem:[#allocation7 + $0x158] sm:$0xff]
        %v765 = vld [vmem:[#allocation7 + $0x160] sm:$0xff]
        %v766 = vld [vmem:[#allocation7 + $0x168] sm:$0xff]
        %v767 = vld [vmem:[#allocation7 + $0x170] sm:$0xff]
        %v768 = vld [vmem:[#allocation7 + $0x178] sm:$0xff]
        %v769 = vld [vmem:[%s3] sm:$0x3]
        %v771 = vlaneseq
        %v772 = vshrl.u32 %v771, 7
        %v773 = vsub.s32 0, %v772
        %v774 = vrot.slane %v769, %v773
        %v775 = vlaneseq
        %v776 = vshrl.u32 %v775, 7
        %v777 = vsub.s32 1, %v776
        %v778 = vrot.slane %v769, %v777
        %v829 = vunpack.c.l.b16 %v721
        %v830 = vunpack.c.h.b16 %v721
        %v831 = vunpack.c.l.b16 %v722
        %v832 = vunpack.c.h.b16 %v722
        %v833 = vunpack.c.l.b16 %v723
        %v834 = vunpack.c.h.b16 %v723
        %v835 = vunpack.c.l.b16 %v724
        %v836 = vunpack.c.h.b16 %v724
        %v837 = vunpack.c.l.b16 %v725
        %v838 = vunpack.c.h.b16 %v725
        %v839 = vunpack.c.l.b16 %v726
        %v840 = vunpack.c.h.b16 %v726
        %v841 = vunpack.c.l.b16 %v727
        %v842 = vunpack.c.h.b16 %v727
        %v843 = vunpack.c.l.b16 %v728
        %v844 = vunpack.c.h.b16 %v728
        %v845 = vunpack.c.l.b16 %v729
        %v846 = vunpack.c.h.b16 %v729
        %v847 = vunpack.c.l.b16 %v730
        %v848 = vunpack.c.h.b16 %v730
        %v849 = vunpack.c.l.b16 %v731
        %v850 = vunpack.c.h.b16 %v731
        %v851 = vunpack.c.l.b16 %v732
        %v852 = vunpack.c.h.b16 %v732
        %v853 = vunpack.c.l.b16 %v733
        %v854 = vunpack.c.h.b16 %v733
        %v855 = vunpack.c.l.b16 %v734
        %v856 = vunpack.c.h.b16 %v734
        %v857 = vunpack.c.l.b16 %v735
        %v858 = vunpack.c.h.b16 %v735
        %v859 = vunpack.c.l.b16 %v736
        %v860 = vunpack.c.h.b16 %v736
        %v861 = vunpack.c.l.b16 %v737
        %v862 = vunpack.c.h.b16 %v737
        %v863 = vunpack.c.l.b16 %v738
        %v864 = vunpack.c.h.b16 %v738
        %v865 = vunpack.c.l.b16 %v739
        %v866 = vunpack.c.h.b16 %v739
        %v867 = vunpack.c.l.b16 %v740
        %v868 = vunpack.c.h.b16 %v740
        %v869 = vunpack.c.l.b16 %v741
        %v870 = vunpack.c.h.b16 %v741
        %v871 = vunpack.c.l.b16 %v742
        %v872 = vunpack.c.h.b16 %v742
        %v873 = vunpack.c.l.b16 %v743
        %v874 = vunpack.c.h.b16 %v743
        %v875 = vunpack.c.l.b16 %v744
        %v876 = vunpack.c.h.b16 %v744
        %v877 = vunpack.c.l.b16 %v745
        %v878 = vunpack.c.h.b16 %v745
        %v879 = vunpack.c.l.b16 %v746
        %v880 = vunpack.c.h.b16 %v746
        %v881 = vunpack.c.l.b16 %v747
        %v882 = vunpack.c.h.b16 %v747
        %v883 = vunpack.c.l.b16 %v748
        %v884 = vunpack.c.h.b16 %v748
        %v885 = vunpack.c.l.b16 %v749
        %v886 = vunpack.c.h.b16 %v749
        %v887 = vunpack.c.l.b16 %v750
        %v888 = vunpack.c.h.b16 %v750
        %v889 = vunpack.c.l.b16 %v751
        %v890 = vunpack.c.h.b16 %v751
        %v891 = vunpack.c.l.b16 %v752
        %v892 = vunpack.c.h.b16 %v752
        %v893 = vunpack.c.l.b16 %v753
        %v894 = vunpack.c.h.b16 %v753
        %v895 = vunpack.c.l.b16 %v754
        %v896 = vunpack.c.h.b16 %v754
        %v897 = vunpack.c.l.b16 %v755
        %v898 = vunpack.c.h.b16 %v755
        %v899 = vunpack.c.l.b16 %v756
        %v900 = vunpack.c.h.b16 %v756
        %v901 = vunpack.c.l.b16 %v757
        %v902 = vunpack.c.h.b16 %v757
        %v903 = vunpack.c.l.b16 %v758
        %v904 = vunpack.c.h.b16 %v758
        %v905 = vunpack.c.l.b16 %v759
        %v906 = vunpack.c.h.b16 %v759
        %v907 = vunpack.c.l.b16 %v760
        %v908 = vunpack.c.h.b16 %v760
        %v909 = vunpack.c.l.b16 %v761
        %v910 = vunpack.c.h.b16 %v761
        %v911 = vunpack.c.l.b16 %v762
        %v912 = vunpack.c.h.b16 %v762
        %v913 = vunpack.c.l.b16 %v763
        %v914 = vunpack.c.h.b16 %v763
        %v915 = vunpack.c.l.b16 %v764
        %v916 = vunpack.c.h.b16 %v764
        %v917 = vunpack.c.l.b16 %v765
        %v918 = vunpack.c.h.b16 %v765
        %v919 = vunpack.c.l.b16 %v766
        %v920 = vunpack.c.h.b16 %v766
        %v921 = vunpack.c.l.b16 %v767
        %v922 = vunpack.c.h.b16 %v767
        %v923 = vunpack.c.l.b16 %v768
        %v924 = vunpack.c.h.b16 %v768
        %v925 = vpack.c.b16 %v831, %v829
        %v926 = vpack.c.b16 %v832, %v830
        %v927 = vpack.c.b16 %v835, %v833
        %v928 = vpack.c.b16 %v836, %v834
        %v929 = vpack.c.b16 %v839, %v837
        %v930 = vpack.c.b16 %v840, %v838
        %v931 = vpack.c.b16 %v843, %v841
        %v932 = vpack.c.b16 %v844, %v842
        %v933 = vpack.c.b16 %v847, %v845
        %v934 = vpack.c.b16 %v848, %v846
        %v935 = vpack.c.b16 %v851, %v849
        %v936 = vpack.c.b16 %v852, %v850
        %v937 = vpack.c.b16 %v855, %v853
        %v938 = vpack.c.b16 %v856, %v854
        %v939 = vpack.c.b16 %v859, %v857
        %v940 = vpack.c.b16 %v860, %v858
        %v941 = vpack.c.b16 %v863, %v861
        %v942 = vpack.c.b16 %v864, %v862
        %v943 = vpack.c.b16 %v867, %v865
        %v944 = vpack.c.b16 %v868, %v866
        %v945 = vpack.c.b16 %v871, %v869
        %v946 = vpack.c.b16 %v872, %v870
        %v947 = vpack.c.b16 %v875, %v873
        %v948 = vpack.c.b16 %v876, %v874
        %v949 = vpack.c.b16 %v879, %v877
        %v950 = vpack.c.b16 %v880, %v878
        %v951 = vpack.c.b16 %v883, %v881
        %v952 = vpack.c.b16 %v884, %v882
        %v953 = vpack.c.b16 %v887, %v885
        %v954 = vpack.c.b16 %v888, %v886
        %v955 = vpack.c.b16 %v891, %v889
        %v956 = vpack.c.b16 %v892, %v890
        %v957 = vpack.c.b16 %v895, %v893
        %v958 = vpack.c.b16 %v896, %v894
        %v959 = vpack.c.b16 %v899, %v897
        %v960 = vpack.c.b16 %v900, %v898
        %v961 = vpack.c.b16 %v903, %v901
        %v962 = vpack.c.b16 %v904, %v902
        %v963 = vpack.c.b16 %v907, %v905
        %v964 = vpack.c.b16 %v908, %v906
        %v965 = vpack.c.b16 %v911, %v909
        %v966 = vpack.c.b16 %v912, %v910
        %v967 = vpack.c.b16 %v915, %v913
        %v968 = vpack.c.b16 %v916, %v914
        %v969 = vpack.c.b16 %v919, %v917
        %v970 = vpack.c.b16 %v920, %v918
        %v971 = vpack.c.b16 %v923, %v921
        %v972 = vpack.c.b16 %v924, %v922
        %1021 = vmatprep.subr.bf16.mxu0 %v940
        %1022 = vmatpush1.bf16.msra.mxu0 %v939
        %1023 = vmatprep.subr.bf16.mxu0 %v938
        %1024 = vmatpush1.bf16.msra.mxu0 %v937
        %1025 = vmatprep.subr.bf16.mxu0 %v936
        %1026 = vmatpush1.bf16.msra.mxu0 %v935
        %1027 = vmatprep.subr.bf16.mxu0 %v934
        %1028 = vmatpush1.bf16.msra.mxu0 %v933
        %1029 = vmatprep.subr.bf16.mxu0 %v932
        %1030 = vmatpush1.bf16.msra.mxu0 %v931
        %1031 = vmatprep.subr.bf16.mxu0 %v930
        %1032 = vmatpush1.bf16.msra.mxu0 %v929
        %1033 = vmatprep.subr.bf16.mxu0 %v928
        %1034 = vmatpush1.bf16.msra.mxu0 %v927
        %1035 = vmatprep.subr.bf16.mxu0 %v926
        %1036 = vmatpush1.bf16.msra.mxu0 %v925
        %1037 = vmatprep.subr.bf16.mxu0 %v956
        %1038 = vmatpush2.bf16.msra.mxu0 %v955
        %1039 = vmatprep.subr.bf16.mxu0 %v954
        %1040 = vmatpush2.bf16.msra.mxu0 %v953
        %1041 = vmatprep.subr.bf16.mxu0 %v952
        %1042 = vmatpush2.bf16.msra.mxu0 %v951
        %1043 = vmatprep.subr.bf16.mxu0 %v950
        %1044 = vmatpush2.bf16.msra.mxu0 %v949
        %1045 = vmatprep.subr.bf16.mxu0 %v948
        %1046 = vmatpush2.bf16.msra.mxu0 %v947
        %1047 = vmatprep.subr.bf16.mxu0 %v946
        %1048 = vmatpush2.bf16.msra.mxu0 %v945
        %1049 = vmatprep.subr.bf16.mxu0 %v944
        %1050 = vmatpush2.bf16.msra.mxu0 %v943
        %1051 = vmatprep.subr.bf16.mxu0 %v942
        %1052 = vmatpush2.bf16.msra.mxu0 %v941
        %1053 = vmatprep.mubr.bf16.mxu0 %v716
        %1054 = vmatmul.mubr.bf16.gmra.mxu0 %v715
        %v1055 = vpop.f32.mrf.mxu0
        %v1056 = vadd.f32 %v774, %v1055
        %v1057 = vpop.f32.mrf.mxu0
        %v1058 = vadd.f32 %v778, %v1057
        %v1059 = vpop.f32.mrf.mxu0
        %v1060 = vadd.f32 %v774, %v1059
        %v1061 = vpop.f32.mrf.mxu0
        %v1062 = vadd.f32 %v778, %v1061
        %1063 = vmatprep.mubr.bf16.mxu0 %v719
        %1064 = vmatmul.mubr.bf16.gmra.mxu0 %v718
        %v1065 = vpop.f32.mrf.mxu0
        %v1066 = vadd.f32 %v774, %v1065
        %v1067 = vpop.f32.mrf.mxu0
        %v1068 = vadd.f32 %v778, %v1067
        %v1069 = vpop.f32.mrf.mxu0
        %v1070 = vadd.f32 %v774, %v1069
        %v1071 = vpop.f32.mrf.mxu0
        %v1072 = vadd.f32 %v778, %v1071
        %1073 = vdwg.mxu0
        %1074 = vmatprep.subr.bf16.mxu0 %v972
        %1075 = vmatpush1.bf16.msra.mxu0 %v971
        %1076 = vmatprep.subr.bf16.mxu0 %v970
        %1077 = vmatpush1.bf16.msra.mxu0 %v969
        %1078 = vmatprep.subr.bf16.mxu0 %v968
        %1079 = vmatpush1.bf16.msra.mxu0 %v967
        %1080 = vmatprep.subr.bf16.mxu0 %v966
        %1081 = vmatpush1.bf16.msra.mxu0 %v965
        %1082 = vmatprep.subr.bf16.mxu0 %v964
        %1083 = vmatpush1.bf16.msra.mxu0 %v963
        %1084 = vmatprep.subr.bf16.mxu0 %v962
        %1085 = vmatpush1.bf16.msra.mxu0 %v961
        %1086 = vmatprep.subr.bf16.mxu0 %v960
        %1087 = vmatpush1.bf16.msra.mxu0 %v959
        %1088 = vmatprep.subr.bf16.mxu0 %v958
        %1089 = vmatpush1.bf16.msra.mxu0 %v957
        %1090 = vmatprep.subr.bf16.mxu0 0
        %1091 = vmatpush2.bf16.msra.mxu0 0
        %1092 = vmatprep.subr.bf16.mxu0 0
        %1093 = vmatpush2.bf16.msra.mxu0 0
        %1094 = vmatprep.subr.bf16.mxu0 0
        %1095 = vmatpush2.bf16.msra.mxu0 0
        %1096 = vmatprep.subr.bf16.mxu0 0
        %1097 = vmatpush2.bf16.msra.mxu0 0
        %1098 = vmatprep.subr.bf16.mxu0 0
        %1099 = vmatpush2.bf16.msra.mxu0 0
        %1100 = vmatprep.subr.bf16.mxu0 0
        %1101 = vmatpush2.bf16.msra.mxu0 0
        %1102 = vmatprep.subr.bf16.mxu0 0
        %1103 = vmatpush2.bf16.msra.mxu0 0
        %1104 = vmatprep.subr.bf16.mxu0 0
        %1105 = vmatpush2.bf16.msra.mxu0 0
        %1106 = vmatprep.mubr.bf16.mxu0 0
        %1107 = vmatmul.mubr.bf16.gmra.mxu0 %v717
        %v1108 = vpop.f32.mrf.mxu0
        %v1109 = vadd.f32 %v1056, %v1108
        %v1110 = vpop.f32.mrf.mxu0
        %v1111 = vadd.f32 %v1058, %v1110
        %v1112 = vpop.f32.mrf.mxu0
        %v1113 = vadd.f32 %v1060, %v1112
        %v1114 = vpop.f32.mrf.mxu0
        %v1115 = vadd.f32 %v1062, %v1114
        %1116 = vmatprep.mubr.bf16.mxu0 0
        %1117 = vmatmul.mubr.bf16.gmra.mxu0 %v720
        %v1118 = vpop.f32.mrf.mxu0
        %v1119 = vadd.f32 %v1066, %v1118
        %v1120 = vpop.f32.mrf.mxu0
        %v1121 = vadd.f32 %v1068, %v1120
        %v1122 = vpop.f32.mrf.mxu0
        %v1123 = vadd.f32 %v1070, %v1122
        %v1124 = vpop.f32.mrf.mxu0
        %v1125 = vadd.f32 %v1072, %v1124
        %1126 = vdwg.mxu0
        %v1127 = vxor.u32 %v1109, 2147483648
        %v1128 = vxor.u32 %v1111, 2147483648
        %v1129 = vxor.u32 %v1113, 2147483648
        %v1130 = vxor.u32 %v1115, 2147483648
        %v1131 = vxor.u32 %v1119, 2147483648
        %v1132 = vxor.u32 %v1121, 2147483648
        %v1133 = vxor.u32 %v1123, 2147483648
        %v1134 = vxor.u32 %v1125, 2147483648
        %v1135 = vmul.f32 %v1127, 1.442695
        %v1136 = vpow.pop %v1135
        %v1137 = vmul.f32 %v1128, 1.442695
        %v1138 = vpow.pop %v1137
        %v1139 = vmul.f32 %v1129, 1.442695
        %v1140 = vpow.pop %v1139
        %v1141 = vmul.f32 %v1130, 1.442695
        %v1142 = vpow.pop %v1141
        %v1143 = vmul.f32 %v1131, 1.442695
        %v1144 = vpow.pop %v1143
        %v1145 = vmul.f32 %v1132, 1.442695
        %v1146 = vpow.pop %v1145
        %v1147 = vmul.f32 %v1133, 1.442695
        %v1148 = vpow.pop %v1147
        %v1149 = vmul.f32 %v1134, 1.442695
        %v1150 = vpow.pop %v1149
        %v1151 = vadd.f32 %v1136, 1.0
        %v1152 = vadd.f32 %v1138, 1.0
        %v1153 = vadd.f32 %v1140, 1.0
        %v1154 = vadd.f32 %v1142, 1.0
        %v1155 = vadd.f32 %v1144, 1.0
        %v1156 = vadd.f32 %v1146, 1.0
        %v1157 = vadd.f32 %v1148, 1.0
        %v1158 = vadd.f32 %v1150, 1.0
        %v1159 = vrcp.pop %v1151
        %v1160 = vmul.f32 1.0, %v1159
        %v1161 = vrcp.pop %v1152
        %v1162 = vmul.f32 1.0, %v1161
        %v1163 = vrcp.pop %v1153
        %v1164 = vmul.f32 1.0, %v1163
        %v1165 = vrcp.pop %v1154
        %v1166 = vmul.f32 1.0, %v1165
        %v1167 = vrcp.pop %v1155
        %v1168 = vmul.f32 1.0, %v1167
        %v1169 = vrcp.pop %v1156
        %v1170 = vmul.f32 1.0, %v1169
        %v1171 = vrcp.pop %v1157
        %v1172 = vmul.f32 1.0, %v1171
        %v1173 = vrcp.pop %v1158
        %v1174 = vmul.f32 1.0, %v1173
        %v1175 = vmul.f32 %v1109, %v1160
        %v1176 = vmul.f32 %v1111, %v1162
        %v1177 = vmul.f32 %v1113, %v1164
        %v1178 = vmul.f32 %v1115, %v1166
        %v1179 = vmul.f32 %v1119, %v1168
        %v1180 = vmul.f32 %v1121, %v1170
        %v1181 = vmul.f32 %v1123, %v1172
        %v1182 = vmul.f32 %v1125, %v1174
        %v1183 = vadd.f32 %v1175, %v1176
        %1184 = vadd.xlane.f32.xlu0 %v1183
        %v1185 = vpop.xlane.xlu0 %1184
        %v1186 = vadd.f32 %v1177, %v1178
        %1187 = vadd.xlane.f32.xlu0 %v1186
        %v1188 = vpop.xlane.xlu0 %1187
        %v1189 = vadd.f32 %v1179, %v1180
        %1190 = vadd.xlane.f32.xlu0 %v1189
        %v1191 = vpop.xlane.xlu0 %1190
        %v1192 = vadd.f32 %v1181, %v1182
        %1193 = vadd.xlane.f32.xlu0 %v1192
        %v1194 = vpop.xlane.xlu0 %1193
        %v1195 = vmul.f32 %v1185, 0.00390625
        %v1196 = vmul.f32 %v1188, 0.00390625
        %v1197 = vmul.f32 %v1191, 0.00390625
        %v1198 = vmul.f32 %v1194, 0.00390625
        %v1199 = vsub.f32 %v1175, %v1195
        %v1200 = vsub.f32 %v1176, %v1195
        %v1201 = vsub.f32 %v1177, %v1196
        %v1202 = vsub.f32 %v1178, %v1196
        %v1203 = vsub.f32 %v1179, %v1197
        %v1204 = vsub.f32 %v1180, %v1197
        %v1205 = vsub.f32 %v1181, %v1198
        %v1206 = vsub.f32 %v1182, %v1198
        %v1207 = vmul.f32 %v1199, %v1199
        %v1208 = vmul.f32 %v1200, %v1200
        %v1209 = vmul.f32 %v1201, %v1201
        %v1210 = vmul.f32 %v1202, %v1202
        %v1211 = vmul.f32 %v1203, %v1203
        %v1212 = vmul.f32 %v1204, %v1204
        %v1213 = vmul.f32 %v1205, %v1205
        %v1214 = vmul.f32 %v1206, %v1206
        %v1215 = vadd.f32 %v1207, %v1208
        %1216 = vadd.xlane.f32.xlu0 %v1215
        %v1217 = vpop.xlane.xlu0 %1216
        %v1218 = vadd.f32 %v1209, %v1210
        %1219 = vadd.xlane.f32.xlu0 %v1218
        %v1220 = vpop.xlane.xlu0 %1219
        %v1221 = vadd.f32 %v1211, %v1212
        %1222 = vadd.xlane.f32.xlu0 %v1221
        %v1223 = vpop.xlane.xlu0 %1222
        %v1224 = vadd.f32 %v1213, %v1214
        %1225 = vadd.xlane.f32.xlu0 %v1224
        %v1226 = vpop.xlane.xlu0 %1225
        %v1227 = vmul.f32 %v1217, 0.00390625
        %v1228 = vmul.f32 %v1220, 0.00390625
        %v1229 = vmul.f32 %v1223, 0.00390625
        %v1230 = vmul.f32 %v1226, 0.00390625
        %v1231 = vadd.f32 %v1227, 0.1
        %v1232 = vadd.f32 %v1228, 0.1
        %v1233 = vadd.f32 %v1229, 0.1
        %v1234 = vadd.f32 %v1230, 0.1
        %v1235 = vrsqrt.pop %v1231
        %v1236 = vrsqrt.pop %v1232
        %v1237 = vrsqrt.pop %v1233
        %v1238 = vrsqrt.pop %v1234
        %v1239 = vmul.f32 %v1199, %v1235
        %v1240 = vmul.f32 %v1200, %v1235
        %v1241 = vmul.f32 %v1201, %v1236
        %v1242 = vmul.f32 %v1202, %v1236
        %v1243 = vmul.f32 %v1203, %v1237
        %v1244 = vmul.f32 %v1204, %v1237
        %v1245 = vmul.f32 %v1205, %v1238
        %v1246 = vmul.f32 %v1206, %v1238
        %v1247 = vld [vmem:[%s4] sm:$0x3]
        %v1249 = vlaneseq
        %v1250 = vshrl.u32 %v1249, 7
        %v1251 = vsub.s32 0, %v1250
        %v1252 = vrot.slane %v1247, %v1251
        %v1253 = vlaneseq
        %v1254 = vshrl.u32 %v1253, 7
        %v1255 = vsub.s32 1, %v1254
        %v1256 = vrot.slane %v1247, %v1255
        %v1259 = vmul.f32 %v1239, %v1252
        %v1260 = vmul.f32 %v1240, %v1256
        %v1261 = vmul.f32 %v1241, %v1252
        %v1262 = vmul.f32 %v1242, %v1256
        %v1263 = vmul.f32 %v1243, %v1252
        %v1264 = vmul.f32 %v1244, %v1256
        %v1265 = vmul.f32 %v1245, %v1252
        %v1266 = vmul.f32 %v1246, %v1256
        %v1267 = vld [vmem:[%s5] sm:$0x3]
        %v1269 = vlaneseq
        %v1270 = vshrl.u32 %v1269, 7
        %v1271 = vsub.s32 0, %v1270
        %v1272 = vrot.slane %v1267, %v1271
        %v1273 = vlaneseq
        %v1274 = vshrl.u32 %v1273, 7
        %v1275 = vsub.s32 1, %v1274
        %v1276 = vrot.slane %v1267, %v1275
        %v1279 = vadd.f32 %v1259, %v1272
        %v1280 = vadd.f32 %v1260, %v1276
        %v1281 = vadd.f32 %v1261, %v1272
        %v1282 = vadd.f32 %v1262, %v1276
        %v1283 = vadd.f32 %v1263, %v1272
        %v1284 = vadd.f32 %v1264, %v1276
        %v1285 = vadd.f32 %v1265, %v1272
        %v1286 = vadd.f32 %v1266, %v1276
        %v1287 = vpack.c.bf16 %v1281, %v1279
        %v1288 = vpack.c.bf16 %v1282, %v1280
        %v1289 = vpack.c.bf16 %v1285, %v1283
        %v1290 = vpack.c.bf16 %v1286, %v1284
        %v1291 = vld [vmem:[#allocation8] sm:$0xff]
        %v1292 = vld [vmem:[#allocation8 + $0x8] sm:$0xff]
        %v1293 = vld [vmem:[#allocation8 + $0x10] sm:$0xff]
        %v1294 = vld [vmem:[#allocation8 + $0x18] sm:$0xff]
        %v1295 = vld [vmem:[#allocation8 + $0x20] sm:$0xff]
        %v1296 = vld [vmem:[#allocation8 + $0x28] sm:$0xff]
        %v1297 = vld [vmem:[#allocation8 + $0x30] sm:$0xff]
        %v1298 = vld [vmem:[#allocation8 + $0x38] sm:$0xff]
        %v1299 = vld [vmem:[#allocation8 + $0x40] sm:$0xff]
        %v1300 = vld [vmem:[#allocation8 + $0x48] sm:$0xff]
        %v1301 = vld [vmem:[#allocation8 + $0x50] sm:$0xff]
        %v1302 = vld [vmem:[#allocation8 + $0x58] sm:$0xff]
        %v1303 = vld [vmem:[#allocation8 + $0x60] sm:$0xff]
        %v1304 = vld [vmem:[#allocation8 + $0x68] sm:$0xff]
        %v1305 = vld [vmem:[#allocation8 + $0x70] sm:$0xff]
        %v1306 = vld [vmem:[#allocation8 + $0x78] sm:$0xff]
        %v1307 = vld [vmem:[#allocation8 + $0x80] sm:$0xff]
        %v1308 = vld [vmem:[#allocation8 + $0x88] sm:$0xff]
        %v1309 = vld [vmem:[#allocation8 + $0x90] sm:$0xff]
        %v1310 = vld [vmem:[#allocation8 + $0x98] sm:$0xff]
        %v1311 = vld [vmem:[#allocation8 + $0xa0] sm:$0xff]
        %v1312 = vld [vmem:[#allocation8 + $0xa8] sm:$0xff]
        %v1313 = vld [vmem:[#allocation8 + $0xb0] sm:$0xff]
        %v1314 = vld [vmem:[#allocation8 + $0xb8] sm:$0xff]
        %v1315 = vld [vmem:[#allocation8 + $0xc0] sm:$0xff]
        %v1316 = vld [vmem:[#allocation8 + $0xc8] sm:$0xff]
        %v1317 = vld [vmem:[#allocation8 + $0xd0] sm:$0xff]
        %v1318 = vld [vmem:[#allocation8 + $0xd8] sm:$0xff]
        %v1319 = vld [vmem:[#allocation8 + $0xe0] sm:$0xff]
        %v1320 = vld [vmem:[#allocation8 + $0xe8] sm:$0xff]
        %v1321 = vld [vmem:[#allocation8 + $0xf0] sm:$0xff]
        %v1322 = vld [vmem:[#allocation8 + $0xf8] sm:$0xff]
        %v1323 = vld [vmem:[%s7] sm:$0x3]
        %v1325 = vlaneseq
        %v1326 = vshrl.u32 %v1325, 7
        %v1327 = vsub.s32 0, %v1326
        %v1328 = vrot.slane %v1323, %v1327
        %v1329 = vlaneseq
        %v1330 = vshrl.u32 %v1329, 7
        %v1331 = vsub.s32 1, %v1330
        %v1332 = vrot.slane %v1323, %v1331
        %v1367 = vunpack.c.l.b16 %v1291
        %v1368 = vunpack.c.h.b16 %v1291
        %v1369 = vunpack.c.l.b16 %v1292
        %v1370 = vunpack.c.h.b16 %v1292
        %v1371 = vunpack.c.l.b16 %v1293
        %v1372 = vunpack.c.h.b16 %v1293
        %v1373 = vunpack.c.l.b16 %v1294
        %v1374 = vunpack.c.h.b16 %v1294
        %v1375 = vunpack.c.l.b16 %v1295
        %v1376 = vunpack.c.h.b16 %v1295
        %v1377 = vunpack.c.l.b16 %v1296
        %v1378 = vunpack.c.h.b16 %v1296
        %v1379 = vunpack.c.l.b16 %v1297
        %v1380 = vunpack.c.h.b16 %v1297
        %v1381 = vunpack.c.l.b16 %v1298
        %v1382 = vunpack.c.h.b16 %v1298
        %v1383 = vunpack.c.l.b16 %v1299
        %v1384 = vunpack.c.h.b16 %v1299
        %v1385 = vunpack.c.l.b16 %v1300
        %v1386 = vunpack.c.h.b16 %v1300
        %v1387 = vunpack.c.l.b16 %v1301
        %v1388 = vunpack.c.h.b16 %v1301
        %v1389 = vunpack.c.l.b16 %v1302
        %v1390 = vunpack.c.h.b16 %v1302
        %v1391 = vunpack.c.l.b16 %v1303
        %v1392 = vunpack.c.h.b16 %v1303
        %v1393 = vunpack.c.l.b16 %v1304
        %v1394 = vunpack.c.h.b16 %v1304
        %v1395 = vunpack.c.l.b16 %v1305
        %v1396 = vunpack.c.h.b16 %v1305
        %v1397 = vunpack.c.l.b16 %v1306
        %v1398 = vunpack.c.h.b16 %v1306
        %v1399 = vunpack.c.l.b16 %v1307
        %v1400 = vunpack.c.h.b16 %v1307
        %v1401 = vunpack.c.l.b16 %v1308
        %v1402 = vunpack.c.h.b16 %v1308
        %v1403 = vunpack.c.l.b16 %v1309
        %v1404 = vunpack.c.h.b16 %v1309
        %v1405 = vunpack.c.l.b16 %v1310
        %v1406 = vunpack.c.h.b16 %v1310
        %v1407 = vunpack.c.l.b16 %v1311
        %v1408 = vunpack.c.h.b16 %v1311
        %v1409 = vunpack.c.l.b16 %v1312
        %v1410 = vunpack.c.h.b16 %v1312
        %v1411 = vunpack.c.l.b16 %v1313
        %v1412 = vunpack.c.h.b16 %v1313
        %v1413 = vunpack.c.l.b16 %v1314
        %v1414 = vunpack.c.h.b16 %v1314
        %v1415 = vunpack.c.l.b16 %v1315
        %v1416 = vunpack.c.h.b16 %v1315
        %v1417 = vunpack.c.l.b16 %v1316
        %v1418 = vunpack.c.h.b16 %v1316
        %v1419 = vunpack.c.l.b16 %v1317
        %v1420 = vunpack.c.h.b16 %v1317
        %v1421 = vunpack.c.l.b16 %v1318
        %v1422 = vunpack.c.h.b16 %v1318
        %v1423 = vunpack.c.l.b16 %v1319
        %v1424 = vunpack.c.h.b16 %v1319
        %v1425 = vunpack.c.l.b16 %v1320
        %v1426 = vunpack.c.h.b16 %v1320
        %v1427 = vunpack.c.l.b16 %v1321
        %v1428 = vunpack.c.h.b16 %v1321
        %v1429 = vunpack.c.l.b16 %v1322
        %v1430 = vunpack.c.h.b16 %v1322
        %v1431 = vpack.c.b16 %v1369, %v1367
        %v1432 = vpack.c.b16 %v1370, %v1368
        %v1433 = vpack.c.b16 %v1373, %v1371
        %v1434 = vpack.c.b16 %v1374, %v1372
        %v1435 = vpack.c.b16 %v1377, %v1375
        %v1436 = vpack.c.b16 %v1378, %v1376
        %v1437 = vpack.c.b16 %v1381, %v1379
        %v1438 = vpack.c.b16 %v1382, %v1380
        %v1439 = vpack.c.b16 %v1385, %v1383
        %v1440 = vpack.c.b16 %v1386, %v1384
        %v1441 = vpack.c.b16 %v1389, %v1387
        %v1442 = vpack.c.b16 %v1390, %v1388
        %v1443 = vpack.c.b16 %v1393, %v1391
        %v1444 = vpack.c.b16 %v1394, %v1392
        %v1445 = vpack.c.b16 %v1397, %v1395
        %v1446 = vpack.c.b16 %v1398, %v1396
        %v1447 = vpack.c.b16 %v1401, %v1399
        %v1448 = vpack.c.b16 %v1402, %v1400
        %v1449 = vpack.c.b16 %v1405, %v1403
        %v1450 = vpack.c.b16 %v1406, %v1404
        %v1451 = vpack.c.b16 %v1409, %v1407
        %v1452 = vpack.c.b16 %v1410, %v1408
        %v1453 = vpack.c.b16 %v1413, %v1411
        %v1454 = vpack.c.b16 %v1414, %v1412
        %v1455 = vpack.c.b16 %v1417, %v1415
        %v1456 = vpack.c.b16 %v1418, %v1416
        %v1457 = vpack.c.b16 %v1421, %v1419
        %v1458 = vpack.c.b16 %v1422, %v1420
        %v1459 = vpack.c.b16 %v1425, %v1423
        %v1460 = vpack.c.b16 %v1426, %v1424
        %v1461 = vpack.c.b16 %v1429, %v1427
        %v1462 = vpack.c.b16 %v1430, %v1428
        %1495 = vmatprep.subr.bf16.mxu0 %v1446
        %1496 = vmatpush1.bf16.msra.mxu0 %v1445
        %1497 = vmatprep.subr.bf16.mxu0 %v1444
        %1498 = vmatpush1.bf16.msra.mxu0 %v1443
        %1499 = vmatprep.subr.bf16.mxu0 %v1442
        %1500 = vmatpush1.bf16.msra.mxu0 %v1441
        %1501 = vmatprep.subr.bf16.mxu0 %v1440
        %1502 = vmatpush1.bf16.msra.mxu0 %v1439
        %1503 = vmatprep.subr.bf16.mxu0 %v1438
        %1504 = vmatpush1.bf16.msra.mxu0 %v1437
        %1505 = vmatprep.subr.bf16.mxu0 %v1436
        %1506 = vmatpush1.bf16.msra.mxu0 %v1435
        %1507 = vmatprep.subr.bf16.mxu0 %v1434
        %1508 = vmatpush1.bf16.msra.mxu0 %v1433
        %1509 = vmatprep.subr.bf16.mxu0 %v1432
        %1510 = vmatpush1.bf16.msra.mxu0 %v1431
        %1511 = vmatprep.subr.bf16.mxu0 %v1462
        %1512 = vmatpush2.bf16.msra.mxu0 %v1461
        %1513 = vmatprep.subr.bf16.mxu0 %v1460
        %1514 = vmatpush2.bf16.msra.mxu0 %v1459
        %1515 = vmatprep.subr.bf16.mxu0 %v1458
        %1516 = vmatpush2.bf16.msra.mxu0 %v1457
        %1517 = vmatprep.subr.bf16.mxu0 %v1456
        %1518 = vmatpush2.bf16.msra.mxu0 %v1455
        %1519 = vmatprep.subr.bf16.mxu0 %v1454
        %1520 = vmatpush2.bf16.msra.mxu0 %v1453
        %1521 = vmatprep.subr.bf16.mxu0 %v1452
        %1522 = vmatpush2.bf16.msra.mxu0 %v1451
        %1523 = vmatprep.subr.bf16.mxu0 %v1450
        %1524 = vmatpush2.bf16.msra.mxu0 %v1449
        %1525 = vmatprep.subr.bf16.mxu0 %v1448
        %1526 = vmatpush2.bf16.msra.mxu0 %v1447
        %1527 = vmatprep.mubr.bf16.mxu0 %v1288
        %1528 = vmatmul.mubr.bf16.gmra.mxu0 %v1287
        %v1529 = vpop.f32.mrf.mxu0
        %v1530 = vadd.f32 %v1328, %v1529
        %v1531 = vpop.f32.mrf.mxu0
        %v1532 = vadd.f32 %v1332, %v1531
        %v1533 = vpop.f32.mrf.mxu0
        %v1534 = vadd.f32 %v1328, %v1533
        %v1535 = vpop.f32.mrf.mxu0
        %v1536 = vadd.f32 %v1332, %v1535
        %1537 = vmatprep.mubr.bf16.mxu0 %v1290
        %1538 = vmatmul.mubr.bf16.gmra.mxu0 %v1289
        %v1539 = vpop.f32.mrf.mxu0
        %v1540 = vadd.f32 %v1328, %v1539
        %v1541 = vpop.f32.mrf.mxu0
        %v1542 = vadd.f32 %v1332, %v1541
        %v1543 = vpop.f32.mrf.mxu0
        %v1544 = vadd.f32 %v1328, %v1543
        %v1545 = vpop.f32.mrf.mxu0
        %v1546 = vadd.f32 %v1332, %v1545
        %1547 = vdwg.mxu0
        %v1548 = vadd.f32 %v1530, %v1279
        %v1549 = vadd.f32 %v1532, %v1280
        %v1550 = vadd.f32 %v1534, %v1281
        %v1551 = vadd.f32 %v1536, %v1282
        %v1552 = vadd.f32 %v1540, %v1283
        %v1553 = vadd.f32 %v1542, %v1284
        %v1554 = vadd.f32 %v1544, %v1285
        %v1555 = vadd.f32 %v1546, %v1286
        %v1556 = vxor.u32 %v1548, 2147483648
        %v1557 = vxor.u32 %v1549, 2147483648
        %v1558 = vxor.u32 %v1550, 2147483648
        %v1559 = vxor.u32 %v1551, 2147483648
        %v1560 = vxor.u32 %v1552, 2147483648
        %v1561 = vxor.u32 %v1553, 2147483648
        %v1562 = vxor.u32 %v1554, 2147483648
        %v1563 = vxor.u32 %v1555, 2147483648
        %v1564 = vmul.f32 %v1556, 1.442695
        %v1565 = vpow.pop %v1564
        %v1566 = vmul.f32 %v1557, 1.442695
        %v1567 = vpow.pop %v1566
        %v1568 = vmul.f32 %v1558, 1.442695
        %v1569 = vpow.pop %v1568
        %v1570 = vmul.f32 %v1559, 1.442695
        %v1571 = vpow.pop %v1570
        %v1572 = vmul.f32 %v1560, 1.442695
        %v1573 = vpow.pop %v1572
        %v1574 = vmul.f32 %v1561, 1.442695
        %v1575 = vpow.pop %v1574
        %v1576 = vmul.f32 %v1562, 1.442695
        %v1577 = vpow.pop %v1576
        %v1578 = vmul.f32 %v1563, 1.442695
        %v1579 = vpow.pop %v1578
        %v1580 = vadd.f32 %v1565, 1.0
        %v1581 = vadd.f32 %v1567, 1.0
        %v1582 = vadd.f32 %v1569, 1.0
        %v1583 = vadd.f32 %v1571, 1.0
        %v1584 = vadd.f32 %v1573, 1.0
        %v1585 = vadd.f32 %v1575, 1.0
        %v1586 = vadd.f32 %v1577, 1.0
        %v1587 = vadd.f32 %v1579, 1.0
        %v1588 = vrcp.pop %v1580
        %v1589 = vmul.f32 1.0, %v1588
        %v1590 = vrcp.pop %v1581
        %v1591 = vmul.f32 1.0, %v1590
        %v1592 = vrcp.pop %v1582
        %v1593 = vmul.f32 1.0, %v1592
        %v1594 = vrcp.pop %v1583
        %v1595 = vmul.f32 1.0, %v1594
        %v1596 = vrcp.pop %v1584
        %v1597 = vmul.f32 1.0, %v1596
        %v1598 = vrcp.pop %v1585
        %v1599 = vmul.f32 1.0, %v1598
        %v1600 = vrcp.pop %v1586
        %v1601 = vmul.f32 1.0, %v1600
        %v1602 = vrcp.pop %v1587
        %v1603 = vmul.f32 1.0, %v1602
        %v1604 = vmul.f32 %v1548, %v1589
        %v1605 = vmul.f32 %v1549, %v1591
        %v1606 = vmul.f32 %v1550, %v1593
        %v1607 = vmul.f32 %v1551, %v1595
        %v1608 = vmul.f32 %v1552, %v1597
        %v1609 = vmul.f32 %v1553, %v1599
        %v1610 = vmul.f32 %v1554, %v1601
        %v1611 = vmul.f32 %v1555, %v1603
        %v1612 = vadd.f32 %v1604, %v1605
        %1613 = vadd.xlane.f32.xlu0 %v1612
        %v1614 = vpop.xlane.xlu0 %1613
        %v1615 = vadd.f32 %v1606, %v1607
        %1616 = vadd.xlane.f32.xlu0 %v1615
        %v1617 = vpop.xlane.xlu0 %1616
        %v1618 = vadd.f32 %v1608, %v1609
        %1619 = vadd.xlane.f32.xlu0 %v1618
        %v1620 = vpop.xlane.xlu0 %1619
        %v1621 = vadd.f32 %v1610, %v1611
        %1622 = vadd.xlane.f32.xlu0 %v1621
        %v1623 = vpop.xlane.xlu0 %1622
        %v1624 = vmul.f32 %v1614, 0.00390625
        %v1625 = vmul.f32 %v1617, 0.00390625
        %v1626 = vmul.f32 %v1620, 0.00390625
        %v1627 = vmul.f32 %v1623, 0.00390625
        %v1628 = vsub.f32 %v1604, %v1624
        %v1629 = vsub.f32 %v1605, %v1624
        %v1630 = vsub.f32 %v1606, %v1625
        %v1631 = vsub.f32 %v1607, %v1625
        %v1632 = vsub.f32 %v1608, %v1626
        %v1633 = vsub.f32 %v1609, %v1626
        %v1634 = vsub.f32 %v1610, %v1627
        %v1635 = vsub.f32 %v1611, %v1627
        %v1636 = vmul.f32 %v1628, %v1628
        %v1637 = vmul.f32 %v1629, %v1629
        %v1638 = vmul.f32 %v1630, %v1630
        %v1639 = vmul.f32 %v1631, %v1631
        %v1640 = vmul.f32 %v1632, %v1632
        %v1641 = vmul.f32 %v1633, %v1633
        %v1642 = vmul.f32 %v1634, %v1634
        %v1643 = vmul.f32 %v1635, %v1635
        %v1644 = vadd.f32 %v1636, %v1637
        %1645 = vadd.xlane.f32.xlu0 %v1644
        %v1646 = vpop.xlane.xlu0 %1645
        %v1647 = vadd.f32 %v1638, %v1639
        %1648 = vadd.xlane.f32.xlu0 %v1647
        %v1649 = vpop.xlane.xlu0 %1648
        %v1650 = vadd.f32 %v1640, %v1641
        %1651 = vadd.xlane.f32.xlu0 %v1650
        %v1652 = vpop.xlane.xlu0 %1651
        %v1653 = vadd.f32 %v1642, %v1643
        %1654 = vadd.xlane.f32.xlu0 %v1653
        %v1655 = vpop.xlane.xlu0 %1654
        %v1656 = vmul.f32 %v1646, 0.00390625
        %v1657 = vmul.f32 %v1649, 0.00390625
        %v1658 = vmul.f32 %v1652, 0.00390625
        %v1659 = vmul.f32 %v1655, 0.00390625
        %v1660 = vadd.f32 %v1656, 0.1
        %v1661 = vadd.f32 %v1657, 0.1
        %v1662 = vadd.f32 %v1658, 0.1
        %v1663 = vadd.f32 %v1659, 0.1
        %v1664 = vrsqrt.pop %v1660
        %v1665 = vrsqrt.pop %v1661
        %v1666 = vrsqrt.pop %v1662
        %v1667 = vrsqrt.pop %v1663
        %v1668 = vmul.f32 %v1628, %v1664
        %v1669 = vmul.f32 %v1629, %v1664
        %v1670 = vmul.f32 %v1630, %v1665
        %v1671 = vmul.f32 %v1631, %v1665
        %v1672 = vmul.f32 %v1632, %v1666
        %v1673 = vmul.f32 %v1633, %v1666
        %v1674 = vmul.f32 %v1634, %v1667
        %v1675 = vmul.f32 %v1635, %v1667
        %v1676 = vld [vmem:[%s8] sm:$0x3]
        %v1678 = vlaneseq
        %v1679 = vshrl.u32 %v1678, 7
        %v1680 = vsub.s32 0, %v1679
        %v1681 = vrot.slane %v1676, %v1680
        %v1682 = vlaneseq
        %v1683 = vshrl.u32 %v1682, 7
        %v1684 = vsub.s32 1, %v1683
        %v1685 = vrot.slane %v1676, %v1684
        %v1688 = vmul.f32 %v1668, %v1681
        %v1689 = vmul.f32 %v1669, %v1685
        %v1690 = vmul.f32 %v1670, %v1681
        %v1691 = vmul.f32 %v1671, %v1685
        %v1692 = vmul.f32 %v1672, %v1681
        %v1693 = vmul.f32 %v1673, %v1685
        %v1694 = vmul.f32 %v1674, %v1681
        %v1695 = vmul.f32 %v1675, %v1685
        %v1696 = vld [vmem:[%s9] sm:$0x3]
        %v1698 = vlaneseq
        %v1699 = vshrl.u32 %v1698, 7
        %v1700 = vsub.s32 0, %v1699
        %v1701 = vrot.slane %v1696, %v1700
        %v1702 = vlaneseq
        %v1703 = vshrl.u32 %v1702, 7
        %v1704 = vsub.s32 1, %v1703
        %v1705 = vrot.slane %v1696, %v1704
        %v1708 = vadd.f32 %v1688, %v1701
        %v1709 = vadd.f32 %v1689, %v1705
        %v1710 = vadd.f32 %v1690, %v1701
        %v1711 = vadd.f32 %v1691, %v1705
        %v1712 = vadd.f32 %v1692, %v1701
        %v1713 = vadd.f32 %v1693, %v1705
        %v1714 = vadd.f32 %v1694, %v1701
        %v1715 = vadd.f32 %v1695, %v1705
        %v1716 = vpack.c.bf16 %v1710, %v1708
        %v1717 = vpack.c.bf16 %v1711, %v1709
        %v1718 = vpack.c.bf16 %v1714, %v1712
        %v1719 = vpack.c.bf16 %v1715, %v1713
        %v1720 = vld [vmem:[#allocation10] sm:$0xff]
        %v1721 = vld [vmem:[#allocation10 + $0x8] sm:$0xff]
        %v1722 = vld [vmem:[#allocation10 + $0x10] sm:$0xff]
        %v1723 = vld [vmem:[#allocation10 + $0x18] sm:$0xff]
        %v1724 = vld [vmem:[#allocation10 + $0x20] sm:$0xff]
        %v1725 = vld [vmem:[#allocation10 + $0x28] sm:$0xff]
        %v1726 = vld [vmem:[#allocation10 + $0x30] sm:$0xff]
        %v1727 = vld [vmem:[#allocation10 + $0x38] sm:$0xff]
        %v1728 = vld [vmem:[#allocation10 + $0x40] sm:$0xff]
        %v1729 = vld [vmem:[#allocation10 + $0x48] sm:$0xff]
        %v1730 = vld [vmem:[#allocation10 + $0x50] sm:$0xff]
        %v1731 = vld [vmem:[#allocation10 + $0x58] sm:$0xff]
        %v1732 = vld [vmem:[#allocation10 + $0x60] sm:$0xff]
        %v1733 = vld [vmem:[#allocation10 + $0x68] sm:$0xff]
        %v1734 = vld [vmem:[#allocation10 + $0x70] sm:$0xff]
        %v1735 = vld [vmem:[#allocation10 + $0x78] sm:$0xff]
        %v1736 = vld [vmem:[#allocation10 + $0x80] sm:$0xff]
        %v1737 = vld [vmem:[#allocation10 + $0x88] sm:$0xff]
        %v1738 = vld [vmem:[#allocation10 + $0x90] sm:$0xff]
        %v1739 = vld [vmem:[#allocation10 + $0x98] sm:$0xff]
        %v1740 = vld [vmem:[#allocation10 + $0xa0] sm:$0xff]
        %v1741 = vld [vmem:[#allocation10 + $0xa8] sm:$0xff]
        %v1742 = vld [vmem:[#allocation10 + $0xb0] sm:$0xff]
        %v1743 = vld [vmem:[#allocation10 + $0xb8] sm:$0xff]
        %v1744 = vld [vmem:[#allocation10 + $0xc0] sm:$0xff]
        %v1745 = vld [vmem:[#allocation10 + $0xc8] sm:$0xff]
        %v1746 = vld [vmem:[#allocation10 + $0xd0] sm:$0xff]
        %v1747 = vld [vmem:[#allocation10 + $0xd8] sm:$0xff]
        %v1748 = vld [vmem:[#allocation10 + $0xe0] sm:$0xff]
        %v1749 = vld [vmem:[#allocation10 + $0xe8] sm:$0xff]
        %v1750 = vld [vmem:[#allocation10 + $0xf0] sm:$0xff]
        %v1751 = vld [vmem:[#allocation10 + $0xf8] sm:$0xff]
        %v1752 = vld [vmem:[%s11] sm:$0x3]
        %v1754 = vlaneseq
        %v1755 = vshrl.u32 %v1754, 7
        %v1756 = vsub.s32 0, %v1755
        %v1757 = vrot.slane %v1752, %v1756
        %v1758 = vlaneseq
        %v1759 = vshrl.u32 %v1758, 7
        %v1760 = vsub.s32 1, %v1759
        %v1761 = vrot.slane %v1752, %v1760
        %v1796 = vunpack.c.l.b16 %v1720
        %v1797 = vunpack.c.h.b16 %v1720
        %v1798 = vunpack.c.l.b16 %v1721
        %v1799 = vunpack.c.h.b16 %v1721
        %v1800 = vunpack.c.l.b16 %v1722
        %v1801 = vunpack.c.h.b16 %v1722
        %v1802 = vunpack.c.l.b16 %v1723
        %v1803 = vunpack.c.h.b16 %v1723
        %v1804 = vunpack.c.l.b16 %v1724
        %v1805 = vunpack.c.h.b16 %v1724
        %v1806 = vunpack.c.l.b16 %v1725
        %v1807 = vunpack.c.h.b16 %v1725
        %v1808 = vunpack.c.l.b16 %v1726
        %v1809 = vunpack.c.h.b16 %v1726
        %v1810 = vunpack.c.l.b16 %v1727
        %v1811 = vunpack.c.h.b16 %v1727
        %v1812 = vunpack.c.l.b16 %v1728
        %v1813 = vunpack.c.h.b16 %v1728
        %v1814 = vunpack.c.l.b16 %v1729
        %v1815 = vunpack.c.h.b16 %v1729
        %v1816 = vunpack.c.l.b16 %v1730
        %v1817 = vunpack.c.h.b16 %v1730
        %v1818 = vunpack.c.l.b16 %v1731
        %v1819 = vunpack.c.h.b16 %v1731
        %v1820 = vunpack.c.l.b16 %v1732
        %v1821 = vunpack.c.h.b16 %v1732
        %v1822 = vunpack.c.l.b16 %v1733
        %v1823 = vunpack.c.h.b16 %v1733
        %v1824 = vunpack.c.l.b16 %v1734
        %v1825 = vunpack.c.h.b16 %v1734
        %v1826 = vunpack.c.l.b16 %v1735
        %v1827 = vunpack.c.h.b16 %v1735
        %v1828 = vunpack.c.l.b16 %v1736
        %v1829 = vunpack.c.h.b16 %v1736
        %v1830 = vunpack.c.l.b16 %v1737
        %v1831 = vunpack.c.h.b16 %v1737
        %v1832 = vunpack.c.l.b16 %v1738
        %v1833 = vunpack.c.h.b16 %v1738
        %v1834 = vunpack.c.l.b16 %v1739
        %v1835 = vunpack.c.h.b16 %v1739
        %v1836 = vunpack.c.l.b16 %v1740
        %v1837 = vunpack.c.h.b16 %v1740
        %v1838 = vunpack.c.l.b16 %v1741
        %v1839 = vunpack.c.h.b16 %v1741
        %v1840 = vunpack.c.l.b16 %v1742
        %v1841 = vunpack.c.h.b16 %v1742
        %v1842 = vunpack.c.l.b16 %v1743
        %v1843 = vunpack.c.h.b16 %v1743
        %v1844 = vunpack.c.l.b16 %v1744
        %v1845 = vunpack.c.h.b16 %v1744
        %v1846 = vunpack.c.l.b16 %v1745
        %v1847 = vunpack.c.h.b16 %v1745
        %v1848 = vunpack.c.l.b16 %v1746
        %v1849 = vunpack.c.h.b16 %v1746
        %v1850 = vunpack.c.l.b16 %v1747
        %v1851 = vunpack.c.h.b16 %v1747
        %v1852 = vunpack.c.l.b16 %v1748
        %v1853 = vunpack.c.h.b16 %v1748
        %v1854 = vunpack.c.l.b16 %v1749
        %v1855 = vunpack.c.h.b16 %v1749
        %v1856 = vunpack.c.l.b16 %v1750
        %v1857 = vunpack.c.h.b16 %v1750
        %v1858 = vunpack.c.l.b16 %v1751
        %v1859 = vunpack.c.h.b16 %v1751
        %v1860 = vpack.c.b16 %v1798, %v1796
        %v1861 = vpack.c.b16 %v1799, %v1797
        %v1862 = vpack.c.b16 %v1802, %v1800
        %v1863 = vpack.c.b16 %v1803, %v1801
        %v1864 = vpack.c.b16 %v1806, %v1804
        %v1865 = vpack.c.b16 %v1807, %v1805
        %v1866 = vpack.c.b16 %v1810, %v1808
        %v1867 = vpack.c.b16 %v1811, %v1809
        %v1868 = vpack.c.b16 %v1814, %v1812
        %v1869 = vpack.c.b16 %v1815, %v1813
        %v1870 = vpack.c.b16 %v1818, %v1816
        %v1871 = vpack.c.b16 %v1819, %v1817
        %v1872 = vpack.c.b16 %v1822, %v1820
        %v1873 = vpack.c.b16 %v1823, %v1821
        %v1874 = vpack.c.b16 %v1826, %v1824
        %v1875 = vpack.c.b16 %v1827, %v1825
        %v1876 = vpack.c.b16 %v1830, %v1828
        %v1877 = vpack.c.b16 %v1831, %v1829
        %v1878 = vpack.c.b16 %v1834, %v1832
        %v1879 = vpack.c.b16 %v1835, %v1833
        %v1880 = vpack.c.b16 %v1838, %v1836
        %v1881 = vpack.c.b16 %v1839, %v1837
        %v1882 = vpack.c.b16 %v1842, %v1840
        %v1883 = vpack.c.b16 %v1843, %v1841
        %v1884 = vpack.c.b16 %v1846, %v1844
        %v1885 = vpack.c.b16 %v1847, %v1845
        %v1886 = vpack.c.b16 %v1850, %v1848
        %v1887 = vpack.c.b16 %v1851, %v1849
        %v1888 = vpack.c.b16 %v1854, %v1852
        %v1889 = vpack.c.b16 %v1855, %v1853
        %v1890 = vpack.c.b16 %v1858, %v1856
        %v1891 = vpack.c.b16 %v1859, %v1857
        %1924 = vmatprep.subr.bf16.mxu0 %v1875
        %1925 = vmatpush1.bf16.msra.mxu0 %v1874
        %1926 = vmatprep.subr.bf16.mxu0 %v1873
        %1927 = vmatpush1.bf16.msra.mxu0 %v1872
        %1928 = vmatprep.subr.bf16.mxu0 %v1871
        %1929 = vmatpush1.bf16.msra.mxu0 %v1870
        %1930 = vmatprep.subr.bf16.mxu0 %v1869
        %1931 = vmatpush1.bf16.msra.mxu0 %v1868
        %1932 = vmatprep.subr.bf16.mxu0 %v1867
        %1933 = vmatpush1.bf16.msra.mxu0 %v1866
        %1934 = vmatprep.subr.bf16.mxu0 %v1865
        %1935 = vmatpush1.bf16.msra.mxu0 %v1864
        %1936 = vmatprep.subr.bf16.mxu0 %v1863
        %1937 = vmatpush1.bf16.msra.mxu0 %v1862
        %1938 = vmatprep.subr.bf16.mxu0 %v1861
        %1939 = vmatpush1.bf16.msra.mxu0 %v1860
        %1940 = vmatprep.subr.bf16.mxu0 %v1891
        %1941 = vmatpush2.bf16.msra.mxu0 %v1890
        %1942 = vmatprep.subr.bf16.mxu0 %v1889
        %1943 = vmatpush2.bf16.msra.mxu0 %v1888
        %1944 = vmatprep.subr.bf16.mxu0 %v1887
        %1945 = vmatpush2.bf16.msra.mxu0 %v1886
        %1946 = vmatprep.subr.bf16.mxu0 %v1885
        %1947 = vmatpush2.bf16.msra.mxu0 %v1884
        %1948 = vmatprep.subr.bf16.mxu0 %v1883
        %1949 = vmatpush2.bf16.msra.mxu0 %v1882
        %1950 = vmatprep.subr.bf16.mxu0 %v1881
        %1951 = vmatpush2.bf16.msra.mxu0 %v1880
        %1952 = vmatprep.subr.bf16.mxu0 %v1879
        %1953 = vmatpush2.bf16.msra.mxu0 %v1878
        %1954 = vmatprep.subr.bf16.mxu0 %v1877
        %1955 = vmatpush2.bf16.msra.mxu0 %v1876
        %1956 = vmatprep.mubr.bf16.mxu0 %v1717
        %1957 = vmatmul.mubr.bf16.gmra.mxu0 %v1716
        %v1958 = vpop.f32.mrf.mxu0
        %v1959 = vadd.f32 %v1757, %v1958
        %v1960 = vpop.f32.mrf.mxu0
        %v1961 = vadd.f32 %v1761, %v1960
        %v1962 = vpop.f32.mrf.mxu0
        %v1963 = vadd.f32 %v1757, %v1962
        %v1964 = vpop.f32.mrf.mxu0
        %v1965 = vadd.f32 %v1761, %v1964
        %1966 = vmatprep.mubr.bf16.mxu0 %v1719
        %1967 = vmatmul.mubr.bf16.gmra.mxu0 %v1718
        %v1968 = vpop.f32.mrf.mxu0
        %v1969 = vadd.f32 %v1757, %v1968
        %v1970 = vpop.f32.mrf.mxu0
        %v1971 = vadd.f32 %v1761, %v1970
        %v1972 = vpop.f32.mrf.mxu0
        %v1973 = vadd.f32 %v1757, %v1972
        %v1974 = vpop.f32.mrf.mxu0
        %v1975 = vadd.f32 %v1761, %v1974
        %1976 = vdwg.mxu0
        %v1977 = vadd.f32 %v1959, %v1279
        %v1978 = vadd.f32 %v1961, %v1280
        %v1979 = vadd.f32 %v1963, %v1281
        %v1980 = vadd.f32 %v1965, %v1282
        %v1981 = vadd.f32 %v1969, %v1283
        %v1982 = vadd.f32 %v1971, %v1284
        %v1983 = vadd.f32 %v1973, %v1285
        %v1984 = vadd.f32 %v1975, %v1286
        %v1985 = vadd.f32 %v1977, %v1708
        %v1986 = vadd.f32 %v1978, %v1709
        %v1987 = vadd.f32 %v1979, %v1710
        %v1988 = vadd.f32 %v1980, %v1711
        %v1989 = vadd.f32 %v1981, %v1712
        %v1990 = vadd.f32 %v1982, %v1713
        %v1991 = vadd.f32 %v1983, %v1714
        %v1992 = vadd.f32 %v1984, %v1715
        %v1993 = vxor.u32 %v1985, 2147483648
        %v1994 = vxor.u32 %v1986, 2147483648
        %v1995 = vxor.u32 %v1987, 2147483648
        %v1996 = vxor.u32 %v1988, 2147483648
        %v1997 = vxor.u32 %v1989, 2147483648
        %v1998 = vxor.u32 %v1990, 2147483648
        %v1999 = vxor.u32 %v1991, 2147483648
        %v2000 = vxor.u32 %v1992, 2147483648
        %v2001 = vmul.f32 %v1993, 1.442695
        %v2002 = vpow.pop %v2001
        %v2003 = vmul.f32 %v1994, 1.442695
        %v2004 = vpow.pop %v2003
        %v2005 = vmul.f32 %v1995, 1.442695
        %v2006 = vpow.pop %v2005
        %v2007 = vmul.f32 %v1996, 1.442695
        %v2008 = vpow.pop %v2007
        %v2009 = vmul.f32 %v1997, 1.442695
        %v2010 = vpow.pop %v2009
        %v2011 = vmul.f32 %v1998, 1.442695
        %v2012 = vpow.pop %v2011
        %v2013 = vmul.f32 %v1999, 1.442695
        %v2014 = vpow.pop %v2013
        %v2015 = vmul.f32 %v2000, 1.442695
        %v2016 = vpow.pop %v2015
        %v2017 = vadd.f32 %v2002, 1.0
        %v2018 = vadd.f32 %v2004, 1.0
        %v2019 = vadd.f32 %v2006, 1.0
        %v2020 = vadd.f32 %v2008, 1.0
        %v2021 = vadd.f32 %v2010, 1.0
        %v2022 = vadd.f32 %v2012, 1.0
        %v2023 = vadd.f32 %v2014, 1.0
        %v2024 = vadd.f32 %v2016, 1.0
        %v2025 = vrcp.pop %v2017
        %v2026 = vmul.f32 1.0, %v2025
        %v2027 = vrcp.pop %v2018
        %v2028 = vmul.f32 1.0, %v2027
        %v2029 = vrcp.pop %v2019
        %v2030 = vmul.f32 1.0, %v2029
        %v2031 = vrcp.pop %v2020
        %v2032 = vmul.f32 1.0, %v2031
        %v2033 = vrcp.pop %v2021
        %v2034 = vmul.f32 1.0, %v2033
        %v2035 = vrcp.pop %v2022
        %v2036 = vmul.f32 1.0, %v2035
        %v2037 = vrcp.pop %v2023
        %v2038 = vmul.f32 1.0, %v2037
        %v2039 = vrcp.pop %v2024
        %v2040 = vmul.f32 1.0, %v2039
        %v2041 = vmul.f32 %v1985, %v2026
        %v2042 = vmul.f32 %v1986, %v2028
        %v2043 = vmul.f32 %v1987, %v2030
        %v2044 = vmul.f32 %v1988, %v2032
        %v2045 = vmul.f32 %v1989, %v2034
        %v2046 = vmul.f32 %v1990, %v2036
        %v2047 = vmul.f32 %v1991, %v2038
        %v2048 = vmul.f32 %v1992, %v2040
        %v2049 = vadd.f32 %v2041, %v2042
        %2050 = vadd.xlane.f32.xlu0 %v2049
        %v2051 = vpop.xlane.xlu0 %2050
        %v2052 = vadd.f32 %v2043, %v2044
        %2053 = vadd.xlane.f32.xlu0 %v2052
        %v2054 = vpop.xlane.xlu0 %2053
        %v2055 = vadd.f32 %v2045, %v2046
        %2056 = vadd.xlane.f32.xlu0 %v2055
        %v2057 = vpop.xlane.xlu0 %2056
        %v2058 = vadd.f32 %v2047, %v2048
        %2059 = vadd.xlane.f32.xlu0 %v2058
        %v2060 = vpop.xlane.xlu0 %2059
        %v2061 = vmul.f32 %v2051, 0.00390625
        %v2062 = vmul.f32 %v2054, 0.00390625
        %v2063 = vmul.f32 %v2057, 0.00390625
        %v2064 = vmul.f32 %v2060, 0.00390625
        %v2065 = vsub.f32 %v2041, %v2061
        %v2066 = vsub.f32 %v2042, %v2061
        %v2067 = vsub.f32 %v2043, %v2062
        %v2068 = vsub.f32 %v2044, %v2062
        %v2069 = vsub.f32 %v2045, %v2063
        %v2070 = vsub.f32 %v2046, %v2063
        %v2071 = vsub.f32 %v2047, %v2064
        %v2072 = vsub.f32 %v2048, %v2064
        %v2073 = vmul.f32 %v2065, %v2065
        %v2074 = vmul.f32 %v2066, %v2066
        %v2075 = vmul.f32 %v2067, %v2067
        %v2076 = vmul.f32 %v2068, %v2068
        %v2077 = vmul.f32 %v2069, %v2069
        %v2078 = vmul.f32 %v2070, %v2070
        %v2079 = vmul.f32 %v2071, %v2071
        %v2080 = vmul.f32 %v2072, %v2072
        %v2081 = vadd.f32 %v2073, %v2074
        %2082 = vadd.xlane.f32.xlu0 %v2081
        %v2083 = vpop.xlane.xlu0 %2082
        %v2084 = vadd.f32 %v2075, %v2076
        %2085 = vadd.xlane.f32.xlu0 %v2084
        %v2086 = vpop.xlane.xlu0 %2085
        %v2087 = vadd.f32 %v2077, %v2078
        %2088 = vadd.xlane.f32.xlu0 %v2087
        %v2089 = vpop.xlane.xlu0 %2088
        %v2090 = vadd.f32 %v2079, %v2080
        %2091 = vadd.xlane.f32.xlu0 %v2090
        %v2092 = vpop.xlane.xlu0 %2091
        %v2093 = vmul.f32 %v2083, 0.00390625
        %v2094 = vmul.f32 %v2086, 0.00390625
        %v2095 = vmul.f32 %v2089, 0.00390625
        %v2096 = vmul.f32 %v2092, 0.00390625
        %v2097 = vadd.f32 %v2093, 0.1
        %v2098 = vadd.f32 %v2094, 0.1
        %v2099 = vadd.f32 %v2095, 0.1
        %v2100 = vadd.f32 %v2096, 0.1
        %v2101 = vrsqrt.pop %v2097
        %v2102 = vrsqrt.pop %v2098
        %v2103 = vrsqrt.pop %v2099
        %v2104 = vrsqrt.pop %v2100
        %v2105 = vmul.f32 %v2065, %v2101
        %v2106 = vmul.f32 %v2066, %v2101
        %v2107 = vmul.f32 %v2067, %v2102
        %v2108 = vmul.f32 %v2068, %v2102
        %v2109 = vmul.f32 %v2069, %v2103
        %v2110 = vmul.f32 %v2070, %v2103
        %v2111 = vmul.f32 %v2071, %v2104
        %v2112 = vmul.f32 %v2072, %v2104
        %v2113 = vld [vmem:[%s12] sm:$0x3]
        %v2115 = vlaneseq
        %v2116 = vshrl.u32 %v2115, 7
        %v2117 = vsub.s32 0, %v2116
        %v2118 = vrot.slane %v2113, %v2117
        %v2119 = vlaneseq
        %v2120 = vshrl.u32 %v2119, 7
        %v2121 = vsub.s32 1, %v2120
        %v2122 = vrot.slane %v2113, %v2121
        %v2125 = vmul.f32 %v2105, %v2118
        %v2126 = vmul.f32 %v2106, %v2122
        %v2127 = vmul.f32 %v2107, %v2118
        %v2128 = vmul.f32 %v2108, %v2122
        %v2129 = vmul.f32 %v2109, %v2118
        %v2130 = vmul.f32 %v2110, %v2122
        %v2131 = vmul.f32 %v2111, %v2118
        %v2132 = vmul.f32 %v2112, %v2122
        %v2133 = vld [vmem:[%s13] sm:$0x3]
        %v2135 = vlaneseq
        %v2136 = vshrl.u32 %v2135, 7
        %v2137 = vsub.s32 0, %v2136
        %v2138 = vrot.slane %v2133, %v2137
        %v2139 = vlaneseq
        %v2140 = vshrl.u32 %v2139, 7
        %v2141 = vsub.s32 1, %v2140
        %v2142 = vrot.slane %v2133, %v2141
        %v2145 = vadd.f32 %v2125, %v2138
        %v2146 = vadd.f32 %v2126, %v2142
        %v2147 = vadd.f32 %v2127, %v2138
        %v2148 = vadd.f32 %v2128, %v2142
        %v2149 = vadd.f32 %v2129, %v2138
        %v2150 = vadd.f32 %v2130, %v2142
        %v2151 = vadd.f32 %v2131, %v2138
        %v2152 = vadd.f32 %v2132, %v2142
        %v2153 = vpack.c.bf16 %v2147, %v2145
        %v2154 = vpack.c.bf16 %v2148, %v2146
        %v2155 = vpack.c.bf16 %v2151, %v2149
        %v2156 = vpack.c.bf16 %v2152, %v2150
        %v2157 = vld [vmem:[#allocation11] sm:$0xff]
        %v2158 = vld [vmem:[#allocation11 + $0x8] sm:$0xff]
        %v2159 = vld [vmem:[#allocation11 + $0x10] sm:$0xff]
        %v2160 = vld [vmem:[#allocation11 + $0x18] sm:$0xff]
        %v2161 = vld [vmem:[#allocation11 + $0x20] sm:$0xff]
        %v2162 = vld [vmem:[#allocation11 + $0x28] sm:$0xff]
        %v2163 = vld [vmem:[#allocation11 + $0x30] sm:$0xff]
        %v2164 = vld [vmem:[#allocation11 + $0x38] sm:$0xff]
        %v2165 = vld [vmem:[#allocation11 + $0x40] sm:$0xff]
        %v2166 = vld [vmem:[#allocation11 + $0x48] sm:$0xff]
        %v2167 = vld [vmem:[#allocation11 + $0x50] sm:$0xff]
        %v2168 = vld [vmem:[#allocation11 + $0x58] sm:$0xff]
        %v2169 = vld [vmem:[#allocation11 + $0x60] sm:$0xff]
        %v2170 = vld [vmem:[#allocation11 + $0x68] sm:$0xff]
        %v2171 = vld [vmem:[#allocation11 + $0x70] sm:$0xff]
        %v2172 = vld [vmem:[#allocation11 + $0x78] sm:$0xff]
        %v2173 = vld [vmem:[#allocation11 + $0x80] sm:$0xff]
        %v2174 = vld [vmem:[#allocation11 + $0x88] sm:$0xff]
        %v2175 = vld [vmem:[#allocation11 + $0x90] sm:$0xff]
        %v2176 = vld [vmem:[#allocation11 + $0x98] sm:$0xff]
        %v2177 = vld [vmem:[#allocation11 + $0xa0] sm:$0xff]
        %v2178 = vld [vmem:[#allocation11 + $0xa8] sm:$0xff]
        %v2179 = vld [vmem:[#allocation11 + $0xb0] sm:$0xff]
        %v2180 = vld [vmem:[#allocation11 + $0xb8] sm:$0xff]
        %v2181 = vld [vmem:[#allocation11 + $0xc0] sm:$0xff]
        %v2182 = vld [vmem:[#allocation11 + $0xc8] sm:$0xff]
        %v2183 = vld [vmem:[#allocation11 + $0xd0] sm:$0xff]
        %v2184 = vld [vmem:[#allocation11 + $0xd8] sm:$0xff]
        %v2185 = vld [vmem:[#allocation11 + $0xe0] sm:$0xff]
        %v2186 = vld [vmem:[#allocation11 + $0xe8] sm:$0xff]
        %v2187 = vld [vmem:[#allocation11 + $0xf0] sm:$0xff]
        %v2188 = vld [vmem:[#allocation11 + $0xf8] sm:$0xff]
        %v2189 = vld [vmem:[%s15] sm:$0x3]
        %v2191 = vlaneseq
        %v2192 = vshrl.u32 %v2191, 7
        %v2193 = vsub.s32 0, %v2192
        %v2194 = vrot.slane %v2189, %v2193
        %v2195 = vlaneseq
        %v2196 = vshrl.u32 %v2195, 7
        %v2197 = vsub.s32 1, %v2196
        %v2198 = vrot.slane %v2189, %v2197
        %v2233 = vunpack.c.l.b16 %v2157
        %v2234 = vunpack.c.h.b16 %v2157
        %v2235 = vunpack.c.l.b16 %v2158
        %v2236 = vunpack.c.h.b16 %v2158
        %v2237 = vunpack.c.l.b16 %v2159
        %v2238 = vunpack.c.h.b16 %v2159
        %v2239 = vunpack.c.l.b16 %v2160
        %v2240 = vunpack.c.h.b16 %v2160
        %v2241 = vunpack.c.l.b16 %v2161
        %v2242 = vunpack.c.h.b16 %v2161
        %v2243 = vunpack.c.l.b16 %v2162
        %v2244 = vunpack.c.h.b16 %v2162
        %v2245 = vunpack.c.l.b16 %v2163
        %v2246 = vunpack.c.h.b16 %v2163
        %v2247 = vunpack.c.l.b16 %v2164
        %v2248 = vunpack.c.h.b16 %v2164
        %v2249 = vunpack.c.l.b16 %v2165
        %v2250 = vunpack.c.h.b16 %v2165
        %v2251 = vunpack.c.l.b16 %v2166
        %v2252 = vunpack.c.h.b16 %v2166
        %v2253 = vunpack.c.l.b16 %v2167
        %v2254 = vunpack.c.h.b16 %v2167
        %v2255 = vunpack.c.l.b16 %v2168
        %v2256 = vunpack.c.h.b16 %v2168
        %v2257 = vunpack.c.l.b16 %v2169
        %v2258 = vunpack.c.h.b16 %v2169
        %v2259 = vunpack.c.l.b16 %v2170
        %v2260 = vunpack.c.h.b16 %v2170
        %v2261 = vunpack.c.l.b16 %v2171
        %v2262 = vunpack.c.h.b16 %v2171
        %v2263 = vunpack.c.l.b16 %v2172
        %v2264 = vunpack.c.h.b16 %v2172
        %v2265 = vunpack.c.l.b16 %v2173
        %v2266 = vunpack.c.h.b16 %v2173
        %v2267 = vunpack.c.l.b16 %v2174
        %v2268 = vunpack.c.h.b16 %v2174
        %v2269 = vunpack.c.l.b16 %v2175
        %v2270 = vunpack.c.h.b16 %v2175
        %v2271 = vunpack.c.l.b16 %v2176
        %v2272 = vunpack.c.h.b16 %v2176
        %v2273 = vunpack.c.l.b16 %v2177
        %v2274 = vunpack.c.h.b16 %v2177
        %v2275 = vunpack.c.l.b16 %v2178
        %v2276 = vunpack.c.h.b16 %v2178
        %v2277 = vunpack.c.l.b16 %v2179
        %v2278 = vunpack.c.h.b16 %v2179
        %v2279 = vunpack.c.l.b16 %v2180
        %v2280 = vunpack.c.h.b16 %v2180
        %v2281 = vunpack.c.l.b16 %v2181
        %v2282 = vunpack.c.h.b16 %v2181
        %v2283 = vunpack.c.l.b16 %v2182
        %v2284 = vunpack.c.h.b16 %v2182
        %v2285 = vunpack.c.l.b16 %v2183
        %v2286 = vunpack.c.h.b16 %v2183
        %v2287 = vunpack.c.l.b16 %v2184
        %v2288 = vunpack.c.h.b16 %v2184
        %v2289 = vunpack.c.l.b16 %v2185
        %v2290 = vunpack.c.h.b16 %v2185
        %v2291 = vunpack.c.l.b16 %v2186
        %v2292 = vunpack.c.h.b16 %v2186
        %v2293 = vunpack.c.l.b16 %v2187
        %v2294 = vunpack.c.h.b16 %v2187
        %v2295 = vunpack.c.l.b16 %v2188
        %v2296 = vunpack.c.h.b16 %v2188
        %v2297 = vpack.c.b16 %v2235, %v2233
        %v2298 = vpack.c.b16 %v2236, %v2234
        %v2299 = vpack.c.b16 %v2239, %v2237
        %v2300 = vpack.c.b16 %v2240, %v2238
        %v2301 = vpack.c.b16 %v2243, %v2241
        %v2302 = vpack.c.b16 %v2244, %v2242
        %v2303 = vpack.c.b16 %v2247, %v2245
        %v2304 = vpack.c.b16 %v2248, %v2246
        %v2305 = vpack.c.b16 %v2251, %v2249
        %v2306 = vpack.c.b16 %v2252, %v2250
        %v2307 = vpack.c.b16 %v2255, %v2253
        %v2308 = vpack.c.b16 %v2256, %v2254
        %v2309 = vpack.c.b16 %v2259, %v2257
        %v2310 = vpack.c.b16 %v2260, %v2258
        %v2311 = vpack.c.b16 %v2263, %v2261
        %v2312 = vpack.c.b16 %v2264, %v2262
        %v2313 = vpack.c.b16 %v2267, %v2265
        %v2314 = vpack.c.b16 %v2268, %v2266
        %v2315 = vpack.c.b16 %v2271, %v2269
        %v2316 = vpack.c.b16 %v2272, %v2270
        %v2317 = vpack.c.b16 %v2275, %v2273
        %v2318 = vpack.c.b16 %v2276, %v2274
        %v2319 = vpack.c.b16 %v2279, %v2277
        %v2320 = vpack.c.b16 %v2280, %v2278
        %v2321 = vpack.c.b16 %v2283, %v2281
        %v2322 = vpack.c.b16 %v2284, %v2282
        %v2323 = vpack.c.b16 %v2287, %v2285
        %v2324 = vpack.c.b16 %v2288, %v2286
        %v2325 = vpack.c.b16 %v2291, %v2289
        %v2326 = vpack.c.b16 %v2292, %v2290
        %v2327 = vpack.c.b16 %v2295, %v2293
        %v2328 = vpack.c.b16 %v2296, %v2294
        %2361 = vmatprep.subr.bf16.mxu0 %v2312
        %2362 = vmatpush1.bf16.msra.mxu0 %v2311
        %2363 = vmatprep.subr.bf16.mxu0 %v2310
        %2364 = vmatpush1.bf16.msra.mxu0 %v2309
        %2365 = vmatprep.subr.bf16.mxu0 %v2308
        %2366 = vmatpush1.bf16.msra.mxu0 %v2307
        %2367 = vmatprep.subr.bf16.mxu0 %v2306
        %2368 = vmatpush1.bf16.msra.mxu0 %v2305
        %2369 = vmatprep.subr.bf16.mxu0 %v2304
        %2370 = vmatpush1.bf16.msra.mxu0 %v2303
        %2371 = vmatprep.subr.bf16.mxu0 %v2302
        %2372 = vmatpush1.bf16.msra.mxu0 %v2301
        %2373 = vmatprep.subr.bf16.mxu0 %v2300
        %2374 = vmatpush1.bf16.msra.mxu0 %v2299
        %2375 = vmatprep.subr.bf16.mxu0 %v2298
        %2376 = vmatpush1.bf16.msra.mxu0 %v2297
        %2377 = vmatprep.subr.bf16.mxu0 %v2328
        %2378 = vmatpush2.bf16.msra.mxu0 %v2327
        %2379 = vmatprep.subr.bf16.mxu0 %v2326
        %2380 = vmatpush2.bf16.msra.mxu0 %v2325
        %2381 = vmatprep.subr.bf16.mxu0 %v2324
        %2382 = vmatpush2.bf16.msra.mxu0 %v2323
        %2383 = vmatprep.subr.bf16.mxu0 %v2322
        %2384 = vmatpush2.bf16.msra.mxu0 %v2321
        %2385 = vmatprep.subr.bf16.mxu0 %v2320
        %2386 = vmatpush2.bf16.msra.mxu0 %v2319
        %2387 = vmatprep.subr.bf16.mxu0 %v2318
        %2388 = vmatpush2.bf16.msra.mxu0 %v2317
        %2389 = vmatprep.subr.bf16.mxu0 %v2316
        %2390 = vmatpush2.bf16.msra.mxu0 %v2315
        %2391 = vmatprep.subr.bf16.mxu0 %v2314
        %2392 = vmatpush2.bf16.msra.mxu0 %v2313
        %2393 = vmatprep.mubr.bf16.mxu0 %v2154
        %2394 = vmatmul.mubr.bf16.gmra.mxu0 %v2153
        %v2395 = vpop.f32.mrf.mxu0
        %v2396 = vadd.f32 %v2194, %v2395
        %v2397 = vpop.f32.mrf.mxu0
        %v2398 = vadd.f32 %v2198, %v2397
        %v2399 = vpop.f32.mrf.mxu0
        %v2400 = vadd.f32 %v2194, %v2399
        %v2401 = vpop.f32.mrf.mxu0
        %v2402 = vadd.f32 %v2198, %v2401
        %2403 = vmatprep.mubr.bf16.mxu0 %v2156
        %2404 = vmatmul.mubr.bf16.gmra.mxu0 %v2155
        %v2405 = vpop.f32.mrf.mxu0
        %v2406 = vadd.f32 %v2194, %v2405
        %v2407 = vpop.f32.mrf.mxu0
        %v2408 = vadd.f32 %v2198, %v2407
        %v2409 = vpop.f32.mrf.mxu0
        %v2410 = vadd.f32 %v2194, %v2409
        %v2411 = vpop.f32.mrf.mxu0
        %v2412 = vadd.f32 %v2198, %v2411
        %2413 = vdwg.mxu0
        %v2414 = vmul.f32 %v663, %v663
        %v2415 = vmul.f32 %v664, %v664
        %v2416 = vmul.f32 %v665, %v665
        %v2417 = vmul.f32 %v666, %v666
        %v2418 = vadd.f32 %v2414, 1.837877
        %v2419 = vadd.f32 %v2415, 1.837877
        %v2420 = vadd.f32 %v2416, 1.837877
        %v2421 = vadd.f32 %v2417, 1.837877
        %v2422 = vmul.f32 %v2418, -0.5
        %v2423 = vmul.f32 %v2419, -0.5
        %v2424 = vmul.f32 %v2420, -0.5
        %v2425 = vmul.f32 %v2421, -0.5
        %v2426 = vadd.f32 %v2422, -1.89712
        %v2427 = vadd.f32 %v2423, -1.89712
        %v2428 = vadd.f32 %v2424, -1.89712
        %v2429 = vadd.f32 %v2425, -1.89712
        %v2430 = vsub.f32 %v663, %v2396
        %v2431 = vsub.f32 %v664, %v2400
        %v2432 = vsub.f32 %v665, %v2406
        %v2433 = vsub.f32 %v666, %v2410
        %v2434 = vadd.f32 %v2398, 1.837877
        %v2435 = vadd.f32 %v2402, 1.837877
        %v2436 = vadd.f32 %v2408, 1.837877
        %v2437 = vadd.f32 %v2412, 1.837877
        %v2438 = vmul.f32 %v2430, %v2430
        %v2439 = vmul.f32 %v2431, %v2431
        %v2440 = vmul.f32 %v2432, %v2432
        %v2441 = vmul.f32 %v2433, %v2433
        %v2442 = vsub.f32 0.0, %v2398
        %v2443 = vsub.f32 0.0, %v2402
        %v2444 = vsub.f32 0.0, %v2408
        %v2445 = vsub.f32 0.0, %v2412
        %v2446 = vmul.f32 %v2442, 1.442695
        %v2447 = vpow.pop %v2446
        %v2448 = vmul.f32 %v2443, 1.442695
        %v2449 = vpow.pop %v2448
        %v2450 = vmul.f32 %v2444, 1.442695
        %v2451 = vpow.pop %v2450
        %v2452 = vmul.f32 %v2445, 1.442695
        %v2453 = vpow.pop %v2452
        %v2454 = vmul.f32 %v2438, %v2447
        %v2455 = vmul.f32 %v2439, %v2449
        %v2456 = vmul.f32 %v2440, %v2451
        %v2457 = vmul.f32 %v2441, %v2453
        %v2458 = vadd.f32 %v2434, %v2454
        %v2459 = vadd.f32 %v2435, %v2455
        %v2460 = vadd.f32 %v2436, %v2456
        %v2461 = vadd.f32 %v2437, %v2457
        %v2462 = vmul.f32 %v2458, -0.5
        %v2463 = vmul.f32 %v2459, -0.5
        %v2464 = vmul.f32 %v2460, -0.5
        %v2465 = vmul.f32 %v2461, -0.5
        %v2466 = vadd.f32 %v2462, -0.2876821
        %v2467 = vadd.f32 %v2463, -0.2876821
        %v2468 = vadd.f32 %v2464, -0.2876821
        %v2469 = vadd.f32 %v2465, -0.2876821
        %v2470 = vmul.f32 %v2414, 4.539993e-05
        %v2471 = vmul.f32 %v2415, 4.539993e-05
        %v2472 = vmul.f32 %v2416, 4.539993e-05
        %v2473 = vmul.f32 %v2417, 4.539993e-05
        %v2474 = vadd.f32 %v2470, 11.837877
        %v2475 = vadd.f32 %v2471, 11.837877
        %v2476 = vadd.f32 %v2472, 11.837877
        %v2477 = vadd.f32 %v2473, 11.837877
        %v2478 = vmul.f32 %v2474, -0.5
        %v2479 = vmul.f32 %v2475, -0.5
        %v2480 = vmul.f32 %v2476, -0.5
        %v2481 = vmul.f32 %v2477, -0.5
        %v2482 = vadd.f32 %v2478, -2.3025851
        %v2483 = vadd.f32 %v2479, -2.3025851
        %v2484 = vadd.f32 %v2480, -2.3025851
        %v2485 = vadd.f32 %v2481, -2.3025851
        %v2486 = vmax.f32 %v2426, %v2466
        %v2487 = vmax.f32 %v2427, %v2467
        %v2488 = vmax.f32 %v2428, %v2468
        %v2489 = vmax.f32 %v2429, %v2469
        %v2490 = vmax.f32 %v2486, %v2482
        %v2491 = vmax.f32 %v2487, %v2483
        %v2492 = vmax.f32 %v2488, %v2484
        %v2493 = vmax.f32 %v2489, %v2485
        %v2494 = vsub.f32 %v2426, %v2490
        %v2495 = vsub.f32 %v2427, %v2491
        %v2496 = vsub.f32 %v2428, %v2492
        %v2497 = vsub.f32 %v2429, %v2493
        %v2498 = vmul.f32 %v2494, 1.442695
        %v2499 = vpow.pop %v2498
        %v2500 = vmul.f32 %v2495, 1.442695
        %v2501 = vpow.pop %v2500
        %v2502 = vmul.f32 %v2496, 1.442695
        %v2503 = vpow.pop %v2502
        %v2504 = vmul.f32 %v2497, 1.442695
        %v2505 = vpow.pop %v2504
        %v2506 = vsub.f32 %v2466, %v2490
        %v2507 = vsub.f32 %v2467, %v2491
        %v2508 = vsub.f32 %v2468, %v2492
        %v2509 = vsub.f32 %v2469, %v2493
        %v2510 = vmul.f32 %v2506, 1.442695
        %v2511 = vpow.pop %v2510
        %v2512 = vmul.f32 %v2507, 1.442695
        %v2513 = vpow.pop %v2512
        %v2514 = vmul.f32 %v2508, 1.442695
        %v2515 = vpow.pop %v2514
        %v2516 = vmul.f32 %v2509, 1.442695
        %v2517 = vpow.pop %v2516
        %v2518 = vadd.f32 %v2499, %v2511
        %v2519 = vadd.f32 %v2501, %v2513
        %v2520 = vadd.f32 %v2503, %v2515
        %v2521 = vadd.f32 %v2505, %v2517
        %v2522 = vsub.f32 %v2482, %v2490
        %v2523 = vsub.f32 %v2483, %v2491
        %v2524 = vsub.f32 %v2484, %v2492
        %v2525 = vsub.f32 %v2485, %v2493
        %v2526 = vmul.f32 %v2522, 1.442695
        %v2527 = vpow.pop %v2526
        %v2528 = vmul.f32 %v2523, 1.442695
        %v2529 = vpow.pop %v2528
        %v2530 = vmul.f32 %v2524, 1.442695
        %v2531 = vpow.pop %v2530
        %v2532 = vmul.f32 %v2525, 1.442695
        %v2533 = vpow.pop %v2532
        %v2534 = vadd.f32 %v2518, %v2527
        %v2535 = vadd.f32 %v2519, %v2529
        %v2536 = vadd.f32 %v2520, %v2531
        %v2537 = vadd.f32 %v2521, %v2533
        %v2538 = vlog2.pop %v2534
        %v2539 = vmul.f32 %v2538, 0.6931472
        %v2540 = vlog2.pop %v2535
        %v2541 = vmul.f32 %v2540, 0.6931472
        %v2542 = vlog2.pop %v2536
        %v2543 = vmul.f32 %v2542, 0.6931472
        %v2544 = vlog2.pop %v2537
        %v2545 = vmul.f32 %v2544, 0.6931472
        %v2546 = vadd.f32 %v2490, %v2539
        %v2547 = vadd.f32 %v2491, %v2541
        %v2548 = vadd.f32 %v2492, %v2543
        %v2549 = vadd.f32 %v2493, %v2545
        %2550 = vst [vmem:[%s638] sm:$0xff] %v2546
        %2551 = vst [vmem:[%s638 + $0x8] sm:$0xff] %v2547
        %2552 = vst [vmem:[%s638 + $0x10] sm:$0xff] %v2548
        %2553 = vst [vmem:[%s638 + $0x18] sm:$0xff] %v2549
        %s2554 = sand.u32 %s392, 1
        %s2555 = scalar_lea.sflag [#allocation4], %s2554
        %s2556 = sand.u32 %s392, 1
        %s2557 = smul.addr %s2556, 32
        %s2558 = scalar_lea.vmem [#allocation13], %s2557
        // Predicated region
        $region109: #{tpu_custom_call.1} parent=83 // pred_check
          %p2559 = pneg %p402
        $region110: #{tpu_custom_call.1} parent=83 // pred_check_branch
          %2561 = sbr.rel (%p2559) target = $region112
        $region111: #{tpu_custom_call.1} parent=83 // pred_region
          %s2562 = smul.u32 4, %s38
          %s2564 = ssub.s32 512, 512
          %2565 = vsyncadd %s2555, %s2564
          %s2566 = smul.addr %s2562, 128
          %s2567 = scalar_lea.hbm %s16, %s2566
          %s2568 = sshll.u32 %s2558, 4
          %s2569 = int_to_ptr.vmem [resolvable:$true] %s2568
          %2574 = dma.vmem_to_hbm [thread:$0]  %s2569, 512, %s2567, %s2555, 128, 128, 8
        $region112: #{tpu_custom_call.1} parent=83 // pred_fallthru
          _
      $region84: #{tpu_custom_call.1} parent=5 // pred_fallthru
        _
      %p2575 = scmp.le.s32.totalorder 2, %s33
      // Predicated region
      $region113: #{tpu_custom_call.1} parent=5 // pred_check
        %p2576 = pneg %p2575
      $region114: #{tpu_custom_call.1} parent=5 // pred_check_branch
        %2578 = sbr.rel (%p2576) target = $region116
      $region115: #{tpu_custom_call.1} parent=5 // pred_region
        %s2579 = ssub.s32 %s33, 2
        // Predicated region
        $region117: #{tpu_custom_call.1} parent=115 // pred_check
          %p2580 = pneg %p408
        $region118: #{tpu_custom_call.1} parent=115 // pred_check_branch
          %2582 = sbr.rel (%p2580) target = $region120
        $region119: #{tpu_custom_call.1} parent=115 // pred_region
          %s2583 = sand.u32 %s393, 1
          %s2584 = scalar_lea.sflag [#allocation4], %s2583
          %s2585 = sand.u32 %s393, 1
          %s2586 = smul.addr %s2585, 32
          %s2587 = scalar_lea.vmem [#allocation13], %s2586
          %2588 = dma.done %s2584, 512
        $region120: #{tpu_custom_call.1} parent=115 // pred_fallthru
          _
      $region116: #{tpu_custom_call.1} parent=5 // pred_fallthru
        _
    $region6: #{tpu_custom_call.1} parent=1 // loop_footer
      %s37 = sadd.s32 1, %s33
    $region7: #{tpu_custom_call.1} parent=1 // loop_footer_branch
      %32 = sbr.rel target = $region3
    $region8: #{tpu_custom_call.1} parent=1 // loop_exit
      _
    %2589 = vsyncpa [#allocation3], 1
    %s2590 = scalar_lea.sflag [#allocation3], 1
    %2591 = vsyncpa %s2590, 1
    %2592 = vsyncpa [#allocation6], 1
    %s2593 = scalar_lea.sflag [#allocation6], 1
    %2594 = vsyncpa %s2593, 1
    %2595 = vsyncpa [#allocation9], 1
    %2596 = vsyncpa [#allocation12], 1
    %2597 = vsyncpa [#allocation4], 1
    %s2598 = scalar_lea.sflag [#allocation4], 1
    %2599 = vsyncpa %s2598, 1

</llo_original>
